<compile_context>
chip_gen: v7x
topology: tpu7x:2x2x1
jax: 0.10.0
libtpu: 0.0.40
codegen_flags: <defaults>
</compile_context>

<pallas_src>
import math

import jax
import jax.numpy as jnp
from jax.experimental import pallas as pl
from jax.experimental.pallas import tpu as pltpu


# MXU input dtype (fp32 accumulation, fp32 bias/ReLU epilogue - v5e-safe).
# Set to jnp.float32 for exact fp32 math.
CDT = jnp.bfloat16


# ---------------------------------------------------------------------------
# Weight / helper-matrix preprocessing (plain JAX; pure functions of the
# static parameters -> run ONCE outside the jitted forward).
# ---------------------------------------------------------------------------
def _conv3_weight_cat(kernel, width):
    """(3,3,cin,cout) -> (3*width*cin, width*cout) kh-folded banded matrix.

    Row block kh holds banded[kh][w_in*cin+ci, w_out*cout+co] =
    kernel[kh,kw,ci,co] with w_in = w_out + kw - 1 (zero outside range = the
    zero padding along W).  The kernel contracts all three kh taps, the kw
    taps and Cin in a single MXU dot against the three row-shifted copies of
    the input slab.
    """
    cin, cout = kernel.shape[2], kernel.shape[3]
    shifts = jnp.stack(
        [jnp.eye(width, k=1 - kw, dtype=kernel.dtype) for kw in range(3)])
    banded = jnp.einsum("kab,hkcd->hacbd", shifts, kernel)
    return banded.reshape(3 * width * cin, width * cout)


def _deconv2_col_weights(kernel, width):
    """(2,2,cin,cout) -> (2, width*cin, 2*width*cout) column-expanding mats.

    out[kh][w*cin+ci, (2w+kw)*cout+co] = kernel[kh, kw, ci, co]
    (stride-2 transposed conv along W as one matmul per kernel row).
    """
    cin, cout = kernel.shape[2], kernel.shape[3]
    idx = jnp.arange(width)
    expand = jnp.stack([
        jnp.zeros((width, 2 * width), kernel.dtype).at[idx, 2 * idx + kw].set(1.0)
        for kw in range(2)])
    out = jnp.einsum("kab,hkcd->hacbd", expand, kernel)
    return out.reshape(2, width * cin, 2 * width * cout)


def _row_interleave_mats(rows):
    """(2, 2*rows, rows) 0/1 matrices: d[kh] @ y puts y row r at row 2r+kh."""
    idx = jnp.arange(rows)
    return jnp.stack([
        jnp.zeros((2 * rows, rows), jnp.float32).at[2 * idx + kh, idx].set(1.0)
        for kh in range(2)])


def _pool_row_select(rows):
    """(2, rows//2, rows) 0/1 matrices selecting even / odd rows."""
    idx = jnp.arange(rows // 2)
    return jnp.stack([
        jnp.zeros((rows // 2, rows), jnp.float32).at[idx, 2 * idx + kh].set(1.0)
        for kh in range(2)])


def _pool_col_select(w, c):
    """(2, w*c, (w//2)*c) 0/1 matrices selecting even / odd pixels per row."""
    idx = jnp.arange(w // 2)
    eye_c = jnp.eye(c, dtype=jnp.float32)
    mats = []
    for kw in range(2):
        t = jnp.zeros((w, w // 2), jnp.float32).at[2 * idx + kw, idx].set(1.0)
        mats.append(
            jnp.einsum("ab,cd->acbd", t, eye_c).reshape(w * c, (w // 2) * c))
    return jnp.stack(mats)


def _tile_bias(b, w):
    return jnp.tile(b, w)[None, :].astype(jnp.float32)


def prepare_inputs(params, batch, height, width):
    """All banded / helper matrices the fused kernel needs, in flat order."""
    arrs = []
    h, w = height, width
    for enc in params["encodes"]:
        cout = enc["w2"].shape[3]
        arrs += [
            _conv3_weight_cat(enc["w1"], w).astype(CDT),
            _tile_bias(enc["b1"], w),
            _conv3_weight_cat(enc["w2"], w).astype(CDT),
            _tile_bias(enc["b2"], w),
            _pool_row_select(batch * h).astype(CDT),
            _pool_col_select(w, cout).astype(CDT),
        ]
        h, w = h // 2, w // 2
    bn = params["bottleneck"]
    arrs += [
        _conv3_weight_cat(bn["w1"], w).astype(CDT),
        _tile_bias(bn["b1"], w),
        _conv3_weight_cat(bn["w2"], w).astype(CDT),
        _tile_bias(bn["b2"], w),
    ]
    for up_p, dc_p in zip(params["ups"], params["decs"]):
        cd = up_p["w"].shape[3]
        arrs += [
            _deconv2_col_weights(up_p["w"], w).astype(CDT),
            _row_interleave_mats(batch * h).astype(CDT),
            _tile_bias(up_p["b"], 2 * w),
            _conv3_weight_cat(dc_p["w1"][:, :, :cd, :], 2 * w).astype(CDT),  # skip half
            _conv3_weight_cat(dc_p["w1"][:, :, cd:, :], 2 * w).astype(CDT),  # up half
            _tile_bias(dc_p["b1"], 2 * w),
            _conv3_weight_cat(dc_p["w2"], 2 * w).astype(CDT),
            _tile_bias(dc_p["b2"], 2 * w),
        ]
        h, w = 2 * h, 2 * w
    fw, fb = params["final"]["w"], params["final"]["b"]
    cin_f, cout_f = fw.shape
    kr = jnp.einsum("ab,cd->acbd", jnp.eye(w, dtype=fw.dtype), fw)
    arrs += [kr.reshape(w * cin_f, w * cout_f).astype(CDT), _tile_bias(fb, w)]
    return tuple(arrs)


# ---------------------------------------------------------------------------
# Fused Pallas kernel
# ---------------------------------------------------------------------------
def _shifted_rows(x, h_img):
    """Row shifts for the kh taps of a 3x3 conv on a batch-folded row slab.

    x: (n_img*h_img, K) fp32.  Returns (up, x, dn) with up[r] = x[r-1] and
    dn[r] = x[r+1], zeroed at per-image boundaries (padding=1).  Pure
    slicing/VPU masking - no MXU work, no fp32 shift matmuls.
    """
    r, k = x.shape
    zrow = jnp.zeros((1, k), x.dtype)
    up = jnp.concatenate([zrow, x[:-1, :]], axis=0)
    dn = jnp.concatenate([x[1:, :], zrow], axis=0)
    if r != h_img:  # multiple images folded along rows: zero cross-image rows
        row = jax.lax.broadcasted_iota(jnp.int32, (r, 1), 0) % h_img
        up = jnp.where(row == 0, 0.0, up)
        dn = jnp.where(row == h_img - 1, 0.0, dn)
    return up, x, dn


def _make_kernel(n_enc, n_img):
    """Builds the whole-network kernel (static stage count / batch closed over)."""

    def kernel(*refs):
        out_ref = refs[-1]
        args = refs[:-1]
        pos = [0]

        def take(k):
            vals = args[pos[0]:pos[0] + k]
            pos[0] += k
            return vals

        def conv3x3_relu(x, wc_ref, b_ref):
            # Single bf16 dot with K = 3*W*Cin (kh taps + kw taps + Cin folded),
            # fp32 accumulation, fp32 bias + ReLU epilogue.
            h_img = x.shape[0] // n_img
            up, mid, dn = _shifted_rows(x, h_img)
            xc = jnp.concatenate([up, mid, dn], axis=1).astype(wc_ref.dtype)
            y = jnp.dot(xc, wc_ref[...], preferred_element_type=jnp.float32)
            return jnp.maximum(y + b_ref[...], 0.0)

        (x_ref,) = take(1)
        x = x_ref[...]                                   # (N*H, W*Cin) fp32

        # ---------------- encoder: DoubleConv + MaxPool2d(2), skips in VMEM --
        skips = []
        for _ in range(n_enc):
            wc1, b1, wc2, b2, rsel, csel = take(6)
            y = conv3x3_relu(x, wc1, b1)
            # TODO(synk): Dropout2d(p=0.2) is eval-mode identity here.
            y = conv3x3_relu(y, wc2, b2)
            skips.append(y)
            # MaxPool2d(2): exact 0/1 bf16 selection matmuls + elementwise max.
            yb = y.astype(rsel.dtype)
            rmax = jnp.maximum(
                jnp.dot(rsel[0], yb, preferred_element_type=jnp.float32),
                jnp.dot(rsel[1], yb, preferred_element_type=jnp.float32))
            rb = rmax.astype(csel.dtype)
            x = jnp.maximum(
                jnp.dot(rb, csel[0], preferred_element_type=jnp.float32),
                jnp.dot(rb, csel[1], preferred_element_type=jnp.float32))

        # ---------------- bottleneck -----------------------------------------
        wc1, b1, wc2, b2 = take(4)
        x = conv3x3_relu(x, wc1, b1)
        # TODO(synk): Dropout2d(p=0.2) is eval-mode identity here.
        x = conv3x3_relu(x, wc2, b2)

        # ---------------- decoder: deconv + cat(skip, up) + DoubleConv -------
        for skip in skips[::-1]:
            m, d, bu, wc1s, wc1u, b1, wc2, b2 = take(8)
            # ConvTranspose2d(k=2,s=2): column-expanding bf16 matmuls + exact
            # 0/1 bf16 row-interleave matmuls; the upsample never touches HBM.
            xb = x.astype(m.dtype)
            up = None
            for kh in range(2):
                yk = jnp.dot(xb, m[kh], preferred_element_type=jnp.float32)
                yk = jnp.dot(d[kh], yk.astype(d.dtype),
                             preferred_element_type=jnp.float32)
                up = yk if up is None else up + yk
            up = up + bu[...]
            # conv1 over cat(skip, up): split banded weights, shared row shifts.
            h_img = up.shape[0] // n_img
            su, sm, sd = _shifted_rows(skip, h_img)
            uu, um, ud = _shifted_rows(up, h_img)
            s_cat = jnp.concatenate([su, sm, sd], axis=1).astype(wc1s.dtype)
            u_cat = jnp.concatenate([uu, um, ud], axis=1).astype(wc1u.dtype)
            acc = (jnp.dot(s_cat, wc1s[...], preferred_element_type=jnp.float32) +
                   jnp.dot(u_cat, wc1u[...], preferred_element_type=jnp.float32))
            y = jnp.maximum(acc + b1[...], 0.0)
            # TODO(synk): Dropout2d(p=0.2) is eval-mode identity here.
            x = conv3x3_relu(y, wc2, b2)

        # ---------------- final 1x1 conv --------------------------------------
        wf, bf = take(2)
        y = jnp.dot(x.astype(wf.dtype), wf[...],
                    preferred_element_type=jnp.float32)
        out_ref[...] = (y + bf[...]).astype(out_ref.dtype)

    return kernel


def fused_forward(prepared, x_nhwc, channels, out_channels):
    """Whole SegmentationModel forward as one pallas_call (batch folded in M)."""
    n, h, w, cin = x_nhwc.shape
    x = x_nhwc.reshape(n * h, w * cin)                   # free row-slab reshape
    kernel = _make_kernel(len(channels), n)
    vmem = pl.BlockSpec(memory_space=pltpu.MemorySpace.VMEM)
    out = pl.pallas_call(
        kernel,
        out_shape=jax.ShapeDtypeStruct((n * h, w * out_channels), jnp.float32),
        in_specs=[vmem] * (1 + len(prepared)),
        out_specs=vmem,
    )(x, *prepared)
    return out.reshape(n, h, w, out_channels)


# ---------------------------------------------------------------------------
# Parameter init (deterministic, PyTorch-like uniform bounds)
# ---------------------------------------------------------------------------
def _init_conv(key, ksize, cin, cout):
    bound = 1.0 / math.sqrt(cin * ksize * ksize)
    kw_, kb_ = jax.random.split(key)
    w = jax.random.uniform(kw_, (ksize, ksize, cin, cout), jnp.float32,
                           -bound, bound)
    b = jax.random.uniform(kb_, (cout,), jnp.float32, -bound, bound)
    return w, b


def _init_double_conv(key, cin, cout):
    k1, k2 = jax.random.split(key)
    w1, b1 = _init_conv(k1, 3, cin, cout)
    w2, b2 = _init_conv(k2, 3, cout, cout)
    return {"w1": w1, "b1": b1, "w2": w2, "b2": b2}


def init_params(key, in_channels, out_channels, channels):
    params = {"encodes": [], "ups": [], "decs": []}
    cin = in_channels
    for ch in channels:
        key, sub = jax.random.split(key)
        params["encodes"].append(_init_double_conv(sub, cin, ch))
        cin = ch
    key, sub = jax.random.split(key)
    params["bottleneck"] = _init_double_conv(sub, channels[-1], channels[-1] * 2)
    for ch in channels[::-1]:
        key, k_up, k_dc = jax.random.split(key, 3)
        # NOTE: PyTorch ConvTranspose2d uses a different fan-in convention for
        # init; forward math is identical, only the random bound differs.
        uw, ub = _init_conv(k_up, 2, ch * 2, ch)         # (2, 2, Cin, Cout)
        params["ups"].append({"w": uw, "b": ub})
        params["decs"].append(_init_double_conv(k_dc, ch * 2, ch))
    key, sub = jax.random.split(key)
    fw, fb = _init_conv(sub, 1, channels[0], out_channels)
    params["final"] = {"w": fw[0, 0], "b": fb}           # (Cin, Cout)
    return params


# ---------------------------------------------------------------------------
# Pure-JAX reference (mirrors the kernel's bf16 MXU casts -> tight comparison)
# ---------------------------------------------------------------------------
def reference_forward(params, x):
    def conv3(x, w, b):
        y = jax.lax.conv_general_dilated(
            x.astype(CDT), w.astype(CDT), (1, 1), "SAME",
            dimension_numbers=("NHWC", "HWIO", "NHWC"),
            preferred_element_type=jnp.float32)
        return jnp.maximum(y + b, 0.0)

    def double_conv(x, p):
        return conv3(conv3(x, p["w1"], p["b1"]), p["w2"], p["b2"])

    def maxpool2(x):
        n, h, w, c = x.shape
        return jnp.max(x.reshape(n, h // 2, 2, w // 2, 2, c), axis=(2, 4))

    def deconv2(x, w, b):
        y = jnp.einsum("nhwc,ijcd->nhiwjd", x.astype(CDT), w.astype(CDT),
                       preferred_element_type=jnp.float32)
        n, h, _, wd, _, co = y.shape
        y = y.reshape(n, 2 * h, 2 * wd, co)
        y = y.astype(CDT).astype(jnp.float32)   # mirror kernel interleave rounding
        return y + b

    skips = []
    for enc in params["encodes"]:
        x = double_conv(x, enc)
        skips.append(x)
        x = maxpool2(x)
    x = double_conv(x, params["bottleneck"])
    for up_p, dc_p, skip in zip(params["ups"], params["decs"], skips[::-1]):
        x = deconv2(x, up_p["w"], up_p["b"])
        x = jnp.concatenate([skip, x], axis=-1)
        x = double_conv(x, dc_p)
    fw, fb = params["final"]["w"], params["final"]["b"]
    y = jnp.einsum("nhwc,cd->nhwd", x.astype(CDT), fw.astype(CDT),
                   preferred_element_type=jnp.float32)
    return y + fb


# ---------------------------------------------------------------------------
if __name__ == "__main__":
    key = jax.random.PRNGKey(0)
    k_x, k_p = jax.random.split(key)

    batch, in_channels, out_channels = 2, 4, 3
    channels = (8, 16)
    H = W = 16

    # NHWC input (PyTorch equivalent would be NCHW (2, 4, 16, 16)).
    x = jax.random.normal(k_x, (batch, H, W, in_channels), jnp.float32)
    params = init_params(k_p, in_channels, out_channels, channels)

    # One-time weight preprocessing, hoisted out of the jitted forward.
    prepared = prepare_inputs(params, batch, H, W)

    @jax.jit
    def apply_fn(prepared, x):
        return fused_forward(prepared, x, channels, out_channels)

    logits = jax.block_until_ready(apply_fn(prepared, x))

    assert logits.shape == (batch, H, W, out_channels), logits.shape
    assert bool(jnp.all(jnp.isfinite(logits)))

    ref = jax.jit(reference_forward)(params, x)
    max_err = float(jnp.max(jnp.abs(logits - ref)))
    assert max_err < 5e-2, f"max abs err vs reference: {max_err}"

    print("KERNEL_OK")
</pallas_src>

<mosaic_0001>
module attributes {stable_mosaic.version = 11 : i64} {
  func.func @kernel(%arg0: memref<32x64xf32, #tpu.memory_space<vmem>>, %arg1: memref<192x128xbf16, #tpu.memory_space<vmem>>, %arg2: memref<1x128xf32, #tpu.memory_space<vmem>>, %arg3: memref<384x128xbf16, #tpu.memory_space<vmem>>, %arg4: memref<1x128xf32, #tpu.memory_space<vmem>>, %arg5: memref<2x16x32xbf16, #tpu.memory_space<vmem>>, %arg6: memref<2x128x64xbf16, #tpu.memory_space<vmem>>, %arg7: memref<192x128xbf16, #tpu.memory_space<vmem>>, %arg8: memref<1x128xf32, #tpu.memory_space<vmem>>, %arg9: memref<384x128xbf16, #tpu.memory_space<vmem>>, %arg10: memref<1x128xf32, #tpu.memory_space<vmem>>, %arg11: memref<2x8x16xbf16, #tpu.memory_space<vmem>>, %arg12: memref<2x128x64xbf16, #tpu.memory_space<vmem>>, %arg13: memref<192x128xbf16, #tpu.memory_space<vmem>>, %arg14: memref<1x128xf32, #tpu.memory_space<vmem>>, %arg15: memref<384x128xbf16, #tpu.memory_space<vmem>>, %arg16: memref<1x128xf32, #tpu.memory_space<vmem>>, %arg17: memref<2x128x128xbf16, #tpu.memory_space<vmem>>, %arg18: memref<2x16x8xbf16, #tpu.memory_space<vmem>>, %arg19: memref<1x128xf32, #tpu.memory_space<vmem>>, %arg20: memref<384x128xbf16, #tpu.memory_space<vmem>>, %arg21: memref<384x128xbf16, #tpu.memory_space<vmem>>, %arg22: memref<1x128xf32, #tpu.memory_space<vmem>>, %arg23: memref<384x128xbf16, #tpu.memory_space<vmem>>, %arg24: memref<1x128xf32, #tpu.memory_space<vmem>>, %arg25: memref<2x128x128xbf16, #tpu.memory_space<vmem>>, %arg26: memref<2x32x16xbf16, #tpu.memory_space<vmem>>, %arg27: memref<1x128xf32, #tpu.memory_space<vmem>>, %arg28: memref<384x128xbf16, #tpu.memory_space<vmem>>, %arg29: memref<384x128xbf16, #tpu.memory_space<vmem>>, %arg30: memref<1x128xf32, #tpu.memory_space<vmem>>, %arg31: memref<384x128xbf16, #tpu.memory_space<vmem>>, %arg32: memref<1x128xf32, #tpu.memory_space<vmem>>, %arg33: memref<128x48xbf16, #tpu.memory_space<vmem>>, %arg34: memref<1x48xf32, #tpu.memory_space<vmem>>, %arg35: memref<32x48xf32, #tpu.memory_space<vmem>>) attributes {dimension_semantics = [], scalar_prefetch = 0 : i64, scratch_operands = 0 : i64, tpu.core_type = #tpu.core_type<tc>} {
    %c0 = arith.constant 0 : index
    %c0_0 = arith.constant 0 : index
    %0 = vector.load %arg0[%c0, %c0_0] : memref<32x64xf32, #tpu.memory_space<vmem>>, vector<32x64xf32>
    %cst = arith.constant 0.000000e+00 : f32
    %1 = vector.broadcast %cst : f32 to vector<1x64xf32>
    %2 = vector.extract_strided_slice %0 {offsets = [0, 0], sizes = [31, 64], strides = [1, 1]} : vector<32x64xf32> to vector<31x64xf32>
    %3 = tpu.concatenate %1, %2 in 0 : vector<1x64xf32>, vector<31x64xf32> -> vector<32x64xf32>
    %4 = vector.extract_strided_slice %0 {offsets = [1, 0], sizes = [31, 64], strides = [1, 1]} : vector<32x64xf32> to vector<31x64xf32>
    %5 = tpu.concatenate %4, %1 in 0 : vector<31x64xf32>, vector<1x64xf32> -> vector<32x64xf32>
    %6 = tpu.iota {dimensions = array<i32: 0>} : vector<32x1xi32>
    %c16_i32 = arith.constant 16 : i32
    %c0_i32 = arith.constant 0 : i32
    %7 = arith.cmpi eq, %c16_i32, %c0_i32 : i32
    %c1_i32 = arith.constant 1 : i32
    %8 = arith.select %7, %c1_i32, %c16_i32 : i32
    %9 = vector.broadcast %8 : i32 to vector<32x1xi32>
    %10 = arith.remsi %6, %9 : vector<32x1xi32>
    %c0_i32_1 = arith.constant 0 : i32
    %11 = vector.broadcast %c0_i32_1 : i32 to vector<32x1xi32>
    %12 = arith.cmpi ne, %10, %11 : vector<32x1xi32>
    %c0_i32_2 = arith.constant 0 : i32
    %13 = vector.broadcast %c0_i32_2 : i32 to vector<32x1xi32>
    %14 = arith.cmpi slt, %10, %13 : vector<32x1xi32>
    %c0_i32_3 = arith.constant 0 : i32
    %15 = arith.cmpi slt, %8, %c0_i32_3 : i32
    %16 = vector.broadcast %15 : i1 to vector<32x1xi1>
    %17 = vector.broadcast %16 : vector<32x1xi1> to vector<32x1xi1>
    %18 = arith.xori %14, %17 : vector<32x1xi1>
    %19 = arith.andi %18, %12 : vector<32x1xi1>
    %20 = vector.broadcast %8 : i32 to vector<32x1xi32>
    %21 = arith.addi %10, %20 : vector<32x1xi32>
    %22 = arith.select %19, %21, %10 : vector<32x1xi1>, vector<32x1xi32>
    %c0_i32_4 = arith.constant 0 : i32
    %23 = vector.broadcast %c0_i32_4 : i32 to vector<32x1xi32>
    %24 = arith.cmpi eq, %22, %23 : vector<32x1xi32>
    %cst_5 = arith.constant 0.000000e+00 : f32
    %25 = vector.shape_cast %24 : vector<32x1xi1> to vector<32x1xi1>
    %26 = vector.broadcast %25 : vector<32x1xi1> to vector<32x64xi1>
    %27 = vector.broadcast %cst_5 : f32 to vector<32x64xf32>
    %28 = arith.select %26, %27, %3 : vector<32x64xi1>, vector<32x64xf32>
    %c15_i32 = arith.constant 15 : i32
    %29 = vector.broadcast %c15_i32 : i32 to vector<32x1xi32>
    %30 = arith.cmpi eq, %22, %29 : vector<32x1xi32>
    %cst_6 = arith.constant 0.000000e+00 : f32
    %31 = vector.shape_cast %30 : vector<32x1xi1> to vector<32x1xi1>
    %32 = vector.broadcast %31 : vector<32x1xi1> to vector<32x64xi1>
    %33 = vector.broadcast %cst_6 : f32 to vector<32x64xf32>
    %34 = arith.select %32, %33, %5 : vector<32x64xi1>, vector<32x64xf32>
    %35 = tpu.concatenate %28, %0, %34 in 1 : vector<32x64xf32>, vector<32x64xf32>, vector<32x64xf32> -> vector<32x192xf32>
    %36 = arith.truncf %35 : vector<32x192xf32> to vector<32x192xbf16>
    %c0_7 = arith.constant 0 : index
    %c0_8 = arith.constant 0 : index
    %37 = vector.load %arg1[%c0_7, %c0_8] : memref<192x128xbf16, #tpu.memory_space<vmem>>, vector<192x128xbf16>
    %cst_9 = arith.constant dense<0.000000e+00> : vector<32x128xf32>
    %38 = tpu.matmul %36, %37, %cst_9 {dimension_numbers = #tpu.dot_dimension_numbers<[1], [0], [0], [1], [0, 0, 1, 1], [], []>} : vector<32x192xbf16>, vector<192x128xbf16>, vector<32x128xf32> -> vector<32x128xf32>
    %c0_10 = arith.constant 0 : index
    %c0_11 = arith.constant 0 : index
    %39 = vector.load %arg2[%c0_10, %c0_11] : memref<1x128xf32, #tpu.memory_space<vmem>>, vector<1x128xf32>
    %40 = vector.broadcast %39 : vector<1x128xf32> to vector<32x128xf32>
    %41 = arith.addf %38, %40 : vector<32x128xf32>
    %cst_12 = arith.constant 0.000000e+00 : f32
    %42 = vector.broadcast %cst_12 : f32 to vector<32x128xf32>
    %43 = arith.maximumf %41, %42 : vector<32x128xf32>
    %cst_13 = arith.constant 0.000000e+00 : f32
    %44 = vector.broadcast %cst_13 : f32 to vector<1x128xf32>
    %45 = vector.extract_strided_slice %43 {offsets = [0, 0], sizes = [31, 128], strides = [1, 1]} : vector<32x128xf32> to vector<31x128xf32>
    %46 = tpu.concatenate %44, %45 in 0 : vector<1x128xf32>, vector<31x128xf32> -> vector<32x128xf32>
    %47 = vector.extract_strided_slice %43 {offsets = [1, 0], sizes = [31, 128], strides = [1, 1]} : vector<32x128xf32> to vector<31x128xf32>
    %48 = tpu.concatenate %47, %44 in 0 : vector<31x128xf32>, vector<1x128xf32> -> vector<32x128xf32>
    %49 = tpu.iota {dimensions = array<i32: 0>} : vector<32x1xi32>
    %c16_i32_14 = arith.constant 16 : i32
    %c0_i32_15 = arith.constant 0 : i32
    %50 = arith.cmpi eq, %c16_i32_14, %c0_i32_15 : i32
    %c1_i32_16 = arith.constant 1 : i32
    %51 = arith.select %50, %c1_i32_16, %c16_i32_14 : i32
    %52 = vector.broadcast %51 : i32 to vector<32x1xi32>
    %53 = arith.remsi %49, %52 : vector<32x1xi32>
    %c0_i32_17 = arith.constant 0 : i32
    %54 = vector.broadcast %c0_i32_17 : i32 to vector<32x1xi32>
    %55 = arith.cmpi ne, %53, %54 : vector<32x1xi32>
    %c0_i32_18 = arith.constant 0 : i32
    %56 = vector.broadcast %c0_i32_18 : i32 to vector<32x1xi32>
    %57 = arith.cmpi slt, %53, %56 : vector<32x1xi32>
    %c0_i32_19 = arith.constant 0 : i32
    %58 = arith.cmpi slt, %51, %c0_i32_19 : i32
    %59 = vector.broadcast %58 : i1 to vector<32x1xi1>
    %60 = vector.broadcast %59 : vector<32x1xi1> to vector<32x1xi1>
    %61 = arith.xori %57, %60 : vector<32x1xi1>
    %62 = arith.andi %61, %55 : vector<32x1xi1>
    %63 = vector.broadcast %51 : i32 to vector<32x1xi32>
    %64 = arith.addi %53, %63 : vector<32x1xi32>
    %65 = arith.select %62, %64, %53 : vector<32x1xi1>, vector<32x1xi32>
    %c0_i32_20 = arith.constant 0 : i32
    %66 = vector.broadcast %c0_i32_20 : i32 to vector<32x1xi32>
    %67 = arith.cmpi eq, %65, %66 : vector<32x1xi32>
    %cst_21 = arith.constant 0.000000e+00 : f32
    %68 = vector.shape_cast %67 : vector<32x1xi1> to vector<32x1xi1>
    %69 = vector.broadcast %68 : vector<32x1xi1> to vector<32x128xi1>
    %70 = vector.broadcast %cst_21 : f32 to vector<32x128xf32>
    %71 = arith.select %69, %70, %46 : vector<32x128xi1>, vector<32x128xf32>
    %c15_i32_22 = arith.constant 15 : i32
    %72 = vector.broadcast %c15_i32_22 : i32 to vector<32x1xi32>
    %73 = arith.cmpi eq, %65, %72 : vector<32x1xi32>
    %cst_23 = arith.constant 0.000000e+00 : f32
    %74 = vector.shape_cast %73 : vector<32x1xi1> to vector<32x1xi1>
    %75 = vector.broadcast %74 : vector<32x1xi1> to vector<32x128xi1>
    %76 = vector.broadcast %cst_23 : f32 to vector<32x128xf32>
    %77 = arith.select %75, %76, %48 : vector<32x128xi1>, vector<32x128xf32>
    %78 = tpu.concatenate %71, %43, %77 in 1 : vector<32x128xf32>, vector<32x128xf32>, vector<32x128xf32> -> vector<32x384xf32>
    %79 = arith.truncf %78 : vector<32x384xf32> to vector<32x384xbf16>
    %c0_24 = arith.constant 0 : index
    %c0_25 = arith.constant 0 : index
    %80 = vector.load %arg3[%c0_24, %c0_25] : memref<384x128xbf16, #tpu.memory_space<vmem>>, vector<384x128xbf16>
    %cst_26 = arith.constant dense<0.000000e+00> : vector<32x128xf32>
    %81 = tpu.matmul %79, %80, %cst_26 {dimension_numbers = #tpu.dot_dimension_numbers<[1], [0], [0], [1], [0, 0, 1, 1], [], []>} : vector<32x384xbf16>, vector<384x128xbf16>, vector<32x128xf32> -> vector<32x128xf32>
    %c0_27 = arith.constant 0 : index
    %c0_28 = arith.constant 0 : index
    %82 = vector.load %arg4[%c0_27, %c0_28] : memref<1x128xf32, #tpu.memory_space<vmem>>, vector<1x128xf32>
    %83 = vector.broadcast %82 : vector<1x128xf32> to vector<32x128xf32>
    %84 = arith.addf %81, %83 : vector<32x128xf32>
    %cst_29 = arith.constant 0.000000e+00 : f32
    %85 = vector.broadcast %cst_29 : f32 to vector<32x128xf32>
    %86 = arith.maximumf %84, %85 : vector<32x128xf32>
    %87 = arith.truncf %86 : vector<32x128xf32> to vector<32x128xbf16>
    %c0_30 = arith.constant 0 : index
    %c0_31 = arith.constant 0 : index
    %c0_32 = arith.constant 0 : index
    %88 = vector.load %arg5[%c0_30, %c0_31, %c0_32] : memref<2x16x32xbf16, #tpu.memory_space<vmem>>, vector<1x16x32xbf16>
    %89 = vector.shape_cast %88 : vector<1x16x32xbf16> to vector<16x32xbf16>
    %cst_33 = arith.constant dense<0.000000e+00> : vector<16x128xf32>
    %90 = tpu.matmul %89, %87, %cst_33 {dimension_numbers = #tpu.dot_dimension_numbers<[1], [0], [0], [1], [0, 0, 1, 1], [], []>} : vector<16x32xbf16>, vector<32x128xbf16>, vector<16x128xf32> -> vector<16x128xf32>
    %c1 = arith.constant 1 : index
    %c0_34 = arith.constant 0 : index
    %c0_35 = arith.constant 0 : index
    %91 = vector.load %arg5[%c1, %c0_34, %c0_35] : memref<2x16x32xbf16, #tpu.memory_space<vmem>>, vector<1x16x32xbf16>
    %92 = vector.shape_cast %91 : vector<1x16x32xbf16> to vector<16x32xbf16>
    %cst_36 = arith.constant dense<0.000000e+00> : vector<16x128xf32>
    %93 = tpu.matmul %92, %87, %cst_36 {dimension_numbers = #tpu.dot_dimension_numbers<[1], [0], [0], [1], [0, 0, 1, 1], [], []>} : vector<16x32xbf16>, vector<32x128xbf16>, vector<16x128xf32> -> vector<16x128xf32>
    %94 = arith.maximumf %90, %93 : vector<16x128xf32>
    %95 = arith.truncf %94 : vector<16x128xf32> to vector<16x128xbf16>
    %c0_37 = arith.constant 0 : index
    %c0_38 = arith.constant 0 : index
    %c0_39 = arith.constant 0 : index
    %96 = vector.load %arg6[%c0_37, %c0_38, %c0_39] : memref<2x128x64xbf16, #tpu.memory_space<vmem>>, vector<1x128x64xbf16>
    %97 = vector.shape_cast %96 : vector<1x128x64xbf16> to vector<128x64xbf16>
    %cst_40 = arith.constant dense<0.000000e+00> : vector<16x64xf32>
    %98 = tpu.matmul %95, %97, %cst_40 {dimension_numbers = #tpu.dot_dimension_numbers<[1], [0], [0], [1], [0, 0, 1, 1], [], []>} : vector<16x128xbf16>, vector<128x64xbf16>, vector<16x64xf32> -> vector<16x64xf32>
    %c1_41 = arith.constant 1 : index
    %c0_42 = arith.constant 0 : index
    %c0_43 = arith.constant 0 : index
    %99 = vector.load %arg6[%c1_41, %c0_42, %c0_43] : memref<2x128x64xbf16, #tpu.memory_space<vmem>>, vector<1x128x64xbf16>
    %100 = vector.shape_cast %99 : vector<1x128x64xbf16> to vector<128x64xbf16>
    %cst_44 = arith.constant dense<0.000000e+00> : vector<16x64xf32>
    %101 = tpu.matmul %95, %100, %cst_44 {dimension_numbers = #tpu.dot_dimension_numbers<[1], [0], [0], [1], [0, 0, 1, 1], [], []>} : vector<16x128xbf16>, vector<128x64xbf16>, vector<16x64xf32> -> vector<16x64xf32>
    %102 = arith.maximumf %98, %101 : vector<16x64xf32>
    %cst_45 = arith.constant 0.000000e+00 : f32
    %103 = vector.broadcast %cst_45 : f32 to vector<1x64xf32>
    %104 = vector.extract_strided_slice %102 {offsets = [0, 0], sizes = [15, 64], strides = [1, 1]} : vector<16x64xf32> to vector<15x64xf32>
    %105 = tpu.concatenate %103, %104 in 0 : vector<1x64xf32>, vector<15x64xf32> -> vector<16x64xf32>
    %106 = vector.extract_strided_slice %102 {offsets = [1, 0], sizes = [15, 64], strides = [1, 1]} : vector<16x64xf32> to vector<15x64xf32>
    %107 = tpu.concatenate %106, %103 in 0 : vector<15x64xf32>, vector<1x64xf32> -> vector<16x64xf32>
    %108 = tpu.iota {dimensions = array<i32: 0>} : vector<16x1xi32>
    %c8_i32 = arith.constant 8 : i32
    %c0_i32_46 = arith.constant 0 : i32
    %109 = arith.cmpi eq, %c8_i32, %c0_i32_46 : i32
    %c1_i32_47 = arith.constant 1 : i32
    %110 = arith.select %109, %c1_i32_47, %c8_i32 : i32
    %111 = vector.broadcast %110 : i32 to vector<16x1xi32>
    %112 = arith.remsi %108, %111 : vector<16x1xi32>
    %c0_i32_48 = arith.constant 0 : i32
    %113 = vector.broadcast %c0_i32_48 : i32 to vector<16x1xi32>
    %114 = arith.cmpi ne, %112, %113 : vector<16x1xi32>
    %c0_i32_49 = arith.constant 0 : i32
    %115 = vector.broadcast %c0_i32_49 : i32 to vector<16x1xi32>
    %116 = arith.cmpi slt, %112, %115 : vector<16x1xi32>
    %c0_i32_50 = arith.constant 0 : i32
    %117 = arith.cmpi slt, %110, %c0_i32_50 : i32
    %118 = vector.broadcast %117 : i1 to vector<16x1xi1>
    %119 = vector.broadcast %118 : vector<16x1xi1> to vector<16x1xi1>
    %120 = arith.xori %116, %119 : vector<16x1xi1>
    %121 = arith.andi %120, %114 : vector<16x1xi1>
    %122 = vector.broadcast %110 : i32 to vector<16x1xi32>
    %123 = arith.addi %112, %122 : vector<16x1xi32>
    %124 = arith.select %121, %123, %112 : vector<16x1xi1>, vector<16x1xi32>
    %c0_i32_51 = arith.constant 0 : i32
    %125 = vector.broadcast %c0_i32_51 : i32 to vector<16x1xi32>
    %126 = arith.cmpi eq, %124, %125 : vector<16x1xi32>
    %cst_52 = arith.constant 0.000000e+00 : f32
    %127 = vector.shape_cast %126 : vector<16x1xi1> to vector<16x1xi1>
    %128 = vector.broadcast %127 : vector<16x1xi1> to vector<16x64xi1>
    %129 = vector.broadcast %cst_52 : f32 to vector<16x64xf32>
    %130 = arith.select %128, %129, %105 : vector<16x64xi1>, vector<16x64xf32>
    %c7_i32 = arith.constant 7 : i32
    %131 = vector.broadcast %c7_i32 : i32 to vector<16x1xi32>
    %132 = arith.cmpi eq, %124, %131 : vector<16x1xi32>
    %cst_53 = arith.constant 0.000000e+00 : f32
    %133 = vector.shape_cast %132 : vector<16x1xi1> to vector<16x1xi1>
    %134 = vector.broadcast %133 : vector<16x1xi1> to vector<16x64xi1>
    %135 = vector.broadcast %cst_53 : f32 to vector<16x64xf32>
    %136 = arith.select %134, %135, %107 : vector<16x64xi1>, vector<16x64xf32>
    %137 = tpu.concatenate %130, %102, %136 in 1 : vector<16x64xf32>, vector<16x64xf32>, vector<16x64xf32> -> vector<16x192xf32>
    %138 = arith.truncf %137 : vector<16x192xf32> to vector<16x192xbf16>
    %c0_54 = arith.constant 0 : index
    %c0_55 = arith.constant 0 : index
    %139 = vector.load %arg7[%c0_54, %c0_55] : memref<192x128xbf16, #tpu.memory_space<vmem>>, vector<192x128xbf16>
    %cst_56 = arith.constant dense<0.000000e+00> : vector<16x128xf32>
    %140 = tpu.matmul %138, %139, %cst_56 {dimension_numbers = #tpu.dot_dimension_numbers<[1], [0], [0], [1], [0, 0, 1, 1], [], []>} : vector<16x192xbf16>, vector<192x128xbf16>, vector<16x128xf32> -> vector<16x128xf32>
    %c0_57 = arith.constant 0 : index
    %c0_58 = arith.constant 0 : index
    %141 = vector.load %arg8[%c0_57, %c0_58] : memref<1x128xf32, #tpu.memory_space<vmem>>, vector<1x128xf32>
    %142 = vector.broadcast %141 : vector<1x128xf32> to vector<16x128xf32>
    %143 = arith.addf %140, %142 : vector<16x128xf32>
    %cst_59 = arith.constant 0.000000e+00 : f32
    %144 = vector.broadcast %cst_59 : f32 to vector<16x128xf32>
    %145 = arith.maximumf %143, %144 : vector<16x128xf32>
    %cst_60 = arith.constant 0.000000e+00 : f32
    %146 = vector.broadcast %cst_60 : f32 to vector<1x128xf32>
    %147 = vector.extract_strided_slice %145 {offsets = [0, 0], sizes = [15, 128], strides = [1, 1]} : vector<16x128xf32> to vector<15x128xf32>
    %148 = tpu.concatenate %146, %147 in 0 : vector<1x128xf32>, vector<15x128xf32> -> vector<16x128xf32>
    %149 = vector.extract_strided_slice %145 {offsets = [1, 0], sizes = [15, 128], strides = [1, 1]} : vector<16x128xf32> to vector<15x128xf32>
    %150 = tpu.concatenate %149, %146 in 0 : vector<15x128xf32>, vector<1x128xf32> -> vector<16x128xf32>
    %151 = tpu.iota {dimensions = array<i32: 0>} : vector<16x1xi32>
    %c8_i32_61 = arith.constant 8 : i32
    %c0_i32_62 = arith.constant 0 : i32
    %152 = arith.cmpi eq, %c8_i32_61, %c0_i32_62 : i32
    %c1_i32_63 = arith.constant 1 : i32
    %153 = arith.select %152, %c1_i32_63, %c8_i32_61 : i32
    %154 = vector.broadcast %153 : i32 to vector<16x1xi32>
    %155 = arith.remsi %151, %154 : vector<16x1xi32>
    %c0_i32_64 = arith.constant 0 : i32
    %156 = vector.broadcast %c0_i32_64 : i32 to vector<16x1xi32>
    %157 = arith.cmpi ne, %155, %156 : vector<16x1xi32>
    %c0_i32_65 = arith.constant 0 : i32
    %158 = vector.broadcast %c0_i32_65 : i32 to vector<16x1xi32>
    %159 = arith.cmpi slt, %155, %158 : vector<16x1xi32>
    %c0_i32_66 = arith.constant 0 : i32
    %160 = arith.cmpi slt, %153, %c0_i32_66 : i32
    %161 = vector.broadcast %160 : i1 to vector<16x1xi1>
    %162 = vector.broadcast %161 : vector<16x1xi1> to vector<16x1xi1>
    %163 = arith.xori %159, %162 : vector<16x1xi1>
    %164 = arith.andi %163, %157 : vector<16x1xi1>
    %165 = vector.broadcast %153 : i32 to vector<16x1xi32>
    %166 = arith.addi %155, %165 : vector<16x1xi32>
    %167 = arith.select %164, %166, %155 : vector<16x1xi1>, vector<16x1xi32>
    %c0_i32_67 = arith.constant 0 : i32
    %168 = vector.broadcast %c0_i32_67 : i32 to vector<16x1xi32>
    %169 = arith.cmpi eq, %167, %168 : vector<16x1xi32>
    %cst_68 = arith.constant 0.000000e+00 : f32
    %170 = vector.shape_cast %169 : vector<16x1xi1> to vector<16x1xi1>
    %171 = vector.broadcast %170 : vector<16x1xi1> to vector<16x128xi1>
    %172 = vector.broadcast %cst_68 : f32 to vector<16x128xf32>
    %173 = arith.select %171, %172, %148 : vector<16x128xi1>, vector<16x128xf32>
    %c7_i32_69 = arith.constant 7 : i32
    %174 = vector.broadcast %c7_i32_69 : i32 to vector<16x1xi32>
    %175 = arith.cmpi eq, %167, %174 : vector<16x1xi32>
    %cst_70 = arith.constant 0.000000e+00 : f32
    %176 = vector.shape_cast %175 : vector<16x1xi1> to vector<16x1xi1>
    %177 = vector.broadcast %176 : vector<16x1xi1> to vector<16x128xi1>
    %178 = vector.broadcast %cst_70 : f32 to vector<16x128xf32>
    %179 = arith.select %177, %178, %150 : vector<16x128xi1>, vector<16x128xf32>
    %180 = tpu.concatenate %173, %145, %179 in 1 : vector<16x128xf32>, vector<16x128xf32>, vector<16x128xf32> -> vector<16x384xf32>
    %181 = arith.truncf %180 : vector<16x384xf32> to vector<16x384xbf16>
    %c0_71 = arith.constant 0 : index
    %c0_72 = arith.constant 0 : index
    %182 = vector.load %arg9[%c0_71, %c0_72] : memref<384x128xbf16, #tpu.memory_space<vmem>>, vector<384x128xbf16>
    %cst_73 = arith.constant dense<0.000000e+00> : vector<16x128xf32>
    %183 = tpu.matmul %181, %182, %cst_73 {dimension_numbers = #tpu.dot_dimension_numbers<[1], [0], [0], [1], [0, 0, 1, 1], [], []>} : vector<16x384xbf16>, vector<384x128xbf16>, vector<16x128xf32> -> vector<16x128xf32>
    %c0_74 = arith.constant 0 : index
    %c0_75 = arith.constant 0 : index
    %184 = vector.load %arg10[%c0_74, %c0_75] : memref<1x128xf32, #tpu.memory_space<vmem>>, vector<1x128xf32>
    %185 = vector.broadcast %184 : vector<1x128xf32> to vector<16x128xf32>
    %186 = arith.addf %183, %185 : vector<16x128xf32>
    %cst_76 = arith.constant 0.000000e+00 : f32
    %187 = vector.broadcast %cst_76 : f32 to vector<16x128xf32>
    %188 = arith.maximumf %186, %187 : vector<16x128xf32>
    %189 = arith.truncf %188 : vector<16x128xf32> to vector<16x128xbf16>
    %c0_77 = arith.constant 0 : index
    %c0_78 = arith.constant 0 : index
    %c0_79 = arith.constant 0 : index
    %190 = vector.load %arg11[%c0_77, %c0_78, %c0_79] : memref<2x8x16xbf16, #tpu.memory_space<vmem>>, vector<1x8x16xbf16>
    %191 = vector.shape_cast %190 : vector<1x8x16xbf16> to vector<8x16xbf16>
    %cst_80 = arith.constant dense<0.000000e+00> : vector<8x128xf32>
    %192 = tpu.matmul %191, %189, %cst_80 {dimension_numbers = #tpu.dot_dimension_numbers<[1], [0], [0], [1], [0, 0, 1, 1], [], []>} : vector<8x16xbf16>, vector<16x128xbf16>, vector<8x128xf32> -> vector<8x128xf32>
    %c1_81 = arith.constant 1 : index
    %c0_82 = arith.constant 0 : index
    %c0_83 = arith.constant 0 : index
    %193 = vector.load %arg11[%c1_81, %c0_82, %c0_83] : memref<2x8x16xbf16, #tpu.memory_space<vmem>>, vector<1x8x16xbf16>
    %194 = vector.shape_cast %193 : vector<1x8x16xbf16> to vector<8x16xbf16>
    %cst_84 = arith.constant dense<0.000000e+00> : vector<8x128xf32>
    %195 = tpu.matmul %194, %189, %cst_84 {dimension_numbers = #tpu.dot_dimension_numbers<[1], [0], [0], [1], [0, 0, 1, 1], [], []>} : vector<8x16xbf16>, vector<16x128xbf16>, vector<8x128xf32> -> vector<8x128xf32>
    %196 = arith.maximumf %192, %195 : vector<8x128xf32>
    %197 = arith.truncf %196 : vector<8x128xf32> to vector<8x128xbf16>
    %c0_85 = arith.constant 0 : index
    %c0_86 = arith.constant 0 : index
    %c0_87 = arith.constant 0 : index
    %198 = vector.load %arg12[%c0_85, %c0_86, %c0_87] : memref<2x128x64xbf16, #tpu.memory_space<vmem>>, vector<1x128x64xbf16>
    %199 = vector.shape_cast %198 : vector<1x128x64xbf16> to vector<128x64xbf16>
    %cst_88 = arith.constant dense<0.000000e+00> : vector<8x64xf32>
    %200 = tpu.matmul %197, %199, %cst_88 {dimension_numbers = #tpu.dot_dimension_numbers<[1], [0], [0], [1], [0, 0, 1, 1], [], []>} : vector<8x128xbf16>, vector<128x64xbf16>, vector<8x64xf32> -> vector<8x64xf32>
    %c1_89 = arith.constant 1 : index
    %c0_90 = arith.constant 0 : index
    %c0_91 = arith.constant 0 : index
    %201 = vector.load %arg12[%c1_89, %c0_90, %c0_91] : memref<2x128x64xbf16, #tpu.memory_space<vmem>>, vector<1x128x64xbf16>
    %202 = vector.shape_cast %201 : vector<1x128x64xbf16> to vector<128x64xbf16>
    %cst_92 = arith.constant dense<0.000000e+00> : vector<8x64xf32>
    %203 = tpu.matmul %197, %202, %cst_92 {dimension_numbers = #tpu.dot_dimension_numbers<[1], [0], [0], [1], [0, 0, 1, 1], [], []>} : vector<8x128xbf16>, vector<128x64xbf16>, vector<8x64xf32> -> vector<8x64xf32>
    %204 = arith.maximumf %200, %203 : vector<8x64xf32>
    %cst_93 = arith.constant 0.000000e+00 : f32
    %205 = vector.broadcast %cst_93 : f32 to vector<1x64xf32>
    %206 = vector.extract_strided_slice %204 {offsets = [0, 0], sizes = [7, 64], strides = [1, 1]} : vector<8x64xf32> to vector<7x64xf32>
    %207 = tpu.concatenate %205, %206 in 0 : vector<1x64xf32>, vector<7x64xf32> -> vector<8x64xf32>
    %208 = vector.extract_strided_slice %204 {offsets = [1, 0], sizes = [7, 64], strides = [1, 1]} : vector<8x64xf32> to vector<7x64xf32>
    %209 = tpu.concatenate %208, %205 in 0 : vector<7x64xf32>, vector<1x64xf32> -> vector<8x64xf32>
    %210 = tpu.iota {dimensions = array<i32: 0>} : vector<8x1xi32>
    %c4_i32 = arith.constant 4 : i32
    %c0_i32_94 = arith.constant 0 : i32
    %211 = arith.cmpi eq, %c4_i32, %c0_i32_94 : i32
    %c1_i32_95 = arith.constant 1 : i32
    %212 = arith.select %211, %c1_i32_95, %c4_i32 : i32
    %213 = vector.broadcast %212 : i32 to vector<8x1xi32>
    %214 = arith.remsi %210, %213 : vector<8x1xi32>
    %c0_i32_96 = arith.constant 0 : i32
    %215 = vector.broadcast %c0_i32_96 : i32 to vector<8x1xi32>
    %216 = arith.cmpi ne, %214, %215 : vector<8x1xi32>
    %c0_i32_97 = arith.constant 0 : i32
    %217 = vector.broadcast %c0_i32_97 : i32 to vector<8x1xi32>
    %218 = arith.cmpi slt, %214, %217 : vector<8x1xi32>
    %c0_i32_98 = arith.constant 0 : i32
    %219 = arith.cmpi slt, %212, %c0_i32_98 : i32
    %220 = vector.broadcast %219 : i1 to vector<8x1xi1>
    %221 = vector.broadcast %220 : vector<8x1xi1> to vector<8x1xi1>
    %222 = arith.xori %218, %221 : vector<8x1xi1>
    %223 = arith.andi %222, %216 : vector<8x1xi1>
    %224 = vector.broadcast %212 : i32 to vector<8x1xi32>
    %225 = arith.addi %214, %224 : vector<8x1xi32>
    %226 = arith.select %223, %225, %214 : vector<8x1xi1>, vector<8x1xi32>
    %c0_i32_99 = arith.constant 0 : i32
    %227 = vector.broadcast %c0_i32_99 : i32 to vector<8x1xi32>
    %228 = arith.cmpi eq, %226, %227 : vector<8x1xi32>
    %cst_100 = arith.constant 0.000000e+00 : f32
    %229 = vector.shape_cast %228 : vector<8x1xi1> to vector<8x1xi1>
    %230 = vector.broadcast %229 : vector<8x1xi1> to vector<8x64xi1>
    %231 = vector.broadcast %cst_100 : f32 to vector<8x64xf32>
    %232 = arith.select %230, %231, %207 : vector<8x64xi1>, vector<8x64xf32>
    %c3_i32 = arith.constant 3 : i32
    %233 = vector.broadcast %c3_i32 : i32 to vector<8x1xi32>
    %234 = arith.cmpi eq, %226, %233 : vector<8x1xi32>
    %cst_101 = arith.constant 0.000000e+00 : f32
    %235 = vector.shape_cast %234 : vector<8x1xi1> to vector<8x1xi1>
    %236 = vector.broadcast %235 : vector<8x1xi1> to vector<8x64xi1>
    %237 = vector.broadcast %cst_101 : f32 to vector<8x64xf32>
    %238 = arith.select %236, %237, %209 : vector<8x64xi1>, vector<8x64xf32>
    %239 = tpu.concatenate %232, %204, %238 in 1 : vector<8x64xf32>, vector<8x64xf32>, vector<8x64xf32> -> vector<8x192xf32>
    %240 = arith.truncf %239 : vector<8x192xf32> to vector<8x192xbf16>
    %c0_102 = arith.constant 0 : index
    %c0_103 = arith.constant 0 : index
    %241 = vector.load %arg13[%c0_102, %c0_103] : memref<192x128xbf16, #tpu.memory_space<vmem>>, vector<192x128xbf16>
    %cst_104 = arith.constant dense<0.000000e+00> : vector<8x128xf32>
    %242 = tpu.matmul %240, %241, %cst_104 {dimension_numbers = #tpu.dot_dimension_numbers<[1], [0], [0], [1], [0, 0, 1, 1], [], []>} : vector<8x192xbf16>, vector<192x128xbf16>, vector<8x128xf32> -> vector<8x128xf32>
    %c0_105 = arith.constant 0 : index
    %c0_106 = arith.constant 0 : index
    %243 = vector.load %arg14[%c0_105, %c0_106] : memref<1x128xf32, #tpu.memory_space<vmem>>, vector<1x128xf32>
    %244 = vector.broadcast %243 : vector<1x128xf32> to vector<8x128xf32>
    %245 = arith.addf %242, %244 : vector<8x128xf32>
    %cst_107 = arith.constant 0.000000e+00 : f32
    %246 = vector.broadcast %cst_107 : f32 to vector<8x128xf32>
    %247 = arith.maximumf %245, %246 : vector<8x128xf32>
    %cst_108 = arith.constant 0.000000e+00 : f32
    %248 = vector.broadcast %cst_108 : f32 to vector<1x128xf32>
    %249 = vector.extract_strided_slice %247 {offsets = [0, 0], sizes = [7, 128], strides = [1, 1]} : vector<8x128xf32> to vector<7x128xf32>
    %250 = tpu.concatenate %248, %249 in 0 : vector<1x128xf32>, vector<7x128xf32> -> vector<8x128xf32>
    %251 = vector.extract_strided_slice %247 {offsets = [1, 0], sizes = [7, 128], strides = [1, 1]} : vector<8x128xf32> to vector<7x128xf32>
    %252 = tpu.concatenate %251, %248 in 0 : vector<7x128xf32>, vector<1x128xf32> -> vector<8x128xf32>
    %253 = tpu.iota {dimensions = array<i32: 0>} : vector<8x1xi32>
    %c4_i32_109 = arith.constant 4 : i32
    %c0_i32_110 = arith.constant 0 : i32
    %254 = arith.cmpi eq, %c4_i32_109, %c0_i32_110 : i32
    %c1_i32_111 = arith.constant 1 : i32
    %255 = arith.select %254, %c1_i32_111, %c4_i32_109 : i32
    %256 = vector.broadcast %255 : i32 to vector<8x1xi32>
    %257 = arith.remsi %253, %256 : vector<8x1xi32>
    %c0_i32_112 = arith.constant 0 : i32
    %258 = vector.broadcast %c0_i32_112 : i32 to vector<8x1xi32>
    %259 = arith.cmpi ne, %257, %258 : vector<8x1xi32>
    %c0_i32_113 = arith.constant 0 : i32
    %260 = vector.broadcast %c0_i32_113 : i32 to vector<8x1xi32>
    %261 = arith.cmpi slt, %257, %260 : vector<8x1xi32>
    %c0_i32_114 = arith.constant 0 : i32
    %262 = arith.cmpi slt, %255, %c0_i32_114 : i32
    %263 = vector.broadcast %262 : i1 to vector<8x1xi1>
    %264 = vector.broadcast %263 : vector<8x1xi1> to vector<8x1xi1>
    %265 = arith.xori %261, %264 : vector<8x1xi1>
    %266 = arith.andi %265, %259 : vector<8x1xi1>
    %267 = vector.broadcast %255 : i32 to vector<8x1xi32>
    %268 = arith.addi %257, %267 : vector<8x1xi32>
    %269 = arith.select %266, %268, %257 : vector<8x1xi1>, vector<8x1xi32>
    %c0_i32_115 = arith.constant 0 : i32
    %270 = vector.broadcast %c0_i32_115 : i32 to vector<8x1xi32>
    %271 = arith.cmpi eq, %269, %270 : vector<8x1xi32>
    %cst_116 = arith.constant 0.000000e+00 : f32
    %272 = vector.shape_cast %271 : vector<8x1xi1> to vector<8x1xi1>
    %273 = vector.broadcast %272 : vector<8x1xi1> to vector<8x128xi1>
    %274 = vector.broadcast %cst_116 : f32 to vector<8x128xf32>
    %275 = arith.select %273, %274, %250 : vector<8x128xi1>, vector<8x128xf32>
    %c3_i32_117 = arith.constant 3 : i32
    %276 = vector.broadcast %c3_i32_117 : i32 to vector<8x1xi32>
    %277 = arith.cmpi eq, %269, %276 : vector<8x1xi32>
    %cst_118 = arith.constant 0.000000e+00 : f32
    %278 = vector.shape_cast %277 : vector<8x1xi1> to vector<8x1xi1>
    %279 = vector.broadcast %278 : vector<8x1xi1> to vector<8x128xi1>
    %280 = vector.broadcast %cst_118 : f32 to vector<8x128xf32>
    %281 = arith.select %279, %280, %252 : vector<8x128xi1>, vector<8x128xf32>
    %282 = tpu.concatenate %275, %247, %281 in 1 : vector<8x128xf32>, vector<8x128xf32>, vector<8x128xf32> -> vector<8x384xf32>
    %283 = arith.truncf %282 : vector<8x384xf32> to vector<8x384xbf16>
    %c0_119 = arith.constant 0 : index
    %c0_120 = arith.constant 0 : index
    %284 = vector.load %arg15[%c0_119, %c0_120] : memref<384x128xbf16, #tpu.memory_space<vmem>>, vector<384x128xbf16>
    %cst_121 = arith.constant dense<0.000000e+00> : vector<8x128xf32>
    %285 = tpu.matmul %283, %284, %cst_121 {dimension_numbers = #tpu.dot_dimension_numbers<[1], [0], [0], [1], [0, 0, 1, 1], [], []>} : vector<8x384xbf16>, vector<384x128xbf16>, vector<8x128xf32> -> vector<8x128xf32>
    %c0_122 = arith.constant 0 : index
    %c0_123 = arith.constant 0 : index
    %286 = vector.load %arg16[%c0_122, %c0_123] : memref<1x128xf32, #tpu.memory_space<vmem>>, vector<1x128xf32>
    %287 = vector.broadcast %286 : vector<1x128xf32> to vector<8x128xf32>
    %288 = arith.addf %285, %287 : vector<8x128xf32>
    %cst_124 = arith.constant 0.000000e+00 : f32
    %289 = vector.broadcast %cst_124 : f32 to vector<8x128xf32>
    %290 = arith.maximumf %288, %289 : vector<8x128xf32>
    %291 = arith.truncf %290 : vector<8x128xf32> to vector<8x128xbf16>
    %c0_125 = arith.constant 0 : index
    %c0_126 = arith.constant 0 : index
    %c0_127 = arith.constant 0 : index
    %292 = vector.load %arg17[%c0_125, %c0_126, %c0_127] : memref<2x128x128xbf16, #tpu.memory_space<vmem>>, vector<1x128x128xbf16>
    %293 = vector.shape_cast %292 : vector<1x128x128xbf16> to vector<128x128xbf16>
    %cst_128 = arith.constant dense<0.000000e+00> : vector<8x128xf32>
    %294 = tpu.matmul %291, %293, %cst_128 {dimension_numbers = #tpu.dot_dimension_numbers<[1], [0], [0], [1], [0, 0, 1, 1], [], []>} : vector<8x128xbf16>, vector<128x128xbf16>, vector<8x128xf32> -> vector<8x128xf32>
    %c0_129 = arith.constant 0 : index
    %c0_130 = arith.constant 0 : index
    %c0_131 = arith.constant 0 : index
    %295 = vector.load %arg18[%c0_129, %c0_130, %c0_131] : memref<2x16x8xbf16, #tpu.memory_space<vmem>>, vector<1x16x8xbf16>
    %296 = vector.shape_cast %295 : vector<1x16x8xbf16> to vector<16x8xbf16>
    %297 = arith.truncf %294 : vector<8x128xf32> to vector<8x128xbf16>
    %cst_132 = arith.constant dense<0.000000e+00> : vector<16x128xf32>
    %298 = tpu.matmul %296, %297, %cst_132 {dimension_numbers = #tpu.dot_dimension_numbers<[1], [0], [0], [1], [0, 0, 1, 1], [], []>} : vector<16x8xbf16>, vector<8x128xbf16>, vector<16x128xf32> -> vector<16x128xf32>
    %c1_133 = arith.constant 1 : index
    %c0_134 = arith.constant 0 : index
    %c0_135 = arith.constant 0 : index
    %299 = vector.load %arg17[%c1_133, %c0_134, %c0_135] : memref<2x128x128xbf16, #tpu.memory_space<vmem>>, vector<1x128x128xbf16>
    %300 = vector.shape_cast %299 : vector<1x128x128xbf16> to vector<128x128xbf16>
    %cst_136 = arith.constant dense<0.000000e+00> : vector<8x128xf32>
    %301 = tpu.matmul %291, %300, %cst_136 {dimension_numbers = #tpu.dot_dimension_numbers<[1], [0], [0], [1], [0, 0, 1, 1], [], []>} : vector<8x128xbf16>, vector<128x128xbf16>, vector<8x128xf32> -> vector<8x128xf32>
    %c1_137 = arith.constant 1 : index
    %c0_138 = arith.constant 0 : index
    %c0_139 = arith.constant 0 : index
    %302 = vector.load %arg18[%c1_137, %c0_138, %c0_139] : memref<2x16x8xbf16, #tpu.memory_space<vmem>>, vector<1x16x8xbf16>
    %303 = vector.shape_cast %302 : vector<1x16x8xbf16> to vector<16x8xbf16>
    %304 = arith.truncf %301 : vector<8x128xf32> to vector<8x128xbf16>
    %cst_140 = arith.constant dense<0.000000e+00> : vector<16x128xf32>
    %305 = tpu.matmul %303, %304, %cst_140 {dimension_numbers = #tpu.dot_dimension_numbers<[1], [0], [0], [1], [0, 0, 1, 1], [], []>} : vector<16x8xbf16>, vector<8x128xbf16>, vector<16x128xf32> -> vector<16x128xf32>
    %306 = arith.addf %298, %305 : vector<16x128xf32>
    %c0_141 = arith.constant 0 : index
    %c0_142 = arith.constant 0 : index
    %307 = vector.load %arg19[%c0_141, %c0_142] : memref<1x128xf32, #tpu.memory_space<vmem>>, vector<1x128xf32>
    %308 = vector.broadcast %307 : vector<1x128xf32> to vector<16x128xf32>
    %309 = arith.addf %306, %308 : vector<16x128xf32>
    %cst_143 = arith.constant 0.000000e+00 : f32
    %310 = vector.broadcast %cst_143 : f32 to vector<1x128xf32>
    %311 = vector.extract_strided_slice %188 {offsets = [0, 0], sizes = [15, 128], strides = [1, 1]} : vector<16x128xf32> to vector<15x128xf32>
    %312 = tpu.concatenate %310, %311 in 0 : vector<1x128xf32>, vector<15x128xf32> -> vector<16x128xf32>
    %313 = vector.extract_strided_slice %188 {offsets = [1, 0], sizes = [15, 128], strides = [1, 1]} : vector<16x128xf32> to vector<15x128xf32>
    %314 = tpu.concatenate %313, %310 in 0 : vector<15x128xf32>, vector<1x128xf32> -> vector<16x128xf32>
    %315 = tpu.iota {dimensions = array<i32: 0>} : vector<16x1xi32>
    %c8_i32_144 = arith.constant 8 : i32
    %c0_i32_145 = arith.constant 0 : i32
    %316 = arith.cmpi eq, %c8_i32_144, %c0_i32_145 : i32
    %c1_i32_146 = arith.constant 1 : i32
    %317 = arith.select %316, %c1_i32_146, %c8_i32_144 : i32
    %318 = vector.broadcast %317 : i32 to vector<16x1xi32>
    %319 = arith.remsi %315, %318 : vector<16x1xi32>
    %c0_i32_147 = arith.constant 0 : i32
    %320 = vector.broadcast %c0_i32_147 : i32 to vector<16x1xi32>
    %321 = arith.cmpi ne, %319, %320 : vector<16x1xi32>
    %c0_i32_148 = arith.constant 0 : i32
    %322 = vector.broadcast %c0_i32_148 : i32 to vector<16x1xi32>
    %323 = arith.cmpi slt, %319, %322 : vector<16x1xi32>
    %c0_i32_149 = arith.constant 0 : i32
    %324 = arith.cmpi slt, %317, %c0_i32_149 : i32
    %325 = vector.broadcast %324 : i1 to vector<16x1xi1>
    %326 = vector.broadcast %325 : vector<16x1xi1> to vector<16x1xi1>
    %327 = arith.xori %323, %326 : vector<16x1xi1>
    %328 = arith.andi %327, %321 : vector<16x1xi1>
    %329 = vector.broadcast %317 : i32 to vector<16x1xi32>
    %330 = arith.addi %319, %329 : vector<16x1xi32>
    %331 = arith.select %328, %330, %319 : vector<16x1xi1>, vector<16x1xi32>
    %c0_i32_150 = arith.constant 0 : i32
    %332 = vector.broadcast %c0_i32_150 : i32 to vector<16x1xi32>
    %333 = arith.cmpi eq, %331, %332 : vector<16x1xi32>
    %cst_151 = arith.constant 0.000000e+00 : f32
    %334 = vector.shape_cast %333 : vector<16x1xi1> to vector<16x1xi1>
    %335 = vector.broadcast %334 : vector<16x1xi1> to vector<16x128xi1>
    %336 = vector.broadcast %cst_151 : f32 to vector<16x128xf32>
    %337 = arith.select %335, %336, %312 : vector<16x128xi1>, vector<16x128xf32>
    %c7_i32_152 = arith.constant 7 : i32
    %338 = vector.broadcast %c7_i32_152 : i32 to vector<16x1xi32>
    %339 = arith.cmpi eq, %331, %338 : vector<16x1xi32>
    %cst_153 = arith.constant 0.000000e+00 : f32
    %340 = vector.shape_cast %339 : vector<16x1xi1> to vector<16x1xi1>
    %341 = vector.broadcast %340 : vector<16x1xi1> to vector<16x128xi1>
    %342 = vector.broadcast %cst_153 : f32 to vector<16x128xf32>
    %343 = arith.select %341, %342, %314 : vector<16x128xi1>, vector<16x128xf32>
    %cst_154 = arith.constant 0.000000e+00 : f32
    %344 = vector.broadcast %cst_154 : f32 to vector<1x128xf32>
    %345 = vector.extract_strided_slice %309 {offsets = [0, 0], sizes = [15, 128], strides = [1, 1]} : vector<16x128xf32> to vector<15x128xf32>
    %346 = tpu.concatenate %344, %345 in 0 : vector<1x128xf32>, vector<15x128xf32> -> vector<16x128xf32>
    %347 = vector.extract_strided_slice %309 {offsets = [1, 0], sizes = [15, 128], strides = [1, 1]} : vector<16x128xf32> to vector<15x128xf32>
    %348 = tpu.concatenate %347, %344 in 0 : vector<15x128xf32>, vector<1x128xf32> -> vector<16x128xf32>
    %349 = tpu.iota {dimensions = array<i32: 0>} : vector<16x1xi32>
    %c8_i32_155 = arith.constant 8 : i32
    %c0_i32_156 = arith.constant 0 : i32
    %350 = arith.cmpi eq, %c8_i32_155, %c0_i32_156 : i32
    %c1_i32_157 = arith.constant 1 : i32
    %351 = arith.select %350, %c1_i32_157, %c8_i32_155 : i32
    %352 = vector.broadcast %351 : i32 to vector<16x1xi32>
    %353 = arith.remsi %349, %352 : vector<16x1xi32>
    %c0_i32_158 = arith.constant 0 : i32
    %354 = vector.broadcast %c0_i32_158 : i32 to vector<16x1xi32>
    %355 = arith.cmpi ne, %353, %354 : vector<16x1xi32>
    %c0_i32_159 = arith.constant 0 : i32
    %356 = vector.broadcast %c0_i32_159 : i32 to vector<16x1xi32>
    %357 = arith.cmpi slt, %353, %356 : vector<16x1xi32>
    %c0_i32_160 = arith.constant 0 : i32
    %358 = arith.cmpi slt, %351, %c0_i32_160 : i32
    %359 = vector.broadcast %358 : i1 to vector<16x1xi1>
    %360 = vector.broadcast %359 : vector<16x1xi1> to vector<16x1xi1>
    %361 = arith.xori %357, %360 : vector<16x1xi1>
    %362 = arith.andi %361, %355 : vector<16x1xi1>
    %363 = vector.broadcast %351 : i32 to vector<16x1xi32>
    %364 = arith.addi %353, %363 : vector<16x1xi32>
    %365 = arith.select %362, %364, %353 : vector<16x1xi1>, vector<16x1xi32>
    %c0_i32_161 = arith.constant 0 : i32
    %366 = vector.broadcast %c0_i32_161 : i32 to vector<16x1xi32>
    %367 = arith.cmpi eq, %365, %366 : vector<16x1xi32>
    %cst_162 = arith.constant 0.000000e+00 : f32
    %368 = vector.shape_cast %367 : vector<16x1xi1> to vector<16x1xi1>
    %369 = vector.broadcast %368 : vector<16x1xi1> to vector<16x128xi1>
    %370 = vector.broadcast %cst_162 : f32 to vector<16x128xf32>
    %371 = arith.select %369, %370, %346 : vector<16x128xi1>, vector<16x128xf32>
    %c7_i32_163 = arith.constant 7 : i32
    %372 = vector.broadcast %c7_i32_163 : i32 to vector<16x1xi32>
    %373 = arith.cmpi eq, %365, %372 : vector<16x1xi32>
    %cst_164 = arith.constant 0.000000e+00 : f32
    %374 = vector.shape_cast %373 : vector<16x1xi1> to vector<16x1xi1>
    %375 = vector.broadcast %374 : vector<16x1xi1> to vector<16x128xi1>
    %376 = vector.broadcast %cst_164 : f32 to vector<16x128xf32>
    %377 = arith.select %375, %376, %348 : vector<16x128xi1>, vector<16x128xf32>
    %378 = tpu.concatenate %337, %188, %343 in 1 : vector<16x128xf32>, vector<16x128xf32>, vector<16x128xf32> -> vector<16x384xf32>
    %379 = arith.truncf %378 : vector<16x384xf32> to vector<16x384xbf16>
    %380 = tpu.concatenate %371, %309, %377 in 1 : vector<16x128xf32>, vector<16x128xf32>, vector<16x128xf32> -> vector<16x384xf32>
    %381 = arith.truncf %380 : vector<16x384xf32> to vector<16x384xbf16>
    %c0_165 = arith.constant 0 : index
    %c0_166 = arith.constant 0 : index
    %382 = vector.load %arg20[%c0_165, %c0_166] : memref<384x128xbf16, #tpu.memory_space<vmem>>, vector<384x128xbf16>
    %cst_167 = arith.constant dense<0.000000e+00> : vector<16x128xf32>
    %383 = tpu.matmul %379, %382, %cst_167 {dimension_numbers = #tpu.dot_dimension_numbers<[1], [0], [0], [1], [0, 0, 1, 1], [], []>} : vector<16x384xbf16>, vector<384x128xbf16>, vector<16x128xf32> -> vector<16x128xf32>
    %c0_168 = arith.constant 0 : index
    %c0_169 = arith.constant 0 : index
    %384 = vector.load %arg21[%c0_168, %c0_169] : memref<384x128xbf16, #tpu.memory_space<vmem>>, vector<384x128xbf16>
    %cst_170 = arith.constant dense<0.000000e+00> : vector<16x128xf32>
    %385 = tpu.matmul %381, %384, %cst_170 {dimension_numbers = #tpu.dot_dimension_numbers<[1], [0], [0], [1], [0, 0, 1, 1], [], []>} : vector<16x384xbf16>, vector<384x128xbf16>, vector<16x128xf32> -> vector<16x128xf32>
    %386 = arith.addf %383, %385 : vector<16x128xf32>
    %c0_171 = arith.constant 0 : index
    %c0_172 = arith.constant 0 : index
    %387 = vector.load %arg22[%c0_171, %c0_172] : memref<1x128xf32, #tpu.memory_space<vmem>>, vector<1x128xf32>
    %388 = vector.broadcast %387 : vector<1x128xf32> to vector<16x128xf32>
    %389 = arith.addf %386, %388 : vector<16x128xf32>
    %cst_173 = arith.constant 0.000000e+00 : f32
    %390 = vector.broadcast %cst_173 : f32 to vector<16x128xf32>
    %391 = arith.maximumf %389, %390 : vector<16x128xf32>
    %cst_174 = arith.constant 0.000000e+00 : f32
    %392 = vector.broadcast %cst_174 : f32 to vector<1x128xf32>
    %393 = vector.extract_strided_slice %391 {offsets = [0, 0], sizes = [15, 128], strides = [1, 1]} : vector<16x128xf32> to vector<15x128xf32>
    %394 = tpu.concatenate %392, %393 in 0 : vector<1x128xf32>, vector<15x128xf32> -> vector<16x128xf32>
    %395 = vector.extract_strided_slice %391 {offsets = [1, 0], sizes = [15, 128], strides = [1, 1]} : vector<16x128xf32> to vector<15x128xf32>
    %396 = tpu.concatenate %395, %392 in 0 : vector<15x128xf32>, vector<1x128xf32> -> vector<16x128xf32>
    %397 = tpu.iota {dimensions = array<i32: 0>} : vector<16x1xi32>
    %c8_i32_175 = arith.constant 8 : i32
    %c0_i32_176 = arith.constant 0 : i32
    %398 = arith.cmpi eq, %c8_i32_175, %c0_i32_176 : i32
    %c1_i32_177 = arith.constant 1 : i32
    %399 = arith.select %398, %c1_i32_177, %c8_i32_175 : i32
    %400 = vector.broadcast %399 : i32 to vector<16x1xi32>
    %401 = arith.remsi %397, %400 : vector<16x1xi32>
    %c0_i32_178 = arith.constant 0 : i32
    %402 = vector.broadcast %c0_i32_178 : i32 to vector<16x1xi32>
    %403 = arith.cmpi ne, %401, %402 : vector<16x1xi32>
    %c0_i32_179 = arith.constant 0 : i32
    %404 = vector.broadcast %c0_i32_179 : i32 to vector<16x1xi32>
    %405 = arith.cmpi slt, %401, %404 : vector<16x1xi32>
    %c0_i32_180 = arith.constant 0 : i32
    %406 = arith.cmpi slt, %399, %c0_i32_180 : i32
    %407 = vector.broadcast %406 : i1 to vector<16x1xi1>
    %408 = vector.broadcast %407 : vector<16x1xi1> to vector<16x1xi1>
    %409 = arith.xori %405, %408 : vector<16x1xi1>
    %410 = arith.andi %409, %403 : vector<16x1xi1>
    %411 = vector.broadcast %399 : i32 to vector<16x1xi32>
    %412 = arith.addi %401, %411 : vector<16x1xi32>
    %413 = arith.select %410, %412, %401 : vector<16x1xi1>, vector<16x1xi32>
    %c0_i32_181 = arith.constant 0 : i32
    %414 = vector.broadcast %c0_i32_181 : i32 to vector<16x1xi32>
    %415 = arith.cmpi eq, %413, %414 : vector<16x1xi32>
    %cst_182 = arith.constant 0.000000e+00 : f32
    %416 = vector.shape_cast %415 : vector<16x1xi1> to vector<16x1xi1>
    %417 = vector.broadcast %416 : vector<16x1xi1> to vector<16x128xi1>
    %418 = vector.broadcast %cst_182 : f32 to vector<16x128xf32>
    %419 = arith.select %417, %418, %394 : vector<16x128xi1>, vector<16x128xf32>
    %c7_i32_183 = arith.constant 7 : i32
    %420 = vector.broadcast %c7_i32_183 : i32 to vector<16x1xi32>
    %421 = arith.cmpi eq, %413, %420 : vector<16x1xi32>
    %cst_184 = arith.constant 0.000000e+00 : f32
    %422 = vector.shape_cast %421 : vector<16x1xi1> to vector<16x1xi1>
    %423 = vector.broadcast %422 : vector<16x1xi1> to vector<16x128xi1>
    %424 = vector.broadcast %cst_184 : f32 to vector<16x128xf32>
    %425 = arith.select %423, %424, %396 : vector<16x128xi1>, vector<16x128xf32>
    %426 = tpu.concatenate %419, %391, %425 in 1 : vector<16x128xf32>, vector<16x128xf32>, vector<16x128xf32> -> vector<16x384xf32>
    %427 = arith.truncf %426 : vector<16x384xf32> to vector<16x384xbf16>
    %c0_185 = arith.constant 0 : index
    %c0_186 = arith.constant 0 : index
    %428 = vector.load %arg23[%c0_185, %c0_186] : memref<384x128xbf16, #tpu.memory_space<vmem>>, vector<384x128xbf16>
    %cst_187 = arith.constant dense<0.000000e+00> : vector<16x128xf32>
    %429 = tpu.matmul %427, %428, %cst_187 {dimension_numbers = #tpu.dot_dimension_numbers<[1], [0], [0], [1], [0, 0, 1, 1], [], []>} : vector<16x384xbf16>, vector<384x128xbf16>, vector<16x128xf32> -> vector<16x128xf32>
    %c0_188 = arith.constant 0 : index
    %c0_189 = arith.constant 0 : index
    %430 = vector.load %arg24[%c0_188, %c0_189] : memref<1x128xf32, #tpu.memory_space<vmem>>, vector<1x128xf32>
    %431 = vector.broadcast %430 : vector<1x128xf32> to vector<16x128xf32>
    %432 = arith.addf %429, %431 : vector<16x128xf32>
    %cst_190 = arith.constant 0.000000e+00 : f32
    %433 = vector.broadcast %cst_190 : f32 to vector<16x128xf32>
    %434 = arith.maximumf %432, %433 : vector<16x128xf32>
    %435 = arith.truncf %434 : vector<16x128xf32> to vector<16x128xbf16>
    %c0_191 = arith.constant 0 : index
    %c0_192 = arith.constant 0 : index
    %c0_193 = arith.constant 0 : index
    %436 = vector.load %arg25[%c0_191, %c0_192, %c0_193] : memref<2x128x128xbf16, #tpu.memory_space<vmem>>, vector<1x128x128xbf16>
    %437 = vector.shape_cast %436 : vector<1x128x128xbf16> to vector<128x128xbf16>
    %cst_194 = arith.constant dense<0.000000e+00> : vector<16x128xf32>
    %438 = tpu.matmul %435, %437, %cst_194 {dimension_numbers = #tpu.dot_dimension_numbers<[1], [0], [0], [1], [0, 0, 1, 1], [], []>} : vector<16x128xbf16>, vector<128x128xbf16>, vector<16x128xf32> -> vector<16x128xf32>
    %c0_195 = arith.constant 0 : index
    %c0_196 = arith.constant 0 : index
    %c0_197 = arith.constant 0 : index
    %439 = vector.load %arg26[%c0_195, %c0_196, %c0_197] : memref<2x32x16xbf16, #tpu.memory_space<vmem>>, vector<1x32x16xbf16>
    %440 = vector.shape_cast %439 : vector<1x32x16xbf16> to vector<32x16xbf16>
    %441 = arith.truncf %438 : vector<16x128xf32> to vector<16x128xbf16>
    %cst_198 = arith.constant dense<0.000000e+00> : vector<32x128xf32>
    %442 = tpu.matmul %440, %441, %cst_198 {dimension_numbers = #tpu.dot_dimension_numbers<[1], [0], [0], [1], [0, 0, 1, 1], [], []>} : vector<32x16xbf16>, vector<16x128xbf16>, vector<32x128xf32> -> vector<32x128xf32>
    %c1_199 = arith.constant 1 : index
    %c0_200 = arith.constant 0 : index
    %c0_201 = arith.constant 0 : index
    %443 = vector.load %arg25[%c1_199, %c0_200, %c0_201] : memref<2x128x128xbf16, #tpu.memory_space<vmem>>, vector<1x128x128xbf16>
    %444 = vector.shape_cast %443 : vector<1x128x128xbf16> to vector<128x128xbf16>
    %cst_202 = arith.constant dense<0.000000e+00> : vector<16x128xf32>
    %445 = tpu.matmul %435, %444, %cst_202 {dimension_numbers = #tpu.dot_dimension_numbers<[1], [0], [0], [1], [0, 0, 1, 1], [], []>} : vector<16x128xbf16>, vector<128x128xbf16>, vector<16x128xf32> -> vector<16x128xf32>
    %c1_203 = arith.constant 1 : index
    %c0_204 = arith.constant 0 : index
    %c0_205 = arith.constant 0 : index
    %446 = vector.load %arg26[%c1_203, %c0_204, %c0_205] : memref<2x32x16xbf16, #tpu.memory_space<vmem>>, vector<1x32x16xbf16>
    %447 = vector.shape_cast %446 : vector<1x32x16xbf16> to vector<32x16xbf16>
    %448 = arith.truncf %445 : vector<16x128xf32> to vector<16x128xbf16>
    %cst_206 = arith.constant dense<0.000000e+00> : vector<32x128xf32>
    %449 = tpu.matmul %447, %448, %cst_206 {dimension_numbers = #tpu.dot_dimension_numbers<[1], [0], [0], [1], [0, 0, 1, 1], [], []>} : vector<32x16xbf16>, vector<16x128xbf16>, vector<32x128xf32> -> vector<32x128xf32>
    %450 = arith.addf %442, %449 : vector<32x128xf32>
    %c0_207 = arith.constant 0 : index
    %c0_208 = arith.constant 0 : index
    %451 = vector.load %arg27[%c0_207, %c0_208] : memref<1x128xf32, #tpu.memory_space<vmem>>, vector<1x128xf32>
    %452 = vector.broadcast %451 : vector<1x128xf32> to vector<32x128xf32>
    %453 = arith.addf %450, %452 : vector<32x128xf32>
    %cst_209 = arith.constant 0.000000e+00 : f32
    %454 = vector.broadcast %cst_209 : f32 to vector<1x128xf32>
    %455 = vector.extract_strided_slice %86 {offsets = [0, 0], sizes = [31, 128], strides = [1, 1]} : vector<32x128xf32> to vector<31x128xf32>
    %456 = tpu.concatenate %454, %455 in 0 : vector<1x128xf32>, vector<31x128xf32> -> vector<32x128xf32>
    %457 = vector.extract_strided_slice %86 {offsets = [1, 0], sizes = [31, 128], strides = [1, 1]} : vector<32x128xf32> to vector<31x128xf32>
    %458 = tpu.concatenate %457, %454 in 0 : vector<31x128xf32>, vector<1x128xf32> -> vector<32x128xf32>
    %459 = tpu.iota {dimensions = array<i32: 0>} : vector<32x1xi32>
    %c16_i32_210 = arith.constant 16 : i32
    %c0_i32_211 = arith.constant 0 : i32
    %460 = arith.cmpi eq, %c16_i32_210, %c0_i32_211 : i32
    %c1_i32_212 = arith.constant 1 : i32
    %461 = arith.select %460, %c1_i32_212, %c16_i32_210 : i32
    %462 = vector.broadcast %461 : i32 to vector<32x1xi32>
    %463 = arith.remsi %459, %462 : vector<32x1xi32>
    %c0_i32_213 = arith.constant 0 : i32
    %464 = vector.broadcast %c0_i32_213 : i32 to vector<32x1xi32>
    %465 = arith.cmpi ne, %463, %464 : vector<32x1xi32>
    %c0_i32_214 = arith.constant 0 : i32
    %466 = vector.broadcast %c0_i32_214 : i32 to vector<32x1xi32>
    %467 = arith.cmpi slt, %463, %466 : vector<32x1xi32>
    %c0_i32_215 = arith.constant 0 : i32
    %468 = arith.cmpi slt, %461, %c0_i32_215 : i32
    %469 = vector.broadcast %468 : i1 to vector<32x1xi1>
    %470 = vector.broadcast %469 : vector<32x1xi1> to vector<32x1xi1>
    %471 = arith.xori %467, %470 : vector<32x1xi1>
    %472 = arith.andi %471, %465 : vector<32x1xi1>
    %473 = vector.broadcast %461 : i32 to vector<32x1xi32>
    %474 = arith.addi %463, %473 : vector<32x1xi32>
    %475 = arith.select %472, %474, %463 : vector<32x1xi1>, vector<32x1xi32>
    %c0_i32_216 = arith.constant 0 : i32
    %476 = vector.broadcast %c0_i32_216 : i32 to vector<32x1xi32>
    %477 = arith.cmpi eq, %475, %476 : vector<32x1xi32>
    %cst_217 = arith.constant 0.000000e+00 : f32
    %478 = vector.shape_cast %477 : vector<32x1xi1> to vector<32x1xi1>
    %479 = vector.broadcast %478 : vector<32x1xi1> to vector<32x128xi1>
    %480 = vector.broadcast %cst_217 : f32 to vector<32x128xf32>
    %481 = arith.select %479, %480, %456 : vector<32x128xi1>, vector<32x128xf32>
    %c15_i32_218 = arith.constant 15 : i32
    %482 = vector.broadcast %c15_i32_218 : i32 to vector<32x1xi32>
    %483 = arith.cmpi eq, %475, %482 : vector<32x1xi32>
    %cst_219 = arith.constant 0.000000e+00 : f32
    %484 = vector.shape_cast %483 : vector<32x1xi1> to vector<32x1xi1>
    %485 = vector.broadcast %484 : vector<32x1xi1> to vector<32x128xi1>
    %486 = vector.broadcast %cst_219 : f32 to vector<32x128xf32>
    %487 = arith.select %485, %486, %458 : vector<32x128xi1>, vector<32x128xf32>
    %cst_220 = arith.constant 0.000000e+00 : f32
    %488 = vector.broadcast %cst_220 : f32 to vector<1x128xf32>
    %489 = vector.extract_strided_slice %453 {offsets = [0, 0], sizes = [31, 128], strides = [1, 1]} : vector<32x128xf32> to vector<31x128xf32>
    %490 = tpu.concatenate %488, %489 in 0 : vector<1x128xf32>, vector<31x128xf32> -> vector<32x128xf32>
    %491 = vector.extract_strided_slice %453 {offsets = [1, 0], sizes = [31, 128], strides = [1, 1]} : vector<32x128xf32> to vector<31x128xf32>
    %492 = tpu.concatenate %491, %488 in 0 : vector<31x128xf32>, vector<1x128xf32> -> vector<32x128xf32>
    %493 = tpu.iota {dimensions = array<i32: 0>} : vector<32x1xi32>
    %c16_i32_221 = arith.constant 16 : i32
    %c0_i32_222 = arith.constant 0 : i32
    %494 = arith.cmpi eq, %c16_i32_221, %c0_i32_222 : i32
    %c1_i32_223 = arith.constant 1 : i32
    %495 = arith.select %494, %c1_i32_223, %c16_i32_221 : i32
    %496 = vector.broadcast %495 : i32 to vector<32x1xi32>
    %497 = arith.remsi %493, %496 : vector<32x1xi32>
    %c0_i32_224 = arith.constant 0 : i32
    %498 = vector.broadcast %c0_i32_224 : i32 to vector<32x1xi32>
    %499 = arith.cmpi ne, %497, %498 : vector<32x1xi32>
    %c0_i32_225 = arith.constant 0 : i32
    %500 = vector.broadcast %c0_i32_225 : i32 to vector<32x1xi32>
    %501 = arith.cmpi slt, %497, %500 : vector<32x1xi32>
    %c0_i32_226 = arith.constant 0 : i32
    %502 = arith.cmpi slt, %495, %c0_i32_226 : i32
    %503 = vector.broadcast %502 : i1 to vector<32x1xi1>
    %504 = vector.broadcast %503 : vector<32x1xi1> to vector<32x1xi1>
    %505 = arith.xori %501, %504 : vector<32x1xi1>
    %506 = arith.andi %505, %499 : vector<32x1xi1>
    %507 = vector.broadcast %495 : i32 to vector<32x1xi32>
    %508 = arith.addi %497, %507 : vector<32x1xi32>
    %509 = arith.select %506, %508, %497 : vector<32x1xi1>, vector<32x1xi32>
    %c0_i32_227 = arith.constant 0 : i32
    %510 = vector.broadcast %c0_i32_227 : i32 to vector<32x1xi32>
    %511 = arith.cmpi eq, %509, %510 : vector<32x1xi32>
    %cst_228 = arith.constant 0.000000e+00 : f32
    %512 = vector.shape_cast %511 : vector<32x1xi1> to vector<32x1xi1>
    %513 = vector.broadcast %512 : vector<32x1xi1> to vector<32x128xi1>
    %514 = vector.broadcast %cst_228 : f32 to vector<32x128xf32>
    %515 = arith.select %513, %514, %490 : vector<32x128xi1>, vector<32x128xf32>
    %c15_i32_229 = arith.constant 15 : i32
    %516 = vector.broadcast %c15_i32_229 : i32 to vector<32x1xi32>
    %517 = arith.cmpi eq, %509, %516 : vector<32x1xi32>
    %cst_230 = arith.constant 0.000000e+00 : f32
    %518 = vector.shape_cast %517 : vector<32x1xi1> to vector<32x1xi1>
    %519 = vector.broadcast %518 : vector<32x1xi1> to vector<32x128xi1>
    %520 = vector.broadcast %cst_230 : f32 to vector<32x128xf32>
    %521 = arith.select %519, %520, %492 : vector<32x128xi1>, vector<32x128xf32>
    %522 = tpu.concatenate %481, %86, %487 in 1 : vector<32x128xf32>, vector<32x128xf32>, vector<32x128xf32> -> vector<32x384xf32>
    %523 = arith.truncf %522 : vector<32x384xf32> to vector<32x384xbf16>
    %524 = tpu.concatenate %515, %453, %521 in 1 : vector<32x128xf32>, vector<32x128xf32>, vector<32x128xf32> -> vector<32x384xf32>
    %525 = arith.truncf %524 : vector<32x384xf32> to vector<32x384xbf16>
    %c0_231 = arith.constant 0 : index
    %c0_232 = arith.constant 0 : index
    %526 = vector.load %arg28[%c0_231, %c0_232] : memref<384x128xbf16, #tpu.memory_space<vmem>>, vector<384x128xbf16>
    %cst_233 = arith.constant dense<0.000000e+00> : vector<32x128xf32>
    %527 = tpu.matmul %523, %526, %cst_233 {dimension_numbers = #tpu.dot_dimension_numbers<[1], [0], [0], [1], [0, 0, 1, 1], [], []>} : vector<32x384xbf16>, vector<384x128xbf16>, vector<32x128xf32> -> vector<32x128xf32>
    %c0_234 = arith.constant 0 : index
    %c0_235 = arith.constant 0 : index
    %528 = vector.load %arg29[%c0_234, %c0_235] : memref<384x128xbf16, #tpu.memory_space<vmem>>, vector<384x128xbf16>
    %cst_236 = arith.constant dense<0.000000e+00> : vector<32x128xf32>
    %529 = tpu.matmul %525, %528, %cst_236 {dimension_numbers = #tpu.dot_dimension_numbers<[1], [0], [0], [1], [0, 0, 1, 1], [], []>} : vector<32x384xbf16>, vector<384x128xbf16>, vector<32x128xf32> -> vector<32x128xf32>
    %530 = arith.addf %527, %529 : vector<32x128xf32>
    %c0_237 = arith.constant 0 : index
    %c0_238 = arith.constant 0 : index
    %531 = vector.load %arg30[%c0_237, %c0_238] : memref<1x128xf32, #tpu.memory_space<vmem>>, vector<1x128xf32>
    %532 = vector.broadcast %531 : vector<1x128xf32> to vector<32x128xf32>
    %533 = arith.addf %530, %532 : vector<32x128xf32>
    %cst_239 = arith.constant 0.000000e+00 : f32
    %534 = vector.broadcast %cst_239 : f32 to vector<32x128xf32>
    %535 = arith.maximumf %533, %534 : vector<32x128xf32>
    %cst_240 = arith.constant 0.000000e+00 : f32
    %536 = vector.broadcast %cst_240 : f32 to vector<1x128xf32>
    %537 = vector.extract_strided_slice %535 {offsets = [0, 0], sizes = [31, 128], strides = [1, 1]} : vector<32x128xf32> to vector<31x128xf32>
    %538 = tpu.concatenate %536, %537 in 0 : vector<1x128xf32>, vector<31x128xf32> -> vector<32x128xf32>
    %539 = vector.extract_strided_slice %535 {offsets = [1, 0], sizes = [31, 128], strides = [1, 1]} : vector<32x128xf32> to vector<31x128xf32>
    %540 = tpu.concatenate %539, %536 in 0 : vector<31x128xf32>, vector<1x128xf32> -> vector<32x128xf32>
    %541 = tpu.iota {dimensions = array<i32: 0>} : vector<32x1xi32>
    %c16_i32_241 = arith.constant 16 : i32
    %c0_i32_242 = arith.constant 0 : i32
    %542 = arith.cmpi eq, %c16_i32_241, %c0_i32_242 : i32
    %c1_i32_243 = arith.constant 1 : i32
    %543 = arith.select %542, %c1_i32_243, %c16_i32_241 : i32
    %544 = vector.broadcast %543 : i32 to vector<32x1xi32>
    %545 = arith.remsi %541, %544 : vector<32x1xi32>
    %c0_i32_244 = arith.constant 0 : i32
    %546 = vector.broadcast %c0_i32_244 : i32 to vector<32x1xi32>
    %547 = arith.cmpi ne, %545, %546 : vector<32x1xi32>
    %c0_i32_245 = arith.constant 0 : i32
    %548 = vector.broadcast %c0_i32_245 : i32 to vector<32x1xi32>
    %549 = arith.cmpi slt, %545, %548 : vector<32x1xi32>
    %c0_i32_246 = arith.constant 0 : i32
    %550 = arith.cmpi slt, %543, %c0_i32_246 : i32
    %551 = vector.broadcast %550 : i1 to vector<32x1xi1>
    %552 = vector.broadcast %551 : vector<32x1xi1> to vector<32x1xi1>
    %553 = arith.xori %549, %552 : vector<32x1xi1>
    %554 = arith.andi %553, %547 : vector<32x1xi1>
    %555 = vector.broadcast %543 : i32 to vector<32x1xi32>
    %556 = arith.addi %545, %555 : vector<32x1xi32>
    %557 = arith.select %554, %556, %545 : vector<32x1xi1>, vector<32x1xi32>
    %c0_i32_247 = arith.constant 0 : i32
    %558 = vector.broadcast %c0_i32_247 : i32 to vector<32x1xi32>
    %559 = arith.cmpi eq, %557, %558 : vector<32x1xi32>
    %cst_248 = arith.constant 0.000000e+00 : f32
    %560 = vector.shape_cast %559 : vector<32x1xi1> to vector<32x1xi1>
    %561 = vector.broadcast %560 : vector<32x1xi1> to vector<32x128xi1>
    %562 = vector.broadcast %cst_248 : f32 to vector<32x128xf32>
    %563 = arith.select %561, %562, %538 : vector<32x128xi1>, vector<32x128xf32>
    %c15_i32_249 = arith.constant 15 : i32
    %564 = vector.broadcast %c15_i32_249 : i32 to vector<32x1xi32>
    %565 = arith.cmpi eq, %557, %564 : vector<32x1xi32>
    %cst_250 = arith.constant 0.000000e+00 : f32
    %566 = vector.shape_cast %565 : vector<32x1xi1> to vector<32x1xi1>
    %567 = vector.broadcast %566 : vector<32x1xi1> to vector<32x128xi1>
    %568 = vector.broadcast %cst_250 : f32 to vector<32x128xf32>
    %569 = arith.select %567, %568, %540 : vector<32x128xi1>, vector<32x128xf32>
    %570 = tpu.concatenate %563, %535, %569 in 1 : vector<32x128xf32>, vector<32x128xf32>, vector<32x128xf32> -> vector<32x384xf32>
    %571 = arith.truncf %570 : vector<32x384xf32> to vector<32x384xbf16>
    %c0_251 = arith.constant 0 : index
    %c0_252 = arith.constant 0 : index
    %572 = vector.load %arg31[%c0_251, %c0_252] : memref<384x128xbf16, #tpu.memory_space<vmem>>, vector<384x128xbf16>
    %cst_253 = arith.constant dense<0.000000e+00> : vector<32x128xf32>
    %573 = tpu.matmul %571, %572, %cst_253 {dimension_numbers = #tpu.dot_dimension_numbers<[1], [0], [0], [1], [0, 0, 1, 1], [], []>} : vector<32x384xbf16>, vector<384x128xbf16>, vector<32x128xf32> -> vector<32x128xf32>
    %c0_254 = arith.constant 0 : index
    %c0_255 = arith.constant 0 : index
    %574 = vector.load %arg32[%c0_254, %c0_255] : memref<1x128xf32, #tpu.memory_space<vmem>>, vector<1x128xf32>
    %575 = vector.broadcast %574 : vector<1x128xf32> to vector<32x128xf32>
    %576 = arith.addf %573, %575 : vector<32x128xf32>
    %cst_256 = arith.constant 0.000000e+00 : f32
    %577 = vector.broadcast %cst_256 : f32 to vector<32x128xf32>
    %578 = arith.maximumf %576, %577 : vector<32x128xf32>
    %579 = arith.truncf %578 : vector<32x128xf32> to vector<32x128xbf16>
    %c0_257 = arith.constant 0 : index
    %c0_258 = arith.constant 0 : index
    %580 = vector.load %arg33[%c0_257, %c0_258] : memref<128x48xbf16, #tpu.memory_space<vmem>>, vector<128x48xbf16>
    %cst_259 = arith.constant dense<0.000000e+00> : vector<32x48xf32>
    %581 = tpu.matmul %579, %580, %cst_259 {dimension_numbers = #tpu.dot_dimension_numbers<[1], [0], [0], [1], [0, 0, 1, 1], [], []>} : vector<32x128xbf16>, vector<128x48xbf16>, vector<32x48xf32> -> vector<32x48xf32>
    %c0_260 = arith.constant 0 : index
    %c0_261 = arith.constant 0 : index
    %582 = vector.load %arg34[%c0_260, %c0_261] : memref<1x48xf32, #tpu.memory_space<vmem>>, vector<1x48xf32>
    %583 = vector.broadcast %582 : vector<1x48xf32> to vector<32x48xf32>
    %584 = arith.addf %581, %583 : vector<32x48xf32>
    %c0_262 = arith.constant 0 : index
    %c0_263 = arith.constant 0 : index
    %585 = vector.load %arg35[%c0_262, %c0_263] : memref<32x48xf32, #tpu.memory_space<vmem>>, vector<32x48xf32>
    tpu.vector_store %arg35[%c0_262, %c0_263], %584 {strides = array<i32>} : memref<32x48xf32, #tpu.memory_space<vmem>>, vector<32x48xf32>,
    return
  }
}

</mosaic_0001>

<llo_original>
// kernel: apply_fn.1
$region0: #{apply_fn.1}
  #allocation0 [shape = 'u32[]', space=smem, size = 0x4, offset = 0x4, fixed_abs, tag = 'smem constant byte address 0x4 - core index']
  #allocation1 [shape = 'u32[144,128]{1,0:T(1,128)}', space=vmem, size = 0x12000, scoped, tag = 'internal scratch']
  %s0 = inlined_call_operand.smem [shape: u32[36], index: -1, kind: input, shape index: {}]
  %s1 = sld [smem:[%s0]]
  %s2 = scalar_lea.smem %s0, 1
  %s3 = sld [smem:[%s2]]
  %s4 = scalar_lea.smem %s0, 2
  %s5 = sld [smem:[%s4]]
  %s6 = scalar_lea.smem %s0, 3
  %s7 = sld [smem:[%s6]]
  %s8 = scalar_lea.smem %s0, 4
  %s9 = sld [smem:[%s8]]
  %s10 = scalar_lea.smem %s0, 5
  %s11 = sld [smem:[%s10]]
  %s12 = scalar_lea.smem %s0, 6
  %s13 = sld [smem:[%s12]]
  %s14 = scalar_lea.smem %s0, 7
  %s15 = sld [smem:[%s14]]
  %s16 = scalar_lea.smem %s0, 8
  %s17 = sld [smem:[%s16]]
  %s18 = scalar_lea.smem %s0, 9
  %s19 = sld [smem:[%s18]]
  %s20 = scalar_lea.smem %s0, 10
  %s21 = sld [smem:[%s20]]
  %s22 = scalar_lea.smem %s0, 11
  %s23 = sld [smem:[%s22]]
  %s24 = scalar_lea.smem %s0, 12
  %s25 = sld [smem:[%s24]]
  %s26 = scalar_lea.smem %s0, 13
  %s27 = sld [smem:[%s26]]
  %s28 = scalar_lea.smem %s0, 14
  %s29 = sld [smem:[%s28]]
  %s30 = scalar_lea.smem %s0, 15
  %s31 = sld [smem:[%s30]]
  %s32 = scalar_lea.smem %s0, 16
  %s33 = sld [smem:[%s32]]
  %s34 = scalar_lea.smem %s0, 17
  %s35 = sld [smem:[%s34]]
  %s36 = scalar_lea.smem %s0, 18
  %s37 = sld [smem:[%s36]]
  %s38 = scalar_lea.smem %s0, 19
  %s39 = sld [smem:[%s38]]
  %s40 = scalar_lea.smem %s0, 20
  %s41 = sld [smem:[%s40]]
  %s42 = scalar_lea.smem %s0, 21
  %s43 = sld [smem:[%s42]]
  %s44 = scalar_lea.smem %s0, 22
  %s45 = sld [smem:[%s44]]
  %s46 = scalar_lea.smem %s0, 23
  %s47 = sld [smem:[%s46]]
  %s48 = scalar_lea.smem %s0, 24
  %s49 = sld [smem:[%s48]]
  %s50 = scalar_lea.smem %s0, 25
  %s51 = sld [smem:[%s50]]
  %s52 = scalar_lea.smem %s0, 26
  %s53 = sld [smem:[%s52]]
  %s54 = scalar_lea.smem %s0, 27
  %s55 = sld [smem:[%s54]]
  %s56 = scalar_lea.smem %s0, 28
  %s57 = sld [smem:[%s56]]
  %s58 = scalar_lea.smem %s0, 29
  %s59 = sld [smem:[%s58]]
  %s60 = scalar_lea.smem %s0, 30
  %s61 = sld [smem:[%s60]]
  %s62 = scalar_lea.smem %s0, 31
  %s63 = sld [smem:[%s62]]
  %s64 = scalar_lea.smem %s0, 32
  %s65 = sld [smem:[%s64]]
  %s66 = scalar_lea.smem %s0, 33
  %s67 = sld [smem:[%s66]]
  %s68 = scalar_lea.smem %s0, 34
  %s69 = sld [smem:[%s68]]
  %s70 = scalar_lea.smem %s0, 35
  %s71 = sld [smem:[%s70]]
  %s72 = sld [smem:[#allocation0]]
  $region242: #{apply_fn.1} parent=0
    _
  %s74 = ssub.s32 1, %s72
  %s75 = scalar_select 0, %s74, %s72
  $region1: #{apply_fn.1} parent=0
    #allocation2 [shape = 'u8[49152]{0}', space=vmem, size = 0xc000, scoped, tag = 'input window, operand 1, single buffered']
    #allocation3 [shape = 's32[1]{0}', space=sflag, size = 0x4, scoped, tag = 'scoped memory for apply_fn.1']
    #allocation4 [shape = 'u8[512]{0}', space=vmem, size = 0x400, scoped, tag = 'input window, operand 2, single buffered']
    #allocation5 [shape = 's32[1]{0}', space=sflag, size = 0x4, scoped, tag = 'scoped memory for apply_fn.1']
    #allocation6 [shape = 'u8[512]{0}', space=vmem, size = 0x400, scoped, tag = 'input window, operand 4, single buffered']
    #allocation7 [shape = 'u8[8192]{0}', space=vmem, size = 0x2000, scoped, tag = 'input window, operand 5, single buffered']
    #allocation8 [shape = 's32[1]{0}', space=sflag, size = 0x4, scoped, tag = 'scoped memory for apply_fn.1']
    #allocation9 [shape = 'u8[49152]{0}', space=vmem, size = 0xc000, scoped, tag = 'input window, operand 7, single buffered']
    #allocation10 [shape = 'u8[512]{0}', space=vmem, size = 0x400, scoped, tag = 'input window, operand 8, single buffered']
    #allocation11 [shape = 's32[1]{0}', space=sflag, size = 0x4, scoped, tag = 'scoped memory for apply_fn.1']
    #allocation12 [shape = 'u8[512]{0}', space=vmem, size = 0x400, scoped, tag = 'input window, operand 10, single buffered']
    #allocation13 [shape = 'u8[4096]{0}', space=vmem, size = 0x1000, scoped, tag = 'input window, operand 11, single buffered']
    #allocation14 [shape = 's32[1]{0}', space=sflag, size = 0x4, scoped, tag = 'scoped memory for apply_fn.1']
    #allocation15 [shape = 'u8[49152]{0}', space=vmem, size = 0xc000, scoped, tag = 'input window, operand 13, single buffered']
    #allocation16 [shape = 'u8[512]{0}', space=vmem, size = 0x400, scoped, tag = 'input window, operand 14, single buffered']
    #allocation17 [shape = 's32[1]{0}', space=sflag, size = 0x4, scoped, tag = 'scoped memory for apply_fn.1']
    #allocation18 [shape = 'u8[512]{0}', space=vmem, size = 0x400, scoped, tag = 'input window, operand 16, single buffered']
    #allocation19 [shape = 'u8[512]{0}', space=vmem, size = 0x400, scoped, tag = 'input window, operand 19, single buffered']
    #allocation20 [shape = 's32[1]{0}', space=sflag, size = 0x4, scoped, tag = 'scoped memory for apply_fn.1']
    #allocation21 [shape = 'u8[512]{0}', space=vmem, size = 0x400, scoped, tag = 'input window, operand 22, single buffered']
    #allocation22 [shape = 'u8[98304]{0}', space=vmem, size = 0x18000, scoped, tag = 'input window, operand 23, single buffered']
    #allocation23 [shape = 's32[1]{0}', space=sflag, size = 0x4, scoped, tag = 'scoped memory for apply_fn.1']
    #allocation24 [shape = 'u8[512]{0}', space=vmem, size = 0x400, scoped, tag = 'input window, operand 24, single buffered']
    #allocation25 [shape = 'u8[65536]{0}', space=vmem, size = 0x10000, scoped, tag = 'input window, operand 25, single buffered']
    #allocation26 [shape = 's32[1]{0}', space=sflag, size = 0x4, scoped, tag = 'scoped memory for apply_fn.1']
    #allocation27 [shape = 'u8[512]{0}', space=vmem, size = 0x400, scoped, tag = 'input window, operand 27, single buffered']
    #allocation28 [shape = 'u8[98304]{0}', space=vmem, size = 0x18000, scoped, tag = 'input window, operand 28, single buffered']
    #allocation29 [shape = 's32[1]{0}', space=sflag, size = 0x4, scoped, tag = 'scoped memory for apply_fn.1']
    #allocation30 [shape = 'u8[98304]{0}', space=vmem, size = 0x18000, scoped, tag = 'input window, operand 29, single buffered']
    #allocation31 [shape = 'u8[512]{0}', space=vmem, size = 0x400, scoped, tag = 'input window, operand 30, single buffered']
    #allocation32 [shape = 's32[1]{0}', space=sflag, size = 0x4, scoped, tag = 'scoped memory for apply_fn.1']
    #allocation33 [shape = 'u8[98304]{0}', space=vmem, size = 0x18000, scoped, tag = 'input window, operand 31, single buffered']
    #allocation34 [shape = 'u8[512]{0}', space=vmem, size = 0x400, scoped, tag = 'input window, operand 32, single buffered']
    #allocation35 [shape = 's32[1]{0}', space=sflag, size = 0x4, scoped, tag = 'scoped memory for apply_fn.1']
    #allocation36 [shape = 'u8[512]{0}', space=vmem, size = 0x400, scoped, tag = 'input window, operand 34, single buffered']
    %76 = vsyncpa [#allocation3], 0
    %77 = vsyncpa [#allocation5], 0
    %78 = vsyncpa [#allocation8], 0
    %79 = vsyncpa [#allocation11], 0
    %80 = vsyncpa [#allocation14], 0
    %81 = vsyncpa [#allocation17], 0
    %82 = vsyncpa [#allocation20], 0
    %83 = vsyncpa [#allocation23], 0
    %84 = vsyncpa [#allocation26], 0
    %85 = vsyncpa [#allocation29], 0
    %86 = vsyncpa [#allocation32], 0
    %87 = vsyncpa [#allocation35], 0
    // Predicated region
    $region2: #{apply_fn.1} parent=1 // pred_check
      _
    $region3: #{apply_fn.1} parent=1 // pred_check_branch
      %89 = sbr.rel (0) target = $region5
    $region4: #{apply_fn.1} parent=1 // pred_region
      _
    $region5: #{apply_fn.1} parent=1 // pred_fallthru
      _
    // Predicated region
    $region6: #{apply_fn.1} parent=1 // pred_check
      _
    $region7: #{apply_fn.1} parent=1 // pred_check_branch
      %91 = sbr.rel (0) target = $region9
    $region8: #{apply_fn.1} parent=1 // pred_region
      %s93 = ssub.s32 1536, 1536
      %94 = vsyncadd [#allocation3], %s93
      %s95 = sshll.u32 [#allocation2], 4
      %s96 = int_to_ptr.vmem [resolvable:$true] %s95
      %101 = dma.hbm_to_vmem [thread:$0]  %s3, 1536, %s96, [#allocation3], 64, 64, 4
    $region9: #{apply_fn.1} parent=1 // pred_fallthru
      _
    // Predicated region
    $region10: #{apply_fn.1} parent=1 // pred_check
      _
    $region11: #{apply_fn.1} parent=1 // pred_check_branch
      %103 = sbr.rel (0) target = $region13
    $region12: #{apply_fn.1} parent=1 // pred_region
      %s105 = ssub.s32 16, 16
      %106 = vsyncadd [#allocation5], %s105
      %s108 = sshll.u32 [#allocation4], 4
      %s109 = int_to_ptr.vmem [resolvable:$true] %s108
      %111 = dma.hbm_to_vmem [thread:$0]  %s5, 16, %s109, [#allocation5]
    $region13: #{apply_fn.1} parent=1 // pred_fallthru
      _
    // Predicated region
    $region14: #{apply_fn.1} parent=1 // pred_check
      _
    $region15: #{apply_fn.1} parent=1 // pred_check_branch
      %113 = sbr.rel (0) target = $region17
    $region16: #{apply_fn.1} parent=1 // pred_region
      _
    $region17: #{apply_fn.1} parent=1 // pred_fallthru
      _
    // Predicated region
    $region18: #{apply_fn.1} parent=1 // pred_check
      _
    $region19: #{apply_fn.1} parent=1 // pred_check_branch
      %115 = sbr.rel (0) target = $region21
    $region20: #{apply_fn.1} parent=1 // pred_region
      %s117 = ssub.s32 16, 16
      %118 = vsyncadd [#allocation5], %s117
      %s120 = sshll.u32 [#allocation6], 4
      %s121 = int_to_ptr.vmem [resolvable:$true] %s120
      %123 = dma.hbm_to_vmem [thread:$0]  %s9, 16, %s121, [#allocation5]
    $region21: #{apply_fn.1} parent=1 // pred_fallthru
      _
    // Predicated region
    $region22: #{apply_fn.1} parent=1 // pred_check
      _
    $region23: #{apply_fn.1} parent=1 // pred_check_branch
      %125 = sbr.rel (0) target = $region25
    $region24: #{apply_fn.1} parent=1 // pred_region
      %s127 = ssub.s32 256, 256
      %128 = vsyncadd [#allocation8], %s127
      %s129 = sshll.u32 [#allocation7], 4
      %s130 = int_to_ptr.vmem [resolvable:$true] %s129
      %135 = dma.hbm_to_vmem [thread:$0]  %s11, 256, %s130, [#allocation8], 64, 64, 4
    $region25: #{apply_fn.1} parent=1 // pred_fallthru
      _
    // Predicated region
    $region26: #{apply_fn.1} parent=1 // pred_check
      _
    $region27: #{apply_fn.1} parent=1 // pred_check_branch
      %137 = sbr.rel (0) target = $region29
    $region28: #{apply_fn.1} parent=1 // pred_region
      _
    $region29: #{apply_fn.1} parent=1 // pred_fallthru
      _
    // Predicated region
    $region30: #{apply_fn.1} parent=1 // pred_check
      _
    $region31: #{apply_fn.1} parent=1 // pred_check_branch
      %139 = sbr.rel (0) target = $region33
    $region32: #{apply_fn.1} parent=1 // pred_region
      %s141 = ssub.s32 1536, 1536
      %142 = vsyncadd [#allocation8], %s141
      %s143 = sshll.u32 [#allocation9], 4
      %s144 = int_to_ptr.vmem [resolvable:$true] %s143
      %149 = dma.hbm_to_vmem [thread:$0]  %s15, 1536, %s144, [#allocation8], 64, 64, 4
    $region33: #{apply_fn.1} parent=1 // pred_fallthru
      _
    // Predicated region
    $region34: #{apply_fn.1} parent=1 // pred_check
      _
    $region35: #{apply_fn.1} parent=1 // pred_check_branch
      %151 = sbr.rel (0) target = $region37
    $region36: #{apply_fn.1} parent=1 // pred_region
      %s153 = ssub.s32 16, 16
      %154 = vsyncadd [#allocation11], %s153
      %s156 = sshll.u32 [#allocation10], 4
      %s157 = int_to_ptr.vmem [resolvable:$true] %s156
      %159 = dma.hbm_to_vmem [thread:$0]  %s17, 16, %s157, [#allocation11]
    $region37: #{apply_fn.1} parent=1 // pred_fallthru
      _
    // Predicated region
    $region38: #{apply_fn.1} parent=1 // pred_check
      _
    $region39: #{apply_fn.1} parent=1 // pred_check_branch
      %161 = sbr.rel (0) target = $region41
    $region40: #{apply_fn.1} parent=1 // pred_region
      _
    $region41: #{apply_fn.1} parent=1 // pred_fallthru
      _
    // Predicated region
    $region42: #{apply_fn.1} parent=1 // pred_check
      _
    $region43: #{apply_fn.1} parent=1 // pred_check_branch
      %163 = sbr.rel (0) target = $region45
    $region44: #{apply_fn.1} parent=1 // pred_region
      %s165 = ssub.s32 16, 16
      %166 = vsyncadd [#allocation11], %s165
      %s168 = sshll.u32 [#allocation12], 4
      %s169 = int_to_ptr.vmem [resolvable:$true] %s168
      %171 = dma.hbm_to_vmem [thread:$0]  %s21, 16, %s169, [#allocation11]
    $region45: #{apply_fn.1} parent=1 // pred_fallthru
      _
    // Predicated region
    $region46: #{apply_fn.1} parent=1 // pred_check
      _
    $region47: #{apply_fn.1} parent=1 // pred_check_branch
      %173 = sbr.rel (0) target = $region49
    $region48: #{apply_fn.1} parent=1 // pred_region
      %s175 = ssub.s32 128, 128
      %176 = vsyncadd [#allocation14], %s175
      %s177 = sshll.u32 [#allocation13], 4
      %s178 = int_to_ptr.vmem [resolvable:$true] %s177
      %183 = dma.hbm_to_vmem [thread:$0]  %s23, 128, %s178, [#allocation14], 64, 64, 4
    $region49: #{apply_fn.1} parent=1 // pred_fallthru
      _
    // Predicated region
    $region50: #{apply_fn.1} parent=1 // pred_check
      _
    $region51: #{apply_fn.1} parent=1 // pred_check_branch
      %185 = sbr.rel (0) target = $region53
    $region52: #{apply_fn.1} parent=1 // pred_region
      _
    $region53: #{apply_fn.1} parent=1 // pred_fallthru
      _
    // Predicated region
    $region54: #{apply_fn.1} parent=1 // pred_check
      _
    $region55: #{apply_fn.1} parent=1 // pred_check_branch
      %187 = sbr.rel (0) target = $region57
    $region56: #{apply_fn.1} parent=1 // pred_region
      %s189 = ssub.s32 1536, 1536
      %190 = vsyncadd [#allocation14], %s189
      %s191 = sshll.u32 [#allocation15], 4
      %s192 = int_to_ptr.vmem [resolvable:$true] %s191
      %197 = dma.hbm_to_vmem [thread:$0]  %s27, 1536, %s192, [#allocation14], 64, 64, 4
    $region57: #{apply_fn.1} parent=1 // pred_fallthru
      _
    // Predicated region
    $region58: #{apply_fn.1} parent=1 // pred_check
      _
    $region59: #{apply_fn.1} parent=1 // pred_check_branch
      %199 = sbr.rel (0) target = $region61
    $region60: #{apply_fn.1} parent=1 // pred_region
      %s201 = ssub.s32 16, 16
      %202 = vsyncadd [#allocation17], %s201
      %s204 = sshll.u32 [#allocation16], 4
      %s205 = int_to_ptr.vmem [resolvable:$true] %s204
      %207 = dma.hbm_to_vmem [thread:$0]  %s29, 16, %s205, [#allocation17]
    $region61: #{apply_fn.1} parent=1 // pred_fallthru
      _
    // Predicated region
    $region62: #{apply_fn.1} parent=1 // pred_check
      _
    $region63: #{apply_fn.1} parent=1 // pred_check_branch
      %209 = sbr.rel (0) target = $region65
    $region64: #{apply_fn.1} parent=1 // pred_region
      _
    $region65: #{apply_fn.1} parent=1 // pred_fallthru
      _
    // Predicated region
    $region66: #{apply_fn.1} parent=1 // pred_check
      _
    $region67: #{apply_fn.1} parent=1 // pred_check_branch
      %211 = sbr.rel (0) target = $region69
    $region68: #{apply_fn.1} parent=1 // pred_region
      %s213 = ssub.s32 16, 16
      %214 = vsyncadd [#allocation17], %s213
      %s216 = sshll.u32 [#allocation18], 4
      %s217 = int_to_ptr.vmem [resolvable:$true] %s216
      %219 = dma.hbm_to_vmem [thread:$0]  %s33, 16, %s217, [#allocation17]
    $region69: #{apply_fn.1} parent=1 // pred_fallthru
      _
    // Predicated region
    $region70: #{apply_fn.1} parent=1 // pred_check
      _
    $region71: #{apply_fn.1} parent=1 // pred_check_branch
      %221 = sbr.rel (0) target = $region73
    $region72: #{apply_fn.1} parent=1 // pred_region
      _
    $region73: #{apply_fn.1} parent=1 // pred_fallthru
      _
    // Predicated region
    $region74: #{apply_fn.1} parent=1 // pred_check
      _
    $region75: #{apply_fn.1} parent=1 // pred_check_branch
      %223 = sbr.rel (0) target = $region77
    $region76: #{apply_fn.1} parent=1 // pred_region
      _
    $region77: #{apply_fn.1} parent=1 // pred_fallthru
      _
    // Predicated region
    $region78: #{apply_fn.1} parent=1 // pred_check
      _
    $region79: #{apply_fn.1} parent=1 // pred_check_branch
      %225 = sbr.rel (0) target = $region81
    $region80: #{apply_fn.1} parent=1 // pred_region
      %s227 = ssub.s32 16, 16
      %228 = vsyncadd [#allocation20], %s227
      %s230 = sshll.u32 [#allocation19], 4
      %s231 = int_to_ptr.vmem [resolvable:$true] %s230
      %233 = dma.hbm_to_vmem [thread:$0]  %s39, 16, %s231, [#allocation20]
    $region81: #{apply_fn.1} parent=1 // pred_fallthru
      _
    // Predicated region
    $region82: #{apply_fn.1} parent=1 // pred_check
      _
    $region83: #{apply_fn.1} parent=1 // pred_check_branch
      %235 = sbr.rel (0) target = $region85
    $region84: #{apply_fn.1} parent=1 // pred_region
      _
    $region85: #{apply_fn.1} parent=1 // pred_fallthru
      _
    // Predicated region
    $region86: #{apply_fn.1} parent=1 // pred_check
      _
    $region87: #{apply_fn.1} parent=1 // pred_check_branch
      %237 = sbr.rel (0) target = $region89
    $region88: #{apply_fn.1} parent=1 // pred_region
      _
    $region89: #{apply_fn.1} parent=1 // pred_fallthru
      _
    // Predicated region
    $region90: #{apply_fn.1} parent=1 // pred_check
      _
    $region91: #{apply_fn.1} parent=1 // pred_check_branch
      %239 = sbr.rel (0) target = $region93
    $region92: #{apply_fn.1} parent=1 // pred_region
      %s241 = ssub.s32 16, 16
      %242 = vsyncadd [#allocation20], %s241
      %s244 = sshll.u32 [#allocation21], 4
      %s245 = int_to_ptr.vmem [resolvable:$true] %s244
      %247 = dma.hbm_to_vmem [thread:$0]  %s45, 16, %s245, [#allocation20]
    $region93: #{apply_fn.1} parent=1 // pred_fallthru
      _
    // Predicated region
    $region94: #{apply_fn.1} parent=1 // pred_check
      _
    $region95: #{apply_fn.1} parent=1 // pred_check_branch
      %249 = sbr.rel (0) target = $region97
    $region96: #{apply_fn.1} parent=1 // pred_region
      %s251 = ssub.s32 3072, 3072
      %252 = vsyncadd [#allocation23], %s251
      %s253 = sshll.u32 [#allocation22], 4
      %s254 = int_to_ptr.vmem [resolvable:$true] %s253
      %259 = dma.hbm_to_vmem [thread:$0]  %s47, 3072, %s254, [#allocation23], 64, 64, 4
    $region97: #{apply_fn.1} parent=1 // pred_fallthru
      _
    // Predicated region
    $region98: #{apply_fn.1} parent=1 // pred_check
      _
    $region99: #{apply_fn.1} parent=1 // pred_check_branch
      %261 = sbr.rel (0) target = $region101
    $region100: #{apply_fn.1} parent=1 // pred_region
      %s263 = ssub.s32 16, 16
      %264 = vsyncadd [#allocation23], %s263
      %s266 = sshll.u32 [#allocation24], 4
      %s267 = int_to_ptr.vmem [resolvable:$true] %s266
      %269 = dma.hbm_to_vmem [thread:$0]  %s49, 16, %s267, [#allocation23]
    $region101: #{apply_fn.1} parent=1 // pred_fallthru
      _
    // Predicated region
    $region102: #{apply_fn.1} parent=1 // pred_check
      _
    $region103: #{apply_fn.1} parent=1 // pred_check_branch
      %271 = sbr.rel (0) target = $region105
    $region104: #{apply_fn.1} parent=1 // pred_region
      %s273 = ssub.s32 2048, 2048
      %274 = vsyncadd [#allocation26], %s273
      %s275 = sshll.u32 [#allocation25], 4
      %s276 = int_to_ptr.vmem [resolvable:$true] %s275
      %281 = dma.hbm_to_vmem [thread:$0]  %s51, 2048, %s276, [#allocation26], 64, 64, 4
    $region105: #{apply_fn.1} parent=1 // pred_fallthru
      _
    // Predicated region
    $region106: #{apply_fn.1} parent=1 // pred_check
      _
    $region107: #{apply_fn.1} parent=1 // pred_check_branch
      %283 = sbr.rel (0) target = $region109
    $region108: #{apply_fn.1} parent=1 // pred_region
      _
    $region109: #{apply_fn.1} parent=1 // pred_fallthru
      _
    // Predicated region
    $region110: #{apply_fn.1} parent=1 // pred_check
      _
    $region111: #{apply_fn.1} parent=1 // pred_check_branch
      %285 = sbr.rel (0) target = $region113
    $region112: #{apply_fn.1} parent=1 // pred_region
      %s287 = ssub.s32 16, 16
      %288 = vsyncadd [#allocation26], %s287
      %s290 = sshll.u32 [#allocation27], 4
      %s291 = int_to_ptr.vmem [resolvable:$true] %s290
      %293 = dma.hbm_to_vmem [thread:$0]  %s55, 16, %s291, [#allocation26]
    $region113: #{apply_fn.1} parent=1 // pred_fallthru
      _
    // Predicated region
    $region114: #{apply_fn.1} parent=1 // pred_check
      _
    $region115: #{apply_fn.1} parent=1 // pred_check_branch
      %295 = sbr.rel (0) target = $region117
    $region116: #{apply_fn.1} parent=1 // pred_region
      %s297 = ssub.s32 3072, 3072
      %298 = vsyncadd [#allocation29], %s297
      %s299 = sshll.u32 [#allocation28], 4
      %s300 = int_to_ptr.vmem [resolvable:$true] %s299
      %305 = dma.hbm_to_vmem [thread:$0]  %s57, 3072, %s300, [#allocation29], 64, 64, 4
    $region117: #{apply_fn.1} parent=1 // pred_fallthru
      _
    // Predicated region
    $region118: #{apply_fn.1} parent=1 // pred_check
      _
    $region119: #{apply_fn.1} parent=1 // pred_check_branch
      %307 = sbr.rel (0) target = $region121
    $region120: #{apply_fn.1} parent=1 // pred_region
      %s309 = ssub.s32 3072, 3072
      %310 = vsyncadd [#allocation29], %s309
      %s311 = sshll.u32 [#allocation30], 4
      %s312 = int_to_ptr.vmem [resolvable:$true] %s311
      %317 = dma.hbm_to_vmem [thread:$0]  %s59, 3072, %s312, [#allocation29], 64, 64, 4
    $region121: #{apply_fn.1} parent=1 // pred_fallthru
      _
    // Predicated region
    $region122: #{apply_fn.1} parent=1 // pred_check
      _
    $region123: #{apply_fn.1} parent=1 // pred_check_branch
      %319 = sbr.rel (0) target = $region125
    $region124: #{apply_fn.1} parent=1 // pred_region
      %s321 = ssub.s32 16, 16
      %322 = vsyncadd [#allocation32], %s321
      %s324 = sshll.u32 [#allocation31], 4
      %s325 = int_to_ptr.vmem [resolvable:$true] %s324
      %327 = dma.hbm_to_vmem [thread:$0]  %s61, 16, %s325, [#allocation32]
    $region125: #{apply_fn.1} parent=1 // pred_fallthru
      _
    // Predicated region
    $region126: #{apply_fn.1} parent=1 // pred_check
      _
    $region127: #{apply_fn.1} parent=1 // pred_check_branch
      %329 = sbr.rel (0) target = $region129
    $region128: #{apply_fn.1} parent=1 // pred_region
      %s331 = ssub.s32 3072, 3072
      %332 = vsyncadd [#allocation32], %s331
      %s333 = sshll.u32 [#allocation33], 4
      %s334 = int_to_ptr.vmem [resolvable:$true] %s333
      %339 = dma.hbm_to_vmem [thread:$0]  %s63, 3072, %s334, [#allocation32], 64, 64, 4
    $region129: #{apply_fn.1} parent=1 // pred_fallthru
      _
    // Predicated region
    $region130: #{apply_fn.1} parent=1 // pred_check
      _
    $region131: #{apply_fn.1} parent=1 // pred_check_branch
      %341 = sbr.rel (0) target = $region133
    $region132: #{apply_fn.1} parent=1 // pred_region
      %s343 = ssub.s32 16, 16
      %344 = vsyncadd [#allocation35], %s343
      %s346 = sshll.u32 [#allocation34], 4
      %s347 = int_to_ptr.vmem [resolvable:$true] %s346
      %349 = dma.hbm_to_vmem [thread:$0]  %s65, 16, %s347, [#allocation35]
    $region133: #{apply_fn.1} parent=1 // pred_fallthru
      _
    // Predicated region
    $region134: #{apply_fn.1} parent=1 // pred_check
      _
    $region135: #{apply_fn.1} parent=1 // pred_check_branch
      %351 = sbr.rel (0) target = $region137
    $region136: #{apply_fn.1} parent=1 // pred_region
      _
    $region137: #{apply_fn.1} parent=1 // pred_fallthru
      _
    // Predicated region
    $region138: #{apply_fn.1} parent=1 // pred_check
      _
    $region139: #{apply_fn.1} parent=1 // pred_check_branch
      %353 = sbr.rel (0) target = $region141
    $region140: #{apply_fn.1} parent=1 // pred_region
      %s355 = ssub.s32 16, 16
      %356 = vsyncadd [#allocation35], %s355
      %s358 = sshll.u32 [#allocation36], 4
      %s359 = int_to_ptr.vmem [resolvable:$true] %s358
      %361 = dma.hbm_to_vmem [thread:$0]  %s69, 16, %s359, [#allocation35]
    $region141: #{apply_fn.1} parent=1 // pred_fallthru
      _
    // Predicated region
    $region142: #{apply_fn.1} parent=1 // pred_check
      _
    $region143: #{apply_fn.1} parent=1 // pred_check_branch
      %363 = sbr.rel (0) target = $region145
    $region144: #{apply_fn.1} parent=1 // pred_region
      %364 = dma.done [#allocation3], 1536
    $region145: #{apply_fn.1} parent=1 // pred_fallthru
      _
    // Predicated region
    $region146: #{apply_fn.1} parent=1 // pred_check
      _
    $region147: #{apply_fn.1} parent=1 // pred_check_branch
      %366 = sbr.rel (0) target = $region149
    $region148: #{apply_fn.1} parent=1 // pred_region
      %367 = dma.done [#allocation5], 16
    $region149: #{apply_fn.1} parent=1 // pred_fallthru
      _
    // Predicated region
    $region150: #{apply_fn.1} parent=1 // pred_check
      _
    $region151: #{apply_fn.1} parent=1 // pred_check_branch
      %369 = sbr.rel (0) target = $region153
    $region152: #{apply_fn.1} parent=1 // pred_region
      %370 = dma.done [#allocation5], 16
    $region153: #{apply_fn.1} parent=1 // pred_fallthru
      _
    // Predicated region
    $region154: #{apply_fn.1} parent=1 // pred_check
      _
    $region155: #{apply_fn.1} parent=1 // pred_check_branch
      %372 = sbr.rel (0) target = $region157
    $region156: #{apply_fn.1} parent=1 // pred_region
      %373 = dma.done [#allocation8], 256
    $region157: #{apply_fn.1} parent=1 // pred_fallthru
      _
    // Predicated region
    $region158: #{apply_fn.1} parent=1 // pred_check
      _
    $region159: #{apply_fn.1} parent=1 // pred_check_branch
      %375 = sbr.rel (0) target = $region161
    $region160: #{apply_fn.1} parent=1 // pred_region
      %376 = dma.done [#allocation8], 1536
    $region161: #{apply_fn.1} parent=1 // pred_fallthru
      _
    // Predicated region
    $region162: #{apply_fn.1} parent=1 // pred_check
      _
    $region163: #{apply_fn.1} parent=1 // pred_check_branch
      %378 = sbr.rel (0) target = $region165
    $region164: #{apply_fn.1} parent=1 // pred_region
      %379 = dma.done [#allocation11], 16
    $region165: #{apply_fn.1} parent=1 // pred_fallthru
      _
    // Predicated region
    $region166: #{apply_fn.1} parent=1 // pred_check
      _
    $region167: #{apply_fn.1} parent=1 // pred_check_branch
      %381 = sbr.rel (0) target = $region169
    $region168: #{apply_fn.1} parent=1 // pred_region
      %382 = dma.done [#allocation11], 16
    $region169: #{apply_fn.1} parent=1 // pred_fallthru
      _
    // Predicated region
    $region170: #{apply_fn.1} parent=1 // pred_check
      _
    $region171: #{apply_fn.1} parent=1 // pred_check_branch
      %384 = sbr.rel (0) target = $region173
    $region172: #{apply_fn.1} parent=1 // pred_region
      %385 = dma.done [#allocation14], 128
    $region173: #{apply_fn.1} parent=1 // pred_fallthru
      _
    // Predicated region
    $region174: #{apply_fn.1} parent=1 // pred_check
      _
    $region175: #{apply_fn.1} parent=1 // pred_check_branch
      %387 = sbr.rel (0) target = $region177
    $region176: #{apply_fn.1} parent=1 // pred_region
      %388 = dma.done [#allocation14], 1536
    $region177: #{apply_fn.1} parent=1 // pred_fallthru
      _
    // Predicated region
    $region178: #{apply_fn.1} parent=1 // pred_check
      _
    $region179: #{apply_fn.1} parent=1 // pred_check_branch
      %390 = sbr.rel (0) target = $region181
    $region180: #{apply_fn.1} parent=1 // pred_region
      %391 = dma.done [#allocation17], 16
    $region181: #{apply_fn.1} parent=1 // pred_fallthru
      _
    // Predicated region
    $region182: #{apply_fn.1} parent=1 // pred_check
      _
    $region183: #{apply_fn.1} parent=1 // pred_check_branch
      %393 = sbr.rel (0) target = $region185
    $region184: #{apply_fn.1} parent=1 // pred_region
      %394 = dma.done [#allocation17], 16
    $region185: #{apply_fn.1} parent=1 // pred_fallthru
      _
    // Predicated region
    $region186: #{apply_fn.1} parent=1 // pred_check
      _
    $region187: #{apply_fn.1} parent=1 // pred_check_branch
      %396 = sbr.rel (0) target = $region189
    $region188: #{apply_fn.1} parent=1 // pred_region
      %397 = dma.done [#allocation20], 16
    $region189: #{apply_fn.1} parent=1 // pred_fallthru
      _
    // Predicated region
    $region190: #{apply_fn.1} parent=1 // pred_check
      _
    $region191: #{apply_fn.1} parent=1 // pred_check_branch
      %399 = sbr.rel (0) target = $region193
    $region192: #{apply_fn.1} parent=1 // pred_region
      %400 = dma.done [#allocation20], 16
    $region193: #{apply_fn.1} parent=1 // pred_fallthru
      _
    // Predicated region
    $region194: #{apply_fn.1} parent=1 // pred_check
      _
    $region195: #{apply_fn.1} parent=1 // pred_check_branch
      %402 = sbr.rel (0) target = $region197
    $region196: #{apply_fn.1} parent=1 // pred_region
      %403 = dma.done [#allocation23], 3072
    $region197: #{apply_fn.1} parent=1 // pred_fallthru
      _
    // Predicated region
    $region198: #{apply_fn.1} parent=1 // pred_check
      _
    $region199: #{apply_fn.1} parent=1 // pred_check_branch
      %405 = sbr.rel (0) target = $region201
    $region200: #{apply_fn.1} parent=1 // pred_region
      %406 = dma.done [#allocation23], 16
    $region201: #{apply_fn.1} parent=1 // pred_fallthru
      _
    // Predicated region
    $region202: #{apply_fn.1} parent=1 // pred_check
      _
    $region203: #{apply_fn.1} parent=1 // pred_check_branch
      %408 = sbr.rel (0) target = $region205
    $region204: #{apply_fn.1} parent=1 // pred_region
      %409 = dma.done [#allocation26], 2048
    $region205: #{apply_fn.1} parent=1 // pred_fallthru
      _
    // Predicated region
    $region206: #{apply_fn.1} parent=1 // pred_check
      _
    $region207: #{apply_fn.1} parent=1 // pred_check_branch
      %411 = sbr.rel (0) target = $region209
    $region208: #{apply_fn.1} parent=1 // pred_region
      %412 = dma.done [#allocation26], 16
    $region209: #{apply_fn.1} parent=1 // pred_fallthru
      _
    // Predicated region
    $region210: #{apply_fn.1} parent=1 // pred_check
      _
    $region211: #{apply_fn.1} parent=1 // pred_check_branch
      %414 = sbr.rel (0) target = $region213
    $region212: #{apply_fn.1} parent=1 // pred_region
      %415 = dma.done [#allocation29], 3072
    $region213: #{apply_fn.1} parent=1 // pred_fallthru
      _
    // Predicated region
    $region214: #{apply_fn.1} parent=1 // pred_check
      _
    $region215: #{apply_fn.1} parent=1 // pred_check_branch
      %417 = sbr.rel (0) target = $region217
    $region216: #{apply_fn.1} parent=1 // pred_region
      %418 = dma.done [#allocation29], 3072
    $region217: #{apply_fn.1} parent=1 // pred_fallthru
      _
    // Predicated region
    $region218: #{apply_fn.1} parent=1 // pred_check
      _
    $region219: #{apply_fn.1} parent=1 // pred_check_branch
      %420 = sbr.rel (0) target = $region221
    $region220: #{apply_fn.1} parent=1 // pred_region
      %421 = dma.done [#allocation32], 16
    $region221: #{apply_fn.1} parent=1 // pred_fallthru
      _
    // Predicated region
    $region222: #{apply_fn.1} parent=1 // pred_check
      _
    $region223: #{apply_fn.1} parent=1 // pred_check_branch
      %423 = sbr.rel (0) target = $region225
    $region224: #{apply_fn.1} parent=1 // pred_region
      %424 = dma.done [#allocation32], 3072
    $region225: #{apply_fn.1} parent=1 // pred_fallthru
      _
    // Predicated region
    $region226: #{apply_fn.1} parent=1 // pred_check
      _
    $region227: #{apply_fn.1} parent=1 // pred_check_branch
      %426 = sbr.rel (0) target = $region229
    $region228: #{apply_fn.1} parent=1 // pred_region
      %427 = dma.done [#allocation35], 16
    $region229: #{apply_fn.1} parent=1 // pred_fallthru
      _
    // Predicated region
    $region230: #{apply_fn.1} parent=1 // pred_check
      _
    $region231: #{apply_fn.1} parent=1 // pred_check_branch
      %429 = sbr.rel (0) target = $region233
    $region232: #{apply_fn.1} parent=1 // pred_region
      %430 = dma.done [#allocation35], 16
    $region233: #{apply_fn.1} parent=1 // pred_fallthru
      _
    %v432 = vld [vmem:[%s1] sm:$0xff]
    %v433 = vld [vmem:[%s1 + $0x8] sm:$0xff]
    %v434 = vld [vmem:[%s1 + $0x10] sm:$0xff]
    %v435 = vld [vmem:[%s1 + $0x18] sm:$0xff]
    %vm440 = vcmask 1040384
    %v441 = vrot.slane %v432, 7
    %v442 = vrot.slane %v433, 7
    %v443 = vsel %vm440, %v441, %v442
    %v444 = vrot.slane %v434, 7
    %v445 = vsel %vm440, %v442, %v444
    %v446 = vrot.slane %v435, 7
    %v447 = vsel %vm440, %v444, %v446
    %v452 = vsel %vm440, 0.0, %v441
    %vm453 = vcmask 1046528
    %v454 = vrot.slane %v432, 1
    %v455 = vrot.slane %v433, 1
    %v456 = vsel %vm453, %v454, %v455
    %v457 = vrot.slane %v434, 1
    %v458 = vsel %vm453, %v455, %v457
    %v459 = vrot.slane %v435, 1
    %v460 = vsel %vm453, %v457, %v459
    %v465 = vsel %vm453, %v459, 0.0
    %v466 = vlaneseq
    %v467 = vshrl.u32 %v466, 7
    %v468 = vadd.s32 %v467, 8
    %v469 = vadd.s32 %v467, 16
    %v470 = vadd.s32 %v467, 24
    %vm471 = vcmp.lt.s32.totalorder %v467, 0
    %v472 = vsub.s32 0, %v467
    %v473 = vsel %vm471, %v472, %v467
    %v474 = vshrl.u32 %v473, 4
    %v475 = vand.u32 %v473, 15
    %v476 = vsub.s32 0, %v475
    %v477 = vsel %vm471, %v476, %v475
    %vm478 = vcmp.lt.s32.totalorder %v468, 0
    %v479 = vsub.s32 0, %v468
    %v480 = vsel %vm478, %v479, %v468
    %v481 = vshrl.u32 %v480, 4
    %v482 = vand.u32 %v480, 15
    %v483 = vsub.s32 0, %v482
    %v484 = vsel %vm478, %v483, %v482
    %vm485 = vcmp.lt.s32.totalorder %v469, 0
    %v486 = vsub.s32 0, %v469
    %v487 = vsel %vm485, %v486, %v469
    %v488 = vshrl.u32 %v487, 4
    %v489 = vand.u32 %v487, 15
    %v490 = vsub.s32 0, %v489
    %v491 = vsel %vm485, %v490, %v489
    %vm492 = vcmp.lt.s32.totalorder %v470, 0
    %v493 = vsub.s32 0, %v470
    %v494 = vsel %vm492, %v493, %v470
    %v495 = vshrl.u32 %v494, 4
    %v496 = vand.u32 %v494, 15
    %v497 = vsub.s32 0, %v496
    %v498 = vsel %vm492, %v497, %v496
    %vm499 = vcmp.ne.s32.totalorder %v477, 0
    %vm500 = vcmp.ne.s32.totalorder %v484, 0
    %vm501 = vcmp.ne.s32.totalorder %v491, 0
    %vm502 = vcmp.ne.s32.totalorder %v498, 0
    %vm503 = vcmp.lt.s32.totalorder %v477, 0
    %vm504 = vcmp.lt.s32.totalorder %v484, 0
    %vm505 = vcmp.lt.s32.totalorder %v491, 0
    %vm506 = vcmp.lt.s32.totalorder %v498, 0
    %vm507 = vmand %vm503, %vm499
    %vm508 = vmand %vm504, %vm500
    %vm509 = vmand %vm505, %vm501
    %vm510 = vmand %vm506, %vm502
    %v511 = vadd.s32 %v477, 16
    %v512 = vadd.s32 %v484, 16
    %v513 = vadd.s32 %v491, 16
    %v514 = vadd.s32 %v498, 16
    %v515 = vsel %vm507, %v511, %v477
    %v516 = vsel %vm508, %v512, %v484
    %v517 = vsel %vm509, %v513, %v491
    %v518 = vsel %vm510, %v514, %v498
    %vm519 = vcmp.eq.s32.totalorder %v515, 0
    %vm520 = vcmp.eq.s32.totalorder %v516, 0
    %vm521 = vcmp.eq.s32.totalorder %v517, 0
    %vm522 = vcmp.eq.s32.totalorder %v518, 0
    %v523 = vsel %vm519, 1, 0
    %v524 = vsel %vm520, 1, 0
    %v525 = vsel %vm521, 1, 0
    %v526 = vsel %vm522, 1, 0
    %vm527 = vcmp.eq.s32.totalorder %v523, 1
    %vm528 = vcmp.eq.s32.totalorder %v524, 1
    %vm529 = vcmp.eq.s32.totalorder %v525, 1
    %vm530 = vcmp.eq.s32.totalorder %v526, 1
    %v531 = vsel %vm527, 0.0, %v452
    %v532 = vsel %vm528, 0.0, %v443
    %v533 = vsel %vm529, 0.0, %v445
    %v534 = vsel %vm530, 0.0, %v447
    %vm535 = vcmp.eq.s32.totalorder %v515, 15
    %vm536 = vcmp.eq.s32.totalorder %v516, 15
    %vm537 = vcmp.eq.s32.totalorder %v517, 15
    %vm538 = vcmp.eq.s32.totalorder %v518, 15
    %v539 = vsel %vm535, 1, 0
    %v540 = vsel %vm536, 1, 0
    %v541 = vsel %vm537, 1, 0
    %v542 = vsel %vm538, 1, 0
    %vm543 = vcmp.eq.s32.totalorder %v539, 1
    %vm544 = vcmp.eq.s32.totalorder %v540, 1
    %vm545 = vcmp.eq.s32.totalorder %v541, 1
    %vm546 = vcmp.eq.s32.totalorder %v542, 1
    %v547 = vsel %vm543, 0.0, %v456
    %v548 = vsel %vm544, 0.0, %v458
    %v549 = vsel %vm545, 0.0, %v460
    %v550 = vsel %vm546, 0.0, %v465
    %551 = vrot.lane.b32.xlu0 %v432, 64
    %v552 = vpop.permute.xlu0 %551
    %553 = vrot.lane.b32.xlu0 %v433, 64
    %v554 = vpop.permute.xlu0 %553
    %555 = vrot.lane.b32.xlu0 %v434, 64
    %v556 = vpop.permute.xlu0 %555
    %557 = vrot.lane.b32.xlu0 %v435, 64
    %v558 = vpop.permute.xlu0 %557
    %vm563 = vcmask 523264
    %v564 = vsel %vm563, %v531, %v552
    %v565 = vsel %vm563, %v532, %v554
    %v566 = vsel %vm563, %v533, %v556
    %v567 = vsel %vm563, %v534, %v558
    %v568 = vpack.c.bf16 %v565, %v564
    %v569 = vpack.c.bf16 %v548, %v547
    %v570 = vpack.c.bf16 %v567, %v566
    %v571 = vpack.c.bf16 %v550, %v549
    %v572 = vld [vmem:[#allocation2] sm:$0xf]
    %v573 = vld [vmem:[#allocation2 + $0x4] sm:$0xf]
    %v574 = vld [vmem:[#allocation2 + $0x8] sm:$0xf]
    %v575 = vld [vmem:[#allocation2 + $0xc] sm:$0xf]
    %v576 = vld [vmem:[#allocation2 + $0x10] sm:$0xf]
    %v577 = vld [vmem:[#allocation2 + $0x14] sm:$0xf]
    %v578 = vld [vmem:[#allocation2 + $0x18] sm:$0xf]
    %v579 = vld [vmem:[#allocation2 + $0x1c] sm:$0xf]
    %v580 = vld [vmem:[#allocation2 + $0x20] sm:$0xf]
    %v581 = vld [vmem:[#allocation2 + $0x24] sm:$0xf]
    %v582 = vld [vmem:[#allocation2 + $0x28] sm:$0xf]
    %v583 = vld [vmem:[#allocation2 + $0x2c] sm:$0xf]
    %v584 = vld [vmem:[#allocation2 + $0x30] sm:$0xf]
    %v585 = vld [vmem:[#allocation2 + $0x34] sm:$0xf]
    %v586 = vld [vmem:[#allocation2 + $0x38] sm:$0xf]
    %v587 = vld [vmem:[#allocation2 + $0x3c] sm:$0xf]
    %v588 = vld [vmem:[#allocation2 + $0x40] sm:$0xf]
    %v589 = vld [vmem:[#allocation2 + $0x44] sm:$0xf]
    %v590 = vld [vmem:[#allocation2 + $0x48] sm:$0xf]
    %v591 = vld [vmem:[#allocation2 + $0x4c] sm:$0xf]
    %v592 = vld [vmem:[#allocation2 + $0x50] sm:$0xf]
    %v593 = vld [vmem:[#allocation2 + $0x54] sm:$0xf]
    %v594 = vld [vmem:[#allocation2 + $0x58] sm:$0xf]
    %v595 = vld [vmem:[#allocation2 + $0x5c] sm:$0xf]
    %v596 = vld [vmem:[#allocation4] sm:$0x1]
    %v598 = vlaneseq
    %v599 = vshrl.u32 %v598, 7
    %v600 = vsub.s32 0, %v599
    %v601 = vrot.slane %v596, %v600
    %v627 = vunpack.c.l.b16 %v572
    %v628 = vunpack.c.l.b16 %v573
    %v629 = vunpack.c.l.b16 %v574
    %v630 = vunpack.c.l.b16 %v575
    %v631 = vunpack.c.l.b16 %v576
    %v632 = vunpack.c.l.b16 %v577
    %v633 = vunpack.c.l.b16 %v578
    %v634 = vunpack.c.l.b16 %v579
    %v635 = vunpack.c.l.b16 %v580
    %v636 = vunpack.c.l.b16 %v581
    %v637 = vunpack.c.l.b16 %v582
    %v638 = vunpack.c.l.b16 %v583
    %v639 = vunpack.c.l.b16 %v584
    %v640 = vunpack.c.l.b16 %v585
    %v641 = vunpack.c.l.b16 %v586
    %v642 = vunpack.c.l.b16 %v587
    %v643 = vunpack.c.l.b16 %v588
    %v644 = vunpack.c.l.b16 %v589
    %v645 = vunpack.c.l.b16 %v590
    %v646 = vunpack.c.l.b16 %v591
    %v647 = vunpack.c.l.b16 %v592
    %v648 = vunpack.c.l.b16 %v593
    %v649 = vunpack.c.l.b16 %v594
    %v650 = vunpack.c.l.b16 %v595
    %v651 = vpack.c.b16 %v628, %v627
    %v652 = vpack.c.b16 %v630, %v629
    %v653 = vpack.c.b16 %v632, %v631
    %v654 = vpack.c.b16 %v634, %v633
    %v655 = vpack.c.b16 %v636, %v635
    %v656 = vpack.c.b16 %v638, %v637
    %v657 = vpack.c.b16 %v640, %v639
    %v658 = vpack.c.b16 %v642, %v641
    %v659 = vpack.c.b16 %v644, %v643
    %v660 = vpack.c.b16 %v646, %v645
    %v661 = vpack.c.b16 %v648, %v647
    %v662 = vpack.c.b16 %v650, %v649
    %v676 = vsel %vm563, %v569, 0
    %v679 = vsel %vm563, %v571, 0
    %681 = vmatprep.subr.bf16.mxu0 0
    %682 = vmatpush1.bf16.msra.mxu0 %v651
    %683 = vmatprep.subr.bf16.mxu0 0
    %684 = vmatpush1.bf16.msra.mxu0 %v652
    %685 = vmatprep.subr.bf16.mxu0 0
    %686 = vmatpush1.bf16.msra.mxu0 %v653
    %687 = vmatprep.subr.bf16.mxu0 0
    %688 = vmatpush1.bf16.msra.mxu0 %v654
    %689 = vmatprep.subr.bf16.mxu0 0
    %690 = vmatpush1.bf16.msra.mxu0 %v655
    %691 = vmatprep.subr.bf16.mxu0 0
    %692 = vmatpush1.bf16.msra.mxu0 %v656
    %693 = vmatprep.subr.bf16.mxu0 0
    %694 = vmatpush1.bf16.msra.mxu0 %v657
    %695 = vmatprep.subr.bf16.mxu0 0
    %696 = vmatpush1.bf16.msra.mxu0 %v658
    %697 = vmatprep.subr.bf16.mxu0 0
    %698 = vmatpush1.bf16.msra.mxu0 %v659
    %699 = vmatprep.subr.bf16.mxu0 0
    %700 = vmatpush1.bf16.msra.mxu0 %v660
    %701 = vmatprep.subr.bf16.mxu0 0
    %702 = vmatpush1.bf16.msra.mxu0 %v661
    %703 = vmatprep.subr.bf16.mxu0 0
    %704 = vmatpush1.bf16.msra.mxu0 %v662
    %705 = vmatprep.subr.bf16.mxu0 0
    %706 = vmatpush1.bf16.msra.mxu0 0
    %707 = vmatprep.subr.bf16.mxu0 0
    %708 = vmatpush1.bf16.msra.mxu0 0
    %709 = vmatprep.subr.bf16.mxu0 0
    %710 = vmatpush1.bf16.msra.mxu0 0
    %711 = vmatprep.subr.bf16.mxu0 0
    %712 = vmatpush1.bf16.msra.mxu0 0
    %713 = vmatprep.mubr.bf16.mxu0 %v676
    %714 = vmatmul.mubr.bf16.gmra.mrb[0].mxu0 %v568
    %v715 = vpop.f32.mrb[0].mxu0
    %v716 = vadd.f32 %v601, %v715
    %v717 = vpop.f32.mrb[0].mxu0
    %v718 = vpop.f32.mrb[0].mxu0
    %v719 = vadd.f32 %v601, %v718
    %v720 = vpop.f32.mrb[0].mxu0
    %721 = vmatprep.mubr.bf16.mxu0 %v679
    %722 = vmatmul.mubr.bf16.gmra.mrb[0].mxu0 %v570
    %v723 = vpop.f32.mrb[0].mxu0
    %v724 = vadd.f32 %v601, %v723
    %v725 = vpop.f32.mrb[0].mxu0
    %v726 = vpop.f32.mrb[0].mxu0
    %v727 = vadd.f32 %v601, %v726
    %v728 = vpop.f32.mrb[0].mxu0
    %729 = vdwg.mxu0
    %v730 = vmax.f32 %v716, 0.0
    %v731 = vmax.f32 %v719, 0.0
    %v732 = vmax.f32 %v724, 0.0
    %v733 = vmax.f32 %v727, 0.0
    %v738 = vrot.slane %v730, 7
    %v739 = vrot.slane %v731, 7
    %v740 = vsel %vm440, %v738, %v739
    %v741 = vrot.slane %v732, 7
    %v742 = vsel %vm440, %v739, %v741
    %v743 = vrot.slane %v733, 7
    %v744 = vsel %vm440, %v741, %v743
    %v749 = vsel %vm440, 0.0, %v738
    %v750 = vrot.slane %v730, 1
    %v751 = vrot.slane %v731, 1
    %v752 = vsel %vm453, %v750, %v751
    %v753 = vrot.slane %v732, 1
    %v754 = vsel %vm453, %v751, %v753
    %v755 = vrot.slane %v733, 1
    %v756 = vsel %vm453, %v753, %v755
    %v761 = vsel %vm453, %v755, 0.0
    %v762 = vsel %vm527, 0.0, %v749
    %v763 = vsel %vm528, 0.0, %v740
    %v764 = vsel %vm529, 0.0, %v742
    %v765 = vsel %vm530, 0.0, %v744
    %v766 = vsel %vm543, 0.0, %v752
    %v767 = vsel %vm544, 0.0, %v754
    %v768 = vsel %vm545, 0.0, %v756
    %v769 = vsel %vm546, 0.0, %v761
    %v770 = vpack.c.bf16 %v763, %v762
    %v771 = vpack.c.bf16 %v731, %v730
    %v772 = vpack.c.bf16 %v767, %v766
    %v773 = vpack.c.bf16 %v765, %v764
    %v774 = vpack.c.bf16 %v733, %v732
    %v775 = vpack.c.bf16 %v769, %v768
    %v776 = vld [vmem:[%s7] sm:$0xf]
    %v777 = vld [vmem:[%s7 + $0x4] sm:$0xf]
    %v778 = vld [vmem:[%s7 + $0x8] sm:$0xf]
    %v779 = vld [vmem:[%s7 + $0xc] sm:$0xf]
    %v780 = vld [vmem:[%s7 + $0x10] sm:$0xf]
    %v781 = vld [vmem:[%s7 + $0x14] sm:$0xf]
    %v782 = vld [vmem:[%s7 + $0x18] sm:$0xf]
    %v783 = vld [vmem:[%s7 + $0x1c] sm:$0xf]
    %v784 = vld [vmem:[%s7 + $0x20] sm:$0xf]
    %v785 = vld [vmem:[%s7 + $0x24] sm:$0xf]
    %v786 = vld [vmem:[%s7 + $0x28] sm:$0xf]
    %v787 = vld [vmem:[%s7 + $0x2c] sm:$0xf]
    %v788 = vld [vmem:[%s7 + $0x30] sm:$0xf]
    %v789 = vld [vmem:[%s7 + $0x34] sm:$0xf]
    %v790 = vld [vmem:[%s7 + $0x38] sm:$0xf]
    %v791 = vld [vmem:[%s7 + $0x3c] sm:$0xf]
    %v792 = vld [vmem:[%s7 + $0x40] sm:$0xf]
    %v793 = vld [vmem:[%s7 + $0x44] sm:$0xf]
    %v794 = vld [vmem:[%s7 + $0x48] sm:$0xf]
    %v795 = vld [vmem:[%s7 + $0x4c] sm:$0xf]
    %v796 = vld [vmem:[%s7 + $0x50] sm:$0xf]
    %v797 = vld [vmem:[%s7 + $0x54] sm:$0xf]
    %v798 = vld [vmem:[%s7 + $0x58] sm:$0xf]
    %v799 = vld [vmem:[%s7 + $0x5c] sm:$0xf]
    %v800 = vld [vmem:[%s7 + $0x60] sm:$0xf]
    %v801 = vld [vmem:[%s7 + $0x64] sm:$0xf]
    %v802 = vld [vmem:[%s7 + $0x68] sm:$0xf]
    %v803 = vld [vmem:[%s7 + $0x6c] sm:$0xf]
    %v804 = vld [vmem:[%s7 + $0x70] sm:$0xf]
    %v805 = vld [vmem:[%s7 + $0x74] sm:$0xf]
    %v806 = vld [vmem:[%s7 + $0x78] sm:$0xf]
    %v807 = vld [vmem:[%s7 + $0x7c] sm:$0xf]
    %v808 = vld [vmem:[%s7 + $0x80] sm:$0xf]
    %v809 = vld [vmem:[%s7 + $0x84] sm:$0xf]
    %v810 = vld [vmem:[%s7 + $0x88] sm:$0xf]
    %v811 = vld [vmem:[%s7 + $0x8c] sm:$0xf]
    %v812 = vld [vmem:[%s7 + $0x90] sm:$0xf]
    %v813 = vld [vmem:[%s7 + $0x94] sm:$0xf]
    %v814 = vld [vmem:[%s7 + $0x98] sm:$0xf]
    %v815 = vld [vmem:[%s7 + $0x9c] sm:$0xf]
    %v816 = vld [vmem:[%s7 + $0xa0] sm:$0xf]
    %v817 = vld [vmem:[%s7 + $0xa4] sm:$0xf]
    %v818 = vld [vmem:[%s7 + $0xa8] sm:$0xf]
    %v819 = vld [vmem:[%s7 + $0xac] sm:$0xf]
    %v820 = vld [vmem:[%s7 + $0xb0] sm:$0xf]
    %v821 = vld [vmem:[%s7 + $0xb4] sm:$0xf]
    %v822 = vld [vmem:[%s7 + $0xb8] sm:$0xf]
    %v823 = vld [vmem:[%s7 + $0xbc] sm:$0xf]
    %v824 = vld [vmem:[#allocation6] sm:$0x1]
    %v826 = vlaneseq
    %v827 = vshrl.u32 %v826, 7
    %v828 = vsub.s32 0, %v827
    %v829 = vrot.slane %v824, %v828
    %v879 = vunpack.c.l.b16 %v776
    %v880 = vunpack.c.l.b16 %v777
    %v881 = vunpack.c.l.b16 %v778
    %v882 = vunpack.c.l.b16 %v779
    %v883 = vunpack.c.l.b16 %v780
    %v884 = vunpack.c.l.b16 %v781
    %v885 = vunpack.c.l.b16 %v782
    %v886 = vunpack.c.l.b16 %v783
    %v887 = vunpack.c.l.b16 %v784
    %v888 = vunpack.c.l.b16 %v785
    %v889 = vunpack.c.l.b16 %v786
    %v890 = vunpack.c.l.b16 %v787
    %v891 = vunpack.c.l.b16 %v788
    %v892 = vunpack.c.l.b16 %v789
    %v893 = vunpack.c.l.b16 %v790
    %v894 = vunpack.c.l.b16 %v791
    %v895 = vunpack.c.l.b16 %v792
    %v896 = vunpack.c.l.b16 %v793
    %v897 = vunpack.c.l.b16 %v794
    %v898 = vunpack.c.l.b16 %v795
    %v899 = vunpack.c.l.b16 %v796
    %v900 = vunpack.c.l.b16 %v797
    %v901 = vunpack.c.l.b16 %v798
    %v902 = vunpack.c.l.b16 %v799
    %v903 = vunpack.c.l.b16 %v800
    %v904 = vunpack.c.l.b16 %v801
    %v905 = vunpack.c.l.b16 %v802
    %v906 = vunpack.c.l.b16 %v803
    %v907 = vunpack.c.l.b16 %v804
    %v908 = vunpack.c.l.b16 %v805
    %v909 = vunpack.c.l.b16 %v806
    %v910 = vunpack.c.l.b16 %v807
    %v911 = vunpack.c.l.b16 %v808
    %v912 = vunpack.c.l.b16 %v809
    %v913 = vunpack.c.l.b16 %v810
    %v914 = vunpack.c.l.b16 %v811
    %v915 = vunpack.c.l.b16 %v812
    %v916 = vunpack.c.l.b16 %v813
    %v917 = vunpack.c.l.b16 %v814
    %v918 = vunpack.c.l.b16 %v815
    %v919 = vunpack.c.l.b16 %v816
    %v920 = vunpack.c.l.b16 %v817
    %v921 = vunpack.c.l.b16 %v818
    %v922 = vunpack.c.l.b16 %v819
    %v923 = vunpack.c.l.b16 %v820
    %v924 = vunpack.c.l.b16 %v821
    %v925 = vunpack.c.l.b16 %v822
    %v926 = vunpack.c.l.b16 %v823
    %v927 = vpack.c.b16 %v880, %v879
    %v928 = vpack.c.b16 %v882, %v881
    %v929 = vpack.c.b16 %v884, %v883
    %v930 = vpack.c.b16 %v886, %v885
    %v931 = vpack.c.b16 %v888, %v887
    %v932 = vpack.c.b16 %v890, %v889
    %v933 = vpack.c.b16 %v892, %v891
    %v934 = vpack.c.b16 %v894, %v893
    %v935 = vpack.c.b16 %v896, %v895
    %v936 = vpack.c.b16 %v898, %v897
    %v937 = vpack.c.b16 %v900, %v899
    %v938 = vpack.c.b16 %v902, %v901
    %v939 = vpack.c.b16 %v904, %v903
    %v940 = vpack.c.b16 %v906, %v905
    %v941 = vpack.c.b16 %v908, %v907
    %v942 = vpack.c.b16 %v910, %v909
    %v943 = vpack.c.b16 %v912, %v911
    %v944 = vpack.c.b16 %v914, %v913
    %v945 = vpack.c.b16 %v916, %v915
    %v946 = vpack.c.b16 %v918, %v917
    %v947 = vpack.c.b16 %v920, %v919
    %v948 = vpack.c.b16 %v922, %v921
    %v949 = vpack.c.b16 %v924, %v923
    %v950 = vpack.c.b16 %v926, %v925
    %975 = vmatprep.subr.bf16.mxu0 0
    %976 = vmatpush1.bf16.msra.mxu0 %v927
    %977 = vmatprep.subr.bf16.mxu0 0
    %978 = vmatpush1.bf16.msra.mxu0 %v928
    %979 = vmatprep.subr.bf16.mxu0 0
    %980 = vmatpush1.bf16.msra.mxu0 %v929
    %981 = vmatprep.subr.bf16.mxu0 0
    %982 = vmatpush1.bf16.msra.mxu0 %v930
    %983 = vmatprep.subr.bf16.mxu0 0
    %984 = vmatpush1.bf16.msra.mxu0 %v931
    %985 = vmatprep.subr.bf16.mxu0 0
    %986 = vmatpush1.bf16.msra.mxu0 %v932
    %987 = vmatprep.subr.bf16.mxu0 0
    %988 = vmatpush1.bf16.msra.mxu0 %v933
    %989 = vmatprep.subr.bf16.mxu0 0
    %990 = vmatpush1.bf16.msra.mxu0 %v934
    %991 = vmatprep.subr.bf16.mxu0 0
    %992 = vmatpush1.bf16.msra.mxu0 %v935
    %993 = vmatprep.subr.bf16.mxu0 0
    %994 = vmatpush1.bf16.msra.mxu0 %v936
    %995 = vmatprep.subr.bf16.mxu0 0
    %996 = vmatpush1.bf16.msra.mxu0 %v937
    %997 = vmatprep.subr.bf16.mxu0 0
    %998 = vmatpush1.bf16.msra.mxu0 %v938
    %999 = vmatprep.subr.bf16.mxu0 0
    %1000 = vmatpush1.bf16.msra.mxu0 %v939
    %1001 = vmatprep.subr.bf16.mxu0 0
    %1002 = vmatpush1.bf16.msra.mxu0 %v940
    %1003 = vmatprep.subr.bf16.mxu0 0
    %1004 = vmatpush1.bf16.msra.mxu0 %v941
    %1005 = vmatprep.subr.bf16.mxu0 0
    %1006 = vmatpush1.bf16.msra.mxu0 %v942
    %1007 = vmatprep.mubr.bf16.mxu0 %v771
    %1008 = vmatmul.mubr.bf16.gmra.mrb[0].mxu0 %v770
    %v1009 = vpop.f32.mrb[0].mxu0
    %v1010 = vadd.f32 %v829, %v1009
    %v1011 = vpop.f32.mrb[0].mxu0
    %v1012 = vpop.f32.mrb[0].mxu0
    %v1013 = vadd.f32 %v829, %v1012
    %v1014 = vpop.f32.mrb[0].mxu0
    %1015 = vmatprep.mubr.bf16.mxu0 %v774
    %1016 = vmatmul.mubr.bf16.gmra.mrb[0].mxu0 %v773
    %v1017 = vpop.f32.mrb[0].mxu0
    %v1018 = vadd.f32 %v829, %v1017
    %v1019 = vpop.f32.mrb[0].mxu0
    %v1020 = vpop.f32.mrb[0].mxu0
    %v1021 = vadd.f32 %v829, %v1020
    %v1022 = vpop.f32.mrb[0].mxu0
    %1023 = vdwg.mxu0
    %1024 = vmatprep.subr.bf16.mxu0 0
    %1025 = vmatpush1.bf16.msra.mxu0 %v943
    %1026 = vmatprep.subr.bf16.mxu0 0
    %1027 = vmatpush1.bf16.msra.mxu0 %v944
    %1028 = vmatprep.subr.bf16.mxu0 0
    %1029 = vmatpush1.bf16.msra.mxu0 %v945
    %1030 = vmatprep.subr.bf16.mxu0 0
    %1031 = vmatpush1.bf16.msra.mxu0 %v946
    %1032 = vmatprep.subr.bf16.mxu0 0
    %1033 = vmatpush1.bf16.msra.mxu0 %v947
    %1034 = vmatprep.subr.bf16.mxu0 0
    %1035 = vmatpush1.bf16.msra.mxu0 %v948
    %1036 = vmatprep.subr.bf16.mxu0 0
    %1037 = vmatpush1.bf16.msra.mxu0 %v949
    %1038 = vmatprep.subr.bf16.mxu0 0
    %1039 = vmatpush1.bf16.msra.mxu0 %v950
    %1040 = vmatprep.subr.bf16.mxu0 0
    %1041 = vmatpush1.bf16.msra.mxu0 0
    %1042 = vmatprep.subr.bf16.mxu0 0
    %1043 = vmatpush1.bf16.msra.mxu0 0
    %1044 = vmatprep.subr.bf16.mxu0 0
    %1045 = vmatpush1.bf16.msra.mxu0 0
    %1046 = vmatprep.subr.bf16.mxu0 0
    %1047 = vmatpush1.bf16.msra.mxu0 0
    %1048 = vmatprep.subr.bf16.mxu0 0
    %1049 = vmatpush1.bf16.msra.mxu0 0
    %1050 = vmatprep.subr.bf16.mxu0 0
    %1051 = vmatpush1.bf16.msra.mxu0 0
    %1052 = vmatprep.subr.bf16.mxu0 0
    %1053 = vmatpush1.bf16.msra.mxu0 0
    %1054 = vmatprep.subr.bf16.mxu0 0
    %1055 = vmatpush1.bf16.msra.mxu0 0
    %1056 = vmatprep.mubr.bf16.mxu0 0
    %1057 = vmatmul.mubr.bf16.gmra.mrb[0].mxu0 %v772
    %v1058 = vpop.f32.mrb[0].mxu0
    %v1059 = vadd.f32 %v1010, %v1058
    %v1060 = vpop.f32.mrb[0].mxu0
    %v1061 = vpop.f32.mrb[0].mxu0
    %v1062 = vadd.f32 %v1013, %v1061
    %v1063 = vpop.f32.mrb[0].mxu0
    %1064 = vmatprep.mubr.bf16.mxu0 0
    %1065 = vmatmul.mubr.bf16.gmra.mrb[0].mxu0 %v775
    %v1066 = vpop.f32.mrb[0].mxu0
    %v1067 = vadd.f32 %v1018, %v1066
    %v1068 = vpop.f32.mrb[0].mxu0
    %v1069 = vpop.f32.mrb[0].mxu0
    %v1070 = vadd.f32 %v1021, %v1069
    %v1071 = vpop.f32.mrb[0].mxu0
    %1072 = vdwg.mxu0
    %v1073 = vmax.f32 %v1059, 0.0
    %v1074 = vmax.f32 %v1062, 0.0
    %v1075 = vmax.f32 %v1067, 0.0
    %v1076 = vmax.f32 %v1070, 0.0
    %v1077 = vpack.c.bf16 %v1074, %v1073
    %v1078 = vpack.c.bf16 %v1076, %v1075
    %v1079 = vld [vmem:[#allocation7] sm:$0xf]
    %v1080 = vld [vmem:[#allocation7 + $0x4] sm:$0xf]
    %v1083 = vunpack.c.l.b16 %v1079
    %v1084 = vunpack.c.l.b16 %v1080
    %v1085 = vpack.c.b16 %v1084, %v1083
    %vm1086 = vcmask 261120
    %v1088 = vsel %vm1086, %v1085, 0
    %1090 = vmatprep.subr.bf16.mxu0 0
    %1091 = vmatpush1.bf16.msra.mxu0 %v1077
    %1092 = vmatprep.subr.bf16.mxu0 0
    %1093 = vmatpush1.bf16.msra.mxu0 %v1078
    %1094 = vmatprep.subr.bf16.mxu0 0
    %1095 = vmatpush1.bf16.msra.mxu0 0
    %1096 = vmatprep.subr.bf16.mxu0 0
    %1097 = vmatpush1.bf16.msra.mxu0 0
    %1098 = vmatprep.subr.bf16.mxu0 0
    %1099 = vmatpush1.bf16.msra.mxu0 0
    %1100 = vmatprep.subr.bf16.mxu0 0
    %1101 = vmatpush1.bf16.msra.mxu0 0
    %1102 = vmatprep.subr.bf16.mxu0 0
    %1103 = vmatpush1.bf16.msra.mxu0 0
    %1104 = vmatprep.subr.bf16.mxu0 0
    %1105 = vmatpush1.bf16.msra.mxu0 0
    %1106 = vmatprep.subr.bf16.mxu0 0
    %1107 = vmatpush1.bf16.msra.mxu0 0
    %1108 = vmatprep.subr.bf16.mxu0 0
    %1109 = vmatpush1.bf16.msra.mxu0 0
    %1110 = vmatprep.subr.bf16.mxu0 0
    %1111 = vmatpush1.bf16.msra.mxu0 0
    %1112 = vmatprep.subr.bf16.mxu0 0
    %1113 = vmatpush1.bf16.msra.mxu0 0
    %1114 = vmatprep.subr.bf16.mxu0 0
    %1115 = vmatpush1.bf16.msra.mxu0 0
    %1116 = vmatprep.subr.bf16.mxu0 0
    %1117 = vmatpush1.bf16.msra.mxu0 0
    %1118 = vmatprep.subr.bf16.mxu0 0
    %1119 = vmatpush1.bf16.msra.mxu0 0
    %1120 = vmatprep.subr.bf16.mxu0 0
    %1121 = vmatpush1.bf16.msra.mxu0 0
    %1122 = vmatprep.mubr.bf16.mxu0 0
    %1123 = vmatmul.mubr.bf16.gmra.mrb[0].mxu0 %v1088
    %v1124 = vpop.f32.mrb[0].mxu0
    %v1125 = vadd.f32 0.0, %v1124
    %v1126 = vpop.f32.mrb[0].mxu0
    %v1127 = vpop.f32.mrb[0].mxu0
    %v1128 = vadd.f32 0.0, %v1127
    %v1129 = vpop.f32.mrb[0].mxu0
    %1130 = vdwg.mxu0
    %s1131 = scalar_lea.vmem [#allocation7], 8
    %v1132 = vld [vmem:[%s1131] sm:$0xf]
    %v1133 = vld [vmem:[%s1131 + $0x4] sm:$0xf]
    %v1136 = vunpack.c.l.b16 %v1132
    %v1137 = vunpack.c.l.b16 %v1133
    %v1138 = vpack.c.b16 %v1137, %v1136
    %v1140 = vsel %vm1086, %v1138, 0
    %1142 = vmatprep.subr.bf16.mxu0 0
    %1143 = vmatpush1.bf16.msra.mxu0 %v1077
    %1144 = vmatprep.subr.bf16.mxu0 0
    %1145 = vmatpush1.bf16.msra.mxu0 %v1078
    %1146 = vmatprep.subr.bf16.mxu0 0
    %1147 = vmatpush1.bf16.msra.mxu0 0
    %1148 = vmatprep.subr.bf16.mxu0 0
    %1149 = vmatpush1.bf16.msra.mxu0 0
    %1150 = vmatprep.subr.bf16.mxu0 0
    %1151 = vmatpush1.bf16.msra.mxu0 0
    %1152 = vmatprep.subr.bf16.mxu0 0
    %1153 = vmatpush1.bf16.msra.mxu0 0
    %1154 = vmatprep.subr.bf16.mxu0 0
    %1155 = vmatpush1.bf16.msra.mxu0 0
    %1156 = vmatprep.subr.bf16.mxu0 0
    %1157 = vmatpush1.bf16.msra.mxu0 0
    %1158 = vmatprep.subr.bf16.mxu0 0
    %1159 = vmatpush1.bf16.msra.mxu0 0
    %1160 = vmatprep.subr.bf16.mxu0 0
    %1161 = vmatpush1.bf16.msra.mxu0 0
    %1162 = vmatprep.subr.bf16.mxu0 0
    %1163 = vmatpush1.bf16.msra.mxu0 0
    %1164 = vmatprep.subr.bf16.mxu0 0
    %1165 = vmatpush1.bf16.msra.mxu0 0
    %1166 = vmatprep.subr.bf16.mxu0 0
    %1167 = vmatpush1.bf16.msra.mxu0 0
    %1168 = vmatprep.subr.bf16.mxu0 0
    %1169 = vmatpush1.bf16.msra.mxu0 0
    %1170 = vmatprep.subr.bf16.mxu0 0
    %1171 = vmatpush1.bf16.msra.mxu0 0
    %1172 = vmatprep.subr.bf16.mxu0 0
    %1173 = vmatpush1.bf16.msra.mxu0 0
    %1174 = vmatprep.mubr.bf16.mxu0 0
    %1175 = vmatmul.mubr.bf16.gmra.mrb[0].mxu0 %v1140
    %v1176 = vpop.f32.mrb[0].mxu0
    %v1177 = vadd.f32 0.0, %v1176
    %v1178 = vpop.f32.mrb[0].mxu0
    %v1179 = vpop.f32.mrb[0].mxu0
    %v1180 = vadd.f32 0.0, %v1179
    %v1181 = vpop.f32.mrb[0].mxu0
    %1182 = vdwg.mxu0
    %v1183 = vmax.f32 %v1125, %v1177
    %v1184 = vmax.f32 %v1128, %v1180
    %v1185 = vpack.c.bf16 %v1184, %v1183
    %v1186 = vld [vmem:[%s13] sm:$0xf]
    %v1187 = vld [vmem:[%s13 + $0x4] sm:$0xf]
    %v1188 = vld [vmem:[%s13 + $0x8] sm:$0xf]
    %v1189 = vld [vmem:[%s13 + $0xc] sm:$0xf]
    %v1190 = vld [vmem:[%s13 + $0x10] sm:$0xf]
    %v1191 = vld [vmem:[%s13 + $0x14] sm:$0xf]
    %v1192 = vld [vmem:[%s13 + $0x18] sm:$0xf]
    %v1193 = vld [vmem:[%s13 + $0x1c] sm:$0xf]
    %v1194 = vld [vmem:[%s13 + $0x20] sm:$0xf]
    %v1195 = vld [vmem:[%s13 + $0x24] sm:$0xf]
    %v1196 = vld [vmem:[%s13 + $0x28] sm:$0xf]
    %v1197 = vld [vmem:[%s13 + $0x2c] sm:$0xf]
    %v1198 = vld [vmem:[%s13 + $0x30] sm:$0xf]
    %v1199 = vld [vmem:[%s13 + $0x34] sm:$0xf]
    %v1200 = vld [vmem:[%s13 + $0x38] sm:$0xf]
    %v1201 = vld [vmem:[%s13 + $0x3c] sm:$0xf]
    %v1218 = vunpack.c.l.b16 %v1186
    %v1219 = vunpack.c.l.b16 %v1187
    %v1220 = vunpack.c.l.b16 %v1188
    %v1221 = vunpack.c.l.b16 %v1189
    %v1222 = vunpack.c.l.b16 %v1190
    %v1223 = vunpack.c.l.b16 %v1191
    %v1224 = vunpack.c.l.b16 %v1192
    %v1225 = vunpack.c.l.b16 %v1193
    %v1226 = vunpack.c.l.b16 %v1194
    %v1227 = vunpack.c.l.b16 %v1195
    %v1228 = vunpack.c.l.b16 %v1196
    %v1229 = vunpack.c.l.b16 %v1197
    %v1230 = vunpack.c.l.b16 %v1198
    %v1231 = vunpack.c.l.b16 %v1199
    %v1232 = vunpack.c.l.b16 %v1200
    %v1233 = vunpack.c.l.b16 %v1201
    %v1234 = vpack.c.b16 %v1219, %v1218
    %v1235 = vpack.c.b16 %v1221, %v1220
    %v1236 = vpack.c.b16 %v1223, %v1222
    %v1237 = vpack.c.b16 %v1225, %v1224
    %v1238 = vpack.c.b16 %v1227, %v1226
    %v1239 = vpack.c.b16 %v1229, %v1228
    %v1240 = vpack.c.b16 %v1231, %v1230
    %v1241 = vpack.c.b16 %v1233, %v1232
    %1250 = vmatprep.subr.bf16.mxu0 0
    %1251 = vmatpush1.bf16.msra.mxu0 %v1234
    %1252 = vmatprep.subr.bf16.mxu0 0
    %1253 = vmatpush1.bf16.msra.mxu0 %v1235
    %1254 = vmatprep.subr.bf16.mxu0 0
    %1255 = vmatpush1.bf16.msra.mxu0 %v1236
    %1256 = vmatprep.subr.bf16.mxu0 0
    %1257 = vmatpush1.bf16.msra.mxu0 %v1237
    %1258 = vmatprep.subr.bf16.mxu0 0
    %1259 = vmatpush1.bf16.msra.mxu0 %v1238
    %1260 = vmatprep.subr.bf16.mxu0 0
    %1261 = vmatpush1.bf16.msra.mxu0 %v1239
    %1262 = vmatprep.subr.bf16.mxu0 0
    %1263 = vmatpush1.bf16.msra.mxu0 %v1240
    %1264 = vmatprep.subr.bf16.mxu0 0
    %1265 = vmatpush1.bf16.msra.mxu0 %v1241
    %1266 = vmatprep.subr.bf16.mxu0 0
    %1267 = vmatpush1.bf16.msra.mxu0 0
    %1268 = vmatprep.subr.bf16.mxu0 0
    %1269 = vmatpush1.bf16.msra.mxu0 0
    %1270 = vmatprep.subr.bf16.mxu0 0
    %1271 = vmatpush1.bf16.msra.mxu0 0
    %1272 = vmatprep.subr.bf16.mxu0 0
    %1273 = vmatpush1.bf16.msra.mxu0 0
    %1274 = vmatprep.subr.bf16.mxu0 0
    %1275 = vmatpush1.bf16.msra.mxu0 0
    %1276 = vmatprep.subr.bf16.mxu0 0
    %1277 = vmatpush1.bf16.msra.mxu0 0
    %1278 = vmatprep.subr.bf16.mxu0 0
    %1279 = vmatpush1.bf16.msra.mxu0 0
    %1280 = vmatprep.subr.bf16.mxu0 0
    %1281 = vmatpush1.bf16.msra.mxu0 0
    %1282 = vmatprep.mubr.bf16.mxu0 0
    %1283 = vmatmul.mubr.bf16.gmra.mrb[0].mxu0 %v1185
    %v1284 = vpop.f32.mrb[0].mxu0
    %v1285 = vadd.f32 0.0, %v1284
    %v1286 = vpop.f32.mrb[0].mxu0
    %v1287 = vpop.f32.mrb[0].mxu0
    %v1288 = vadd.f32 0.0, %v1287
    %v1289 = vpop.f32.mrb[0].mxu0
    %1290 = vdwg.mxu0
    %s1291 = scalar_lea.vmem %s13, 64
    %v1292 = vld [vmem:[%s1291] sm:$0xf]
    %v1293 = vld [vmem:[%s1291 + $0x4] sm:$0xf]
    %v1294 = vld [vmem:[%s1291 + $0x8] sm:$0xf]
    %v1295 = vld [vmem:[%s1291 + $0xc] sm:$0xf]
    %v1296 = vld [vmem:[%s1291 + $0x10] sm:$0xf]
    %v1297 = vld [vmem:[%s1291 + $0x14] sm:$0xf]
    %v1298 = vld [vmem:[%s1291 + $0x18] sm:$0xf]
    %v1299 = vld [vmem:[%s1291 + $0x1c] sm:$0xf]
    %v1300 = vld [vmem:[%s1291 + $0x20] sm:$0xf]
    %v1301 = vld [vmem:[%s1291 + $0x24] sm:$0xf]
    %v1302 = vld [vmem:[%s1291 + $0x28] sm:$0xf]
    %v1303 = vld [vmem:[%s1291 + $0x2c] sm:$0xf]
    %v1304 = vld [vmem:[%s1291 + $0x30] sm:$0xf]
    %v1305 = vld [vmem:[%s1291 + $0x34] sm:$0xf]
    %v1306 = vld [vmem:[%s1291 + $0x38] sm:$0xf]
    %v1307 = vld [vmem:[%s1291 + $0x3c] sm:$0xf]
    %v1324 = vunpack.c.l.b16 %v1292
    %v1325 = vunpack.c.l.b16 %v1293
    %v1326 = vunpack.c.l.b16 %v1294
    %v1327 = vunpack.c.l.b16 %v1295
    %v1328 = vunpack.c.l.b16 %v1296
    %v1329 = vunpack.c.l.b16 %v1297
    %v1330 = vunpack.c.l.b16 %v1298
    %v1331 = vunpack.c.l.b16 %v1299
    %v1332 = vunpack.c.l.b16 %v1300
    %v1333 = vunpack.c.l.b16 %v1301
    %v1334 = vunpack.c.l.b16 %v1302
    %v1335 = vunpack.c.l.b16 %v1303
    %v1336 = vunpack.c.l.b16 %v1304
    %v1337 = vunpack.c.l.b16 %v1305
    %v1338 = vunpack.c.l.b16 %v1306
    %v1339 = vunpack.c.l.b16 %v1307
    %v1340 = vpack.c.b16 %v1325, %v1324
    %v1341 = vpack.c.b16 %v1327, %v1326
    %v1342 = vpack.c.b16 %v1329, %v1328
    %v1343 = vpack.c.b16 %v1331, %v1330
    %v1344 = vpack.c.b16 %v1333, %v1332
    %v1345 = vpack.c.b16 %v1335, %v1334
    %v1346 = vpack.c.b16 %v1337, %v1336
    %v1347 = vpack.c.b16 %v1339, %v1338
    %1356 = vmatprep.subr.bf16.mxu0 0
    %1357 = vmatpush1.bf16.msra.mxu0 %v1340
    %1358 = vmatprep.subr.bf16.mxu0 0
    %1359 = vmatpush1.bf16.msra.mxu0 %v1341
    %1360 = vmatprep.subr.bf16.mxu0 0
    %1361 = vmatpush1.bf16.msra.mxu0 %v1342
    %1362 = vmatprep.subr.bf16.mxu0 0
    %1363 = vmatpush1.bf16.msra.mxu0 %v1343
    %1364 = vmatprep.subr.bf16.mxu0 0
    %1365 = vmatpush1.bf16.msra.mxu0 %v1344
    %1366 = vmatprep.subr.bf16.mxu0 0
    %1367 = vmatpush1.bf16.msra.mxu0 %v1345
    %1368 = vmatprep.subr.bf16.mxu0 0
    %1369 = vmatpush1.bf16.msra.mxu0 %v1346
    %1370 = vmatprep.subr.bf16.mxu0 0
    %1371 = vmatpush1.bf16.msra.mxu0 %v1347
    %1372 = vmatprep.subr.bf16.mxu0 0
    %1373 = vmatpush1.bf16.msra.mxu0 0
    %1374 = vmatprep.subr.bf16.mxu0 0
    %1375 = vmatpush1.bf16.msra.mxu0 0
    %1376 = vmatprep.subr.bf16.mxu0 0
    %1377 = vmatpush1.bf16.msra.mxu0 0
    %1378 = vmatprep.subr.bf16.mxu0 0
    %1379 = vmatpush1.bf16.msra.mxu0 0
    %1380 = vmatprep.subr.bf16.mxu0 0
    %1381 = vmatpush1.bf16.msra.mxu0 0
    %1382 = vmatprep.subr.bf16.mxu0 0
    %1383 = vmatpush1.bf16.msra.mxu0 0
    %1384 = vmatprep.subr.bf16.mxu0 0
    %1385 = vmatpush1.bf16.msra.mxu0 0
    %1386 = vmatprep.subr.bf16.mxu0 0
    %1387 = vmatpush1.bf16.msra.mxu0 0
    %1388 = vmatprep.mubr.bf16.mxu0 0
    %1389 = vmatmul.mubr.bf16.gmra.mrb[0].mxu0 %v1185
    %v1390 = vpop.f32.mrb[0].mxu0
    %v1391 = vadd.f32 0.0, %v1390
    %v1392 = vpop.f32.mrb[0].mxu0
    %v1393 = vpop.f32.mrb[0].mxu0
    %v1394 = vadd.f32 0.0, %v1393
    %v1395 = vpop.f32.mrb[0].mxu0
    %1396 = vdwg.mxu0
    %v1397 = vmax.f32 %v1285, %v1391
    %v1398 = vmax.f32 %v1288, %v1394
    %v1401 = vrot.slane %v1397, 7
    %v1402 = vrot.slane %v1398, 7
    %v1403 = vsel %vm440, %v1401, %v1402
    %v1406 = vsel %vm440, 0.0, %v1401
    %v1407 = vrot.slane %v1397, 1
    %v1408 = vrot.slane %v1398, 1
    %v1409 = vsel %vm453, %v1407, %v1408
    %v1412 = vsel %vm453, %v1408, 0.0
    %vm1413 = vcmp.lt.s32.totalorder %v467, 0
    %v1414 = vsub.s32 0, %v467
    %v1415 = vsel %vm1413, %v1414, %v467
    %v1416 = vshrl.u32 %v1415, 3
    %v1417 = vand.u32 %v1415, 7
    %v1418 = vsub.s32 0, %v1417
    %v1419 = vsel %vm1413, %v1418, %v1417
    %vm1420 = vcmp.lt.s32.totalorder %v468, 0
    %v1421 = vsub.s32 0, %v468
    %v1422 = vsel %vm1420, %v1421, %v468
    %v1423 = vshrl.u32 %v1422, 3
    %v1424 = vand.u32 %v1422, 7
    %v1425 = vsub.s32 0, %v1424
    %v1426 = vsel %vm1420, %v1425, %v1424
    %vm1427 = vcmp.ne.s32.totalorder %v1419, 0
    %vm1428 = vcmp.ne.s32.totalorder %v1426, 0
    %vm1429 = vcmp.lt.s32.totalorder %v1419, 0
    %vm1430 = vcmp.lt.s32.totalorder %v1426, 0
    %vm1431 = vmand %vm1429, %vm1427
    %vm1432 = vmand %vm1430, %vm1428
    %v1433 = vadd.s32 %v1419, 8
    %v1434 = vadd.s32 %v1426, 8
    %v1435 = vsel %vm1431, %v1433, %v1419
    %v1436 = vsel %vm1432, %v1434, %v1426
    %vm1437 = vcmp.eq.s32.totalorder %v1435, 0
    %vm1438 = vcmp.eq.s32.totalorder %v1436, 0
    %v1439 = vsel %vm1437, 1, 0
    %v1440 = vsel %vm1438, 1, 0
    %vm1441 = vcmp.eq.s32.totalorder %v1439, 1
    %vm1442 = vcmp.eq.s32.totalorder %v1440, 1
    %v1443 = vsel %vm1441, 0.0, %v1406
    %v1444 = vsel %vm1442, 0.0, %v1403
    %vm1445 = vcmp.eq.s32.totalorder %v1435, 7
    %vm1446 = vcmp.eq.s32.totalorder %v1436, 7
    %v1447 = vsel %vm1445, 1, 0
    %v1448 = vsel %vm1446, 1, 0
    %vm1449 = vcmp.eq.s32.totalorder %v1447, 1
    %vm1450 = vcmp.eq.s32.totalorder %v1448, 1
    %v1451 = vsel %vm1449, 0.0, %v1409
    %v1452 = vsel %vm1450, 0.0, %v1412
    %1453 = vrot.lane.b32.xlu0 %v1397, 64
    %v1454 = vpop.permute.xlu0 %1453
    %1455 = vrot.lane.b32.xlu0 %v1398, 64
    %v1456 = vpop.permute.xlu0 %1455
    %v1459 = vsel %vm563, %v1443, %v1454
    %v1460 = vsel %vm563, %v1444, %v1456
    %v1461 = vpack.c.bf16 %v1460, %v1459
    %v1462 = vpack.c.bf16 %v1452, %v1451
    %v1463 = vld [vmem:[#allocation9] sm:$0xf]
    %v1464 = vld [vmem:[#allocation9 + $0x4] sm:$0xf]
    %v1465 = vld [vmem:[#allocation9 + $0x8] sm:$0xf]
    %v1466 = vld [vmem:[#allocation9 + $0xc] sm:$0xf]
    %v1467 = vld [vmem:[#allocation9 + $0x10] sm:$0xf]
    %v1468 = vld [vmem:[#allocation9 + $0x14] sm:$0xf]
    %v1469 = vld [vmem:[#allocation9 + $0x18] sm:$0xf]
    %v1470 = vld [vmem:[#allocation9 + $0x1c] sm:$0xf]
    %v1471 = vld [vmem:[#allocation9 + $0x20] sm:$0xf]
    %v1472 = vld [vmem:[#allocation9 + $0x24] sm:$0xf]
    %v1473 = vld [vmem:[#allocation9 + $0x28] sm:$0xf]
    %v1474 = vld [vmem:[#allocation9 + $0x2c] sm:$0xf]
    %v1475 = vld [vmem:[#allocation9 + $0x30] sm:$0xf]
    %v1476 = vld [vmem:[#allocation9 + $0x34] sm:$0xf]
    %v1477 = vld [vmem:[#allocation9 + $0x38] sm:$0xf]
    %v1478 = vld [vmem:[#allocation9 + $0x3c] sm:$0xf]
    %v1479 = vld [vmem:[#allocation9 + $0x40] sm:$0xf]
    %v1480 = vld [vmem:[#allocation9 + $0x44] sm:$0xf]
    %v1481 = vld [vmem:[#allocation9 + $0x48] sm:$0xf]
    %v1482 = vld [vmem:[#allocation9 + $0x4c] sm:$0xf]
    %v1483 = vld [vmem:[#allocation9 + $0x50] sm:$0xf]
    %v1484 = vld [vmem:[#allocation9 + $0x54] sm:$0xf]
    %v1485 = vld [vmem:[#allocation9 + $0x58] sm:$0xf]
    %v1486 = vld [vmem:[#allocation9 + $0x5c] sm:$0xf]
    %v1487 = vld [vmem:[#allocation10] sm:$0x1]
    %v1489 = vlaneseq
    %v1490 = vshrl.u32 %v1489, 7
    %v1491 = vsub.s32 0, %v1490
    %v1492 = vrot.slane %v1487, %v1491
    %v1518 = vunpack.c.l.b16 %v1463
    %v1519 = vunpack.c.l.b16 %v1464
    %v1520 = vunpack.c.l.b16 %v1465
    %v1521 = vunpack.c.l.b16 %v1466
    %v1522 = vunpack.c.l.b16 %v1467
    %v1523 = vunpack.c.l.b16 %v1468
    %v1524 = vunpack.c.l.b16 %v1469
    %v1525 = vunpack.c.l.b16 %v1470
    %v1526 = vunpack.c.l.b16 %v1471
    %v1527 = vunpack.c.l.b16 %v1472
    %v1528 = vunpack.c.l.b16 %v1473
    %v1529 = vunpack.c.l.b16 %v1474
    %v1530 = vunpack.c.l.b16 %v1475
    %v1531 = vunpack.c.l.b16 %v1476
    %v1532 = vunpack.c.l.b16 %v1477
    %v1533 = vunpack.c.l.b16 %v1478
    %v1534 = vunpack.c.l.b16 %v1479
    %v1535 = vunpack.c.l.b16 %v1480
    %v1536 = vunpack.c.l.b16 %v1481
    %v1537 = vunpack.c.l.b16 %v1482
    %v1538 = vunpack.c.l.b16 %v1483
    %v1539 = vunpack.c.l.b16 %v1484
    %v1540 = vunpack.c.l.b16 %v1485
    %v1541 = vunpack.c.l.b16 %v1486
    %v1542 = vpack.c.b16 %v1519, %v1518
    %v1543 = vpack.c.b16 %v1521, %v1520
    %v1544 = vpack.c.b16 %v1523, %v1522
    %v1545 = vpack.c.b16 %v1525, %v1524
    %v1546 = vpack.c.b16 %v1527, %v1526
    %v1547 = vpack.c.b16 %v1529, %v1528
    %v1548 = vpack.c.b16 %v1531, %v1530
    %v1549 = vpack.c.b16 %v1533, %v1532
    %v1550 = vpack.c.b16 %v1535, %v1534
    %v1551 = vpack.c.b16 %v1537, %v1536
    %v1552 = vpack.c.b16 %v1539, %v1538
    %v1553 = vpack.c.b16 %v1541, %v1540
    %v1567 = vsel %vm563, %v1462, 0
    %1569 = vmatprep.subr.bf16.mxu0 0
    %1570 = vmatpush1.bf16.msra.mxu0 %v1542
    %1571 = vmatprep.subr.bf16.mxu0 0
    %1572 = vmatpush1.bf16.msra.mxu0 %v1543
    %1573 = vmatprep.subr.bf16.mxu0 0
    %1574 = vmatpush1.bf16.msra.mxu0 %v1544
    %1575 = vmatprep.subr.bf16.mxu0 0
    %1576 = vmatpush1.bf16.msra.mxu0 %v1545
    %1577 = vmatprep.subr.bf16.mxu0 0
    %1578 = vmatpush1.bf16.msra.mxu0 %v1546
    %1579 = vmatprep.subr.bf16.mxu0 0
    %1580 = vmatpush1.bf16.msra.mxu0 %v1547
    %1581 = vmatprep.subr.bf16.mxu0 0
    %1582 = vmatpush1.bf16.msra.mxu0 %v1548
    %1583 = vmatprep.subr.bf16.mxu0 0
    %1584 = vmatpush1.bf16.msra.mxu0 %v1549
    %1585 = vmatprep.subr.bf16.mxu0 0
    %1586 = vmatpush1.bf16.msra.mxu0 %v1550
    %1587 = vmatprep.subr.bf16.mxu0 0
    %1588 = vmatpush1.bf16.msra.mxu0 %v1551
    %1589 = vmatprep.subr.bf16.mxu0 0
    %1590 = vmatpush1.bf16.msra.mxu0 %v1552
    %1591 = vmatprep.subr.bf16.mxu0 0
    %1592 = vmatpush1.bf16.msra.mxu0 %v1553
    %1593 = vmatprep.subr.bf16.mxu0 0
    %1594 = vmatpush1.bf16.msra.mxu0 0
    %1595 = vmatprep.subr.bf16.mxu0 0
    %1596 = vmatpush1.bf16.msra.mxu0 0
    %1597 = vmatprep.subr.bf16.mxu0 0
    %1598 = vmatpush1.bf16.msra.mxu0 0
    %1599 = vmatprep.subr.bf16.mxu0 0
    %1600 = vmatpush1.bf16.msra.mxu0 0
    %1601 = vmatprep.mubr.bf16.mxu0 %v1567
    %1602 = vmatmul.mubr.bf16.gmra.mrb[0].mxu0 %v1461
    %v1603 = vpop.f32.mrb[0].mxu0
    %v1604 = vadd.f32 %v1492, %v1603
    %v1605 = vpop.f32.mrb[0].mxu0
    %v1606 = vpop.f32.mrb[0].mxu0
    %v1607 = vadd.f32 %v1492, %v1606
    %v1608 = vpop.f32.mrb[0].mxu0
    %1609 = vdwg.mxu0
    %v1610 = vmax.f32 %v1604, 0.0
    %v1611 = vmax.f32 %v1607, 0.0
    %v1614 = vrot.slane %v1610, 7
    %v1615 = vrot.slane %v1611, 7
    %v1616 = vsel %vm440, %v1614, %v1615
    %v1619 = vsel %vm440, 0.0, %v1614
    %v1620 = vrot.slane %v1610, 1
    %v1621 = vrot.slane %v1611, 1
    %v1622 = vsel %vm453, %v1620, %v1621
    %v1625 = vsel %vm453, %v1621, 0.0
    %v1626 = vsel %vm1441, 0.0, %v1619
    %v1627 = vsel %vm1442, 0.0, %v1616
    %v1628 = vsel %vm1449, 0.0, %v1622
    %v1629 = vsel %vm1450, 0.0, %v1625
    %v1630 = vpack.c.bf16 %v1627, %v1626
    %v1631 = vpack.c.bf16 %v1611, %v1610
    %v1632 = vpack.c.bf16 %v1629, %v1628
    %v1633 = vld [vmem:[%s19] sm:$0xf]
    %v1634 = vld [vmem:[%s19 + $0x4] sm:$0xf]
    %v1635 = vld [vmem:[%s19 + $0x8] sm:$0xf]
    %v1636 = vld [vmem:[%s19 + $0xc] sm:$0xf]
    %v1637 = vld [vmem:[%s19 + $0x10] sm:$0xf]
    %v1638 = vld [vmem:[%s19 + $0x14] sm:$0xf]
    %v1639 = vld [vmem:[%s19 + $0x18] sm:$0xf]
    %v1640 = vld [vmem:[%s19 + $0x1c] sm:$0xf]
    %v1641 = vld [vmem:[%s19 + $0x20] sm:$0xf]
    %v1642 = vld [vmem:[%s19 + $0x24] sm:$0xf]
    %v1643 = vld [vmem:[%s19 + $0x28] sm:$0xf]
    %v1644 = vld [vmem:[%s19 + $0x2c] sm:$0xf]
    %v1645 = vld [vmem:[%s19 + $0x30] sm:$0xf]
    %v1646 = vld [vmem:[%s19 + $0x34] sm:$0xf]
    %v1647 = vld [vmem:[%s19 + $0x38] sm:$0xf]
    %v1648 = vld [vmem:[%s19 + $0x3c] sm:$0xf]
    %v1649 = vld [vmem:[%s19 + $0x40] sm:$0xf]
    %v1650 = vld [vmem:[%s19 + $0x44] sm:$0xf]
    %v1651 = vld [vmem:[%s19 + $0x48] sm:$0xf]
    %v1652 = vld [vmem:[%s19 + $0x4c] sm:$0xf]
    %v1653 = vld [vmem:[%s19 + $0x50] sm:$0xf]
    %v1654 = vld [vmem:[%s19 + $0x54] sm:$0xf]
    %v1655 = vld [vmem:[%s19 + $0x58] sm:$0xf]
    %v1656 = vld [vmem:[%s19 + $0x5c] sm:$0xf]
    %v1657 = vld [vmem:[%s19 + $0x60] sm:$0xf]
    %v1658 = vld [vmem:[%s19 + $0x64] sm:$0xf]
    %v1659 = vld [vmem:[%s19 + $0x68] sm:$0xf]
    %v1660 = vld [vmem:[%s19 + $0x6c] sm:$0xf]
    %v1661 = vld [vmem:[%s19 + $0x70] sm:$0xf]
    %v1662 = vld [vmem:[%s19 + $0x74] sm:$0xf]
    %v1663 = vld [vmem:[%s19 + $0x78] sm:$0xf]
    %v1664 = vld [vmem:[%s19 + $0x7c] sm:$0xf]
    %v1665 = vld [vmem:[%s19 + $0x80] sm:$0xf]
    %v1666 = vld [vmem:[%s19 + $0x84] sm:$0xf]
    %v1667 = vld [vmem:[%s19 + $0x88] sm:$0xf]
    %v1668 = vld [vmem:[%s19 + $0x8c] sm:$0xf]
    %v1669 = vld [vmem:[%s19 + $0x90] sm:$0xf]
    %v1670 = vld [vmem:[%s19 + $0x94] sm:$0xf]
    %v1671 = vld [vmem:[%s19 + $0x98] sm:$0xf]
    %v1672 = vld [vmem:[%s19 + $0x9c] sm:$0xf]
    %v1673 = vld [vmem:[%s19 + $0xa0] sm:$0xf]
    %v1674 = vld [vmem:[%s19 + $0xa4] sm:$0xf]
    %v1675 = vld [vmem:[%s19 + $0xa8] sm:$0xf]
    %v1676 = vld [vmem:[%s19 + $0xac] sm:$0xf]
    %v1677 = vld [vmem:[%s19 + $0xb0] sm:$0xf]
    %v1678 = vld [vmem:[%s19 + $0xb4] sm:$0xf]
    %v1679 = vld [vmem:[%s19 + $0xb8] sm:$0xf]
    %v1680 = vld [vmem:[%s19 + $0xbc] sm:$0xf]
    %v1681 = vld [vmem:[#allocation12] sm:$0x1]
    %v1683 = vlaneseq
    %v1684 = vshrl.u32 %v1683, 7
    %v1685 = vsub.s32 0, %v1684
    %v1686 = vrot.slane %v1681, %v1685
    %v1736 = vunpack.c.l.b16 %v1633
    %v1737 = vunpack.c.l.b16 %v1634
    %v1738 = vunpack.c.l.b16 %v1635
    %v1739 = vunpack.c.l.b16 %v1636
    %v1740 = vunpack.c.l.b16 %v1637
    %v1741 = vunpack.c.l.b16 %v1638
    %v1742 = vunpack.c.l.b16 %v1639
    %v1743 = vunpack.c.l.b16 %v1640
    %v1744 = vunpack.c.l.b16 %v1641
    %v1745 = vunpack.c.l.b16 %v1642
    %v1746 = vunpack.c.l.b16 %v1643
    %v1747 = vunpack.c.l.b16 %v1644
    %v1748 = vunpack.c.l.b16 %v1645
    %v1749 = vunpack.c.l.b16 %v1646
    %v1750 = vunpack.c.l.b16 %v1647
    %v1751 = vunpack.c.l.b16 %v1648
    %v1752 = vunpack.c.l.b16 %v1649
    %v1753 = vunpack.c.l.b16 %v1650
    %v1754 = vunpack.c.l.b16 %v1651
    %v1755 = vunpack.c.l.b16 %v1652
    %v1756 = vunpack.c.l.b16 %v1653
    %v1757 = vunpack.c.l.b16 %v1654
    %v1758 = vunpack.c.l.b16 %v1655
    %v1759 = vunpack.c.l.b16 %v1656
    %v1760 = vunpack.c.l.b16 %v1657
    %v1761 = vunpack.c.l.b16 %v1658
    %v1762 = vunpack.c.l.b16 %v1659
    %v1763 = vunpack.c.l.b16 %v1660
    %v1764 = vunpack.c.l.b16 %v1661
    %v1765 = vunpack.c.l.b16 %v1662
    %v1766 = vunpack.c.l.b16 %v1663
    %v1767 = vunpack.c.l.b16 %v1664
    %v1768 = vunpack.c.l.b16 %v1665
    %v1769 = vunpack.c.l.b16 %v1666
    %v1770 = vunpack.c.l.b16 %v1667
    %v1771 = vunpack.c.l.b16 %v1668
    %v1772 = vunpack.c.l.b16 %v1669
    %v1773 = vunpack.c.l.b16 %v1670
    %v1774 = vunpack.c.l.b16 %v1671
    %v1775 = vunpack.c.l.b16 %v1672
    %v1776 = vunpack.c.l.b16 %v1673
    %v1777 = vunpack.c.l.b16 %v1674
    %v1778 = vunpack.c.l.b16 %v1675
    %v1779 = vunpack.c.l.b16 %v1676
    %v1780 = vunpack.c.l.b16 %v1677
    %v1781 = vunpack.c.l.b16 %v1678
    %v1782 = vunpack.c.l.b16 %v1679
    %v1783 = vunpack.c.l.b16 %v1680
    %v1784 = vpack.c.b16 %v1737, %v1736
    %v1785 = vpack.c.b16 %v1739, %v1738
    %v1786 = vpack.c.b16 %v1741, %v1740
    %v1787 = vpack.c.b16 %v1743, %v1742
    %v1788 = vpack.c.b16 %v1745, %v1744
    %v1789 = vpack.c.b16 %v1747, %v1746
    %v1790 = vpack.c.b16 %v1749, %v1748
    %v1791 = vpack.c.b16 %v1751, %v1750
    %v1792 = vpack.c.b16 %v1753, %v1752
    %v1793 = vpack.c.b16 %v1755, %v1754
    %v1794 = vpack.c.b16 %v1757, %v1756
    %v1795 = vpack.c.b16 %v1759, %v1758
    %v1796 = vpack.c.b16 %v1761, %v1760
    %v1797 = vpack.c.b16 %v1763, %v1762
    %v1798 = vpack.c.b16 %v1765, %v1764
    %v1799 = vpack.c.b16 %v1767, %v1766
    %v1800 = vpack.c.b16 %v1769, %v1768
    %v1801 = vpack.c.b16 %v1771, %v1770
    %v1802 = vpack.c.b16 %v1773, %v1772
    %v1803 = vpack.c.b16 %v1775, %v1774
    %v1804 = vpack.c.b16 %v1777, %v1776
    %v1805 = vpack.c.b16 %v1779, %v1778
    %v1806 = vpack.c.b16 %v1781, %v1780
    %v1807 = vpack.c.b16 %v1783, %v1782
    %1832 = vmatprep.subr.bf16.mxu0 0
    %1833 = vmatpush1.bf16.msra.mxu0 %v1784
    %1834 = vmatprep.subr.bf16.mxu0 0
    %1835 = vmatpush1.bf16.msra.mxu0 %v1785
    %1836 = vmatprep.subr.bf16.mxu0 0
    %1837 = vmatpush1.bf16.msra.mxu0 %v1786
    %1838 = vmatprep.subr.bf16.mxu0 0
    %1839 = vmatpush1.bf16.msra.mxu0 %v1787
    %1840 = vmatprep.subr.bf16.mxu0 0
    %1841 = vmatpush1.bf16.msra.mxu0 %v1788
    %1842 = vmatprep.subr.bf16.mxu0 0
    %1843 = vmatpush1.bf16.msra.mxu0 %v1789
    %1844 = vmatprep.subr.bf16.mxu0 0
    %1845 = vmatpush1.bf16.msra.mxu0 %v1790
    %1846 = vmatprep.subr.bf16.mxu0 0
    %1847 = vmatpush1.bf16.msra.mxu0 %v1791
    %1848 = vmatprep.subr.bf16.mxu0 0
    %1849 = vmatpush1.bf16.msra.mxu0 %v1792
    %1850 = vmatprep.subr.bf16.mxu0 0
    %1851 = vmatpush1.bf16.msra.mxu0 %v1793
    %1852 = vmatprep.subr.bf16.mxu0 0
    %1853 = vmatpush1.bf16.msra.mxu0 %v1794
    %1854 = vmatprep.subr.bf16.mxu0 0
    %1855 = vmatpush1.bf16.msra.mxu0 %v1795
    %1856 = vmatprep.subr.bf16.mxu0 0
    %1857 = vmatpush1.bf16.msra.mxu0 %v1796
    %1858 = vmatprep.subr.bf16.mxu0 0
    %1859 = vmatpush1.bf16.msra.mxu0 %v1797
    %1860 = vmatprep.subr.bf16.mxu0 0
    %1861 = vmatpush1.bf16.msra.mxu0 %v1798
    %1862 = vmatprep.subr.bf16.mxu0 0
    %1863 = vmatpush1.bf16.msra.mxu0 %v1799
    %1864 = vmatprep.mubr.bf16.mxu0 %v1631
    %1865 = vmatmul.mubr.bf16.gmra.mrb[0].mxu0 %v1630
    %v1866 = vpop.f32.mrb[0].mxu0
    %v1867 = vadd.f32 %v1686, %v1866
    %v1868 = vpop.f32.mrb[0].mxu0
    %v1869 = vpop.f32.mrb[0].mxu0
    %v1870 = vadd.f32 %v1686, %v1869
    %v1871 = vpop.f32.mrb[0].mxu0
    %1872 = vdwg.mxu0
    %1873 = vmatprep.subr.bf16.mxu0 0
    %1874 = vmatpush1.bf16.msra.mxu0 %v1800
    %1875 = vmatprep.subr.bf16.mxu0 0
    %1876 = vmatpush1.bf16.msra.mxu0 %v1801
    %1877 = vmatprep.subr.bf16.mxu0 0
    %1878 = vmatpush1.bf16.msra.mxu0 %v1802
    %1879 = vmatprep.subr.bf16.mxu0 0
    %1880 = vmatpush1.bf16.msra.mxu0 %v1803
    %1881 = vmatprep.subr.bf16.mxu0 0
    %1882 = vmatpush1.bf16.msra.mxu0 %v1804
    %1883 = vmatprep.subr.bf16.mxu0 0
    %1884 = vmatpush1.bf16.msra.mxu0 %v1805
    %1885 = vmatprep.subr.bf16.mxu0 0
    %1886 = vmatpush1.bf16.msra.mxu0 %v1806
    %1887 = vmatprep.subr.bf16.mxu0 0
    %1888 = vmatpush1.bf16.msra.mxu0 %v1807
    %1889 = vmatprep.subr.bf16.mxu0 0
    %1890 = vmatpush1.bf16.msra.mxu0 0
    %1891 = vmatprep.subr.bf16.mxu0 0
    %1892 = vmatpush1.bf16.msra.mxu0 0
    %1893 = vmatprep.subr.bf16.mxu0 0
    %1894 = vmatpush1.bf16.msra.mxu0 0
    %1895 = vmatprep.subr.bf16.mxu0 0
    %1896 = vmatpush1.bf16.msra.mxu0 0
    %1897 = vmatprep.subr.bf16.mxu0 0
    %1898 = vmatpush1.bf16.msra.mxu0 0
    %1899 = vmatprep.subr.bf16.mxu0 0
    %1900 = vmatpush1.bf16.msra.mxu0 0
    %1901 = vmatprep.subr.bf16.mxu0 0
    %1902 = vmatpush1.bf16.msra.mxu0 0
    %1903 = vmatprep.subr.bf16.mxu0 0
    %1904 = vmatpush1.bf16.msra.mxu0 0
    %1905 = vmatprep.mubr.bf16.mxu0 0
    %1906 = vmatmul.mubr.bf16.gmra.mrb[0].mxu0 %v1632
    %v1907 = vpop.f32.mrb[0].mxu0
    %v1908 = vadd.f32 %v1867, %v1907
    %v1909 = vpop.f32.mrb[0].mxu0
    %v1910 = vpop.f32.mrb[0].mxu0
    %v1911 = vadd.f32 %v1870, %v1910
    %v1912 = vpop.f32.mrb[0].mxu0
    %1913 = vdwg.mxu0
    %v1914 = vmax.f32 %v1908, 0.0
    %v1915 = vmax.f32 %v1911, 0.0
    %v1916 = vpack.c.bf16 %v1915, %v1914
    %v1917 = vld [vmem:[#allocation13] sm:$0xf]
    %vm1918 = vcmask 130048
    %v1920 = vsel %vm1918, %v1917, 0
    %1922 = vmatprep.subr.bf16.mxu0 0
    %1923 = vmatpush1.bf16.msra.mxu0 %v1916
    %1924 = vmatprep.subr.bf16.mxu0 0
    %1925 = vmatpush1.bf16.msra.mxu0 0
    %1926 = vmatprep.subr.bf16.mxu0 0
    %1927 = vmatpush1.bf16.msra.mxu0 0
    %1928 = vmatprep.subr.bf16.mxu0 0
    %1929 = vmatpush1.bf16.msra.mxu0 0
    %1930 = vmatprep.subr.bf16.mxu0 0
    %1931 = vmatpush1.bf16.msra.mxu0 0
    %1932 = vmatprep.subr.bf16.mxu0 0
    %1933 = vmatpush1.bf16.msra.mxu0 0
    %1934 = vmatprep.subr.bf16.mxu0 0
    %1935 = vmatpush1.bf16.msra.mxu0 0
    %1936 = vmatprep.subr.bf16.mxu0 0
    %1937 = vmatpush1.bf16.msra.mxu0 0
    %1938 = vmatprep.subr.bf16.mxu0 0
    %1939 = vmatpush1.bf16.msra.mxu0 0
    %1940 = vmatprep.subr.bf16.mxu0 0
    %1941 = vmatpush1.bf16.msra.mxu0 0
    %1942 = vmatprep.subr.bf16.mxu0 0
    %1943 = vmatpush1.bf16.msra.mxu0 0
    %1944 = vmatprep.subr.bf16.mxu0 0
    %1945 = vmatpush1.bf16.msra.mxu0 0
    %1946 = vmatprep.subr.bf16.mxu0 0
    %1947 = vmatpush1.bf16.msra.mxu0 0
    %1948 = vmatprep.subr.bf16.mxu0 0
    %1949 = vmatpush1.bf16.msra.mxu0 0
    %1950 = vmatprep.subr.bf16.mxu0 0
    %1951 = vmatpush1.bf16.msra.mxu0 0
    %1952 = vmatprep.subr.bf16.mxu0 0
    %1953 = vmatpush1.bf16.msra.mxu0 0
    %1954 = vmatprep.mubr.bf16.mxu0 0
    %1955 = vmatmul.mubr.bf16.gmra.mrb[0].mxu0 %v1920
    %v1956 = vpop.f32.mrb[0].mxu0
    %v1957 = vadd.f32 0.0, %v1956
    %v1958 = vpop.f32.mrb[0].mxu0
    %v1959 = vpop.f32.mrb[0].mxu0
    %v1960 = vpop.f32.mrb[0].mxu0
    %1961 = vdwg.mxu0
    %s1962 = scalar_lea.vmem [#allocation13], 4
    %v1963 = vld [vmem:[%s1962] sm:$0xf]
    %v1965 = vsel %vm1918, %v1963, 0
    %1967 = vmatprep.subr.bf16.mxu0 0
    %1968 = vmatpush1.bf16.msra.mxu0 %v1916
    %1969 = vmatprep.subr.bf16.mxu0 0
    %1970 = vmatpush1.bf16.msra.mxu0 0
    %1971 = vmatprep.subr.bf16.mxu0 0
    %1972 = vmatpush1.bf16.msra.mxu0 0
    %1973 = vmatprep.subr.bf16.mxu0 0
    %1974 = vmatpush1.bf16.msra.mxu0 0
    %1975 = vmatprep.subr.bf16.mxu0 0
    %1976 = vmatpush1.bf16.msra.mxu0 0
    %1977 = vmatprep.subr.bf16.mxu0 0
    %1978 = vmatpush1.bf16.msra.mxu0 0
    %1979 = vmatprep.subr.bf16.mxu0 0
    %1980 = vmatpush1.bf16.msra.mxu0 0
    %1981 = vmatprep.subr.bf16.mxu0 0
    %1982 = vmatpush1.bf16.msra.mxu0 0
    %1983 = vmatprep.subr.bf16.mxu0 0
    %1984 = vmatpush1.bf16.msra.mxu0 0
    %1985 = vmatprep.subr.bf16.mxu0 0
    %1986 = vmatpush1.bf16.msra.mxu0 0
    %1987 = vmatprep.subr.bf16.mxu0 0
    %1988 = vmatpush1.bf16.msra.mxu0 0
    %1989 = vmatprep.subr.bf16.mxu0 0
    %1990 = vmatpush1.bf16.msra.mxu0 0
    %1991 = vmatprep.subr.bf16.mxu0 0
    %1992 = vmatpush1.bf16.msra.mxu0 0
    %1993 = vmatprep.subr.bf16.mxu0 0
    %1994 = vmatpush1.bf16.msra.mxu0 0
    %1995 = vmatprep.subr.bf16.mxu0 0
    %1996 = vmatpush1.bf16.msra.mxu0 0
    %1997 = vmatprep.subr.bf16.mxu0 0
    %1998 = vmatpush1.bf16.msra.mxu0 0
    %1999 = vmatprep.mubr.bf16.mxu0 0
    %2000 = vmatmul.mubr.bf16.gmra.mrb[0].mxu0 %v1965
    %v2001 = vpop.f32.mrb[0].mxu0
    %v2002 = vadd.f32 0.0, %v2001
    %v2003 = vpop.f32.mrb[0].mxu0
    %v2004 = vpop.f32.mrb[0].mxu0
    %v2005 = vpop.f32.mrb[0].mxu0
    %2006 = vdwg.mxu0
    %v2007 = vmax.f32 %v1957, %v2002
    %v2008 = vpack.c.bf16 %v2007, %v2007
    %v2009 = vld [vmem:[%s25] sm:$0xf]
    %v2010 = vld [vmem:[%s25 + $0x4] sm:$0xf]
    %v2011 = vld [vmem:[%s25 + $0x8] sm:$0xf]
    %v2012 = vld [vmem:[%s25 + $0xc] sm:$0xf]
    %v2013 = vld [vmem:[%s25 + $0x10] sm:$0xf]
    %v2014 = vld [vmem:[%s25 + $0x14] sm:$0xf]
    %v2015 = vld [vmem:[%s25 + $0x18] sm:$0xf]
    %v2016 = vld [vmem:[%s25 + $0x1c] sm:$0xf]
    %v2017 = vld [vmem:[%s25 + $0x20] sm:$0xf]
    %v2018 = vld [vmem:[%s25 + $0x24] sm:$0xf]
    %v2019 = vld [vmem:[%s25 + $0x28] sm:$0xf]
    %v2020 = vld [vmem:[%s25 + $0x2c] sm:$0xf]
    %v2021 = vld [vmem:[%s25 + $0x30] sm:$0xf]
    %v2022 = vld [vmem:[%s25 + $0x34] sm:$0xf]
    %v2023 = vld [vmem:[%s25 + $0x38] sm:$0xf]
    %v2024 = vld [vmem:[%s25 + $0x3c] sm:$0xf]
    %v2041 = vunpack.c.l.b16 %v2009
    %v2042 = vunpack.c.l.b16 %v2010
    %v2043 = vunpack.c.l.b16 %v2011
    %v2044 = vunpack.c.l.b16 %v2012
    %v2045 = vunpack.c.l.b16 %v2013
    %v2046 = vunpack.c.l.b16 %v2014
    %v2047 = vunpack.c.l.b16 %v2015
    %v2048 = vunpack.c.l.b16 %v2016
    %v2049 = vunpack.c.l.b16 %v2017
    %v2050 = vunpack.c.l.b16 %v2018
    %v2051 = vunpack.c.l.b16 %v2019
    %v2052 = vunpack.c.l.b16 %v2020
    %v2053 = vunpack.c.l.b16 %v2021
    %v2054 = vunpack.c.l.b16 %v2022
    %v2055 = vunpack.c.l.b16 %v2023
    %v2056 = vunpack.c.l.b16 %v2024
    %v2057 = vpack.c.b16 %v2042, %v2041
    %v2058 = vpack.c.b16 %v2044, %v2043
    %v2059 = vpack.c.b16 %v2046, %v2045
    %v2060 = vpack.c.b16 %v2048, %v2047
    %v2061 = vpack.c.b16 %v2050, %v2049
    %v2062 = vpack.c.b16 %v2052, %v2051
    %v2063 = vpack.c.b16 %v2054, %v2053
    %v2064 = vpack.c.b16 %v2056, %v2055
    %2073 = vmatprep.subr.bf16.mxu0 0
    %2074 = vmatpush1.bf16.msra.mxu0 %v2057
    %2075 = vmatprep.subr.bf16.mxu0 0
    %2076 = vmatpush1.bf16.msra.mxu0 %v2058
    %2077 = vmatprep.subr.bf16.mxu0 0
    %2078 = vmatpush1.bf16.msra.mxu0 %v2059
    %2079 = vmatprep.subr.bf16.mxu0 0
    %2080 = vmatpush1.bf16.msra.mxu0 %v2060
    %2081 = vmatprep.subr.bf16.mxu0 0
    %2082 = vmatpush1.bf16.msra.mxu0 %v2061
    %2083 = vmatprep.subr.bf16.mxu0 0
    %2084 = vmatpush1.bf16.msra.mxu0 %v2062
    %2085 = vmatprep.subr.bf16.mxu0 0
    %2086 = vmatpush1.bf16.msra.mxu0 %v2063
    %2087 = vmatprep.subr.bf16.mxu0 0
    %2088 = vmatpush1.bf16.msra.mxu0 %v2064
    %2089 = vmatprep.subr.bf16.mxu0 0
    %2090 = vmatpush1.bf16.msra.mxu0 0
    %2091 = vmatprep.subr.bf16.mxu0 0
    %2092 = vmatpush1.bf16.msra.mxu0 0
    %2093 = vmatprep.subr.bf16.mxu0 0
    %2094 = vmatpush1.bf16.msra.mxu0 0
    %2095 = vmatprep.subr.bf16.mxu0 0
    %2096 = vmatpush1.bf16.msra.mxu0 0
    %2097 = vmatprep.subr.bf16.mxu0 0
    %2098 = vmatpush1.bf16.msra.mxu0 0
    %2099 = vmatprep.subr.bf16.mxu0 0
    %2100 = vmatpush1.bf16.msra.mxu0 0
    %2101 = vmatprep.subr.bf16.mxu0 0
    %2102 = vmatpush1.bf16.msra.mxu0 0
    %2103 = vmatprep.subr.bf16.mxu0 0
    %2104 = vmatpush1.bf16.msra.mxu0 0
    %2105 = vmatprep.mubr.bf16.mxu0 0
    %2106 = vmatmul.mubr.bf16.gmra.mrb[0].mxu0 %v2008
    %v2107 = vpop.f32.mrb[0].mxu0
    %v2108 = vadd.f32 0.0, %v2107
    %v2109 = vpop.f32.mrb[0].mxu0
    %v2110 = vpop.f32.mrb[0].mxu0
    %v2111 = vpop.f32.mrb[0].mxu0
    %2112 = vdwg.mxu0
    %s2113 = scalar_lea.vmem %s25, 64
    %v2114 = vld [vmem:[%s2113] sm:$0xf]
    %v2115 = vld [vmem:[%s2113 + $0x4] sm:$0xf]
    %v2116 = vld [vmem:[%s2113 + $0x8] sm:$0xf]
    %v2117 = vld [vmem:[%s2113 + $0xc] sm:$0xf]
    %v2118 = vld [vmem:[%s2113 + $0x10] sm:$0xf]
    %v2119 = vld [vmem:[%s2113 + $0x14] sm:$0xf]
    %v2120 = vld [vmem:[%s2113 + $0x18] sm:$0xf]
    %v2121 = vld [vmem:[%s2113 + $0x1c] sm:$0xf]
    %v2122 = vld [vmem:[%s2113 + $0x20] sm:$0xf]
    %v2123 = vld [vmem:[%s2113 + $0x24] sm:$0xf]
    %v2124 = vld [vmem:[%s2113 + $0x28] sm:$0xf]
    %v2125 = vld [vmem:[%s2113 + $0x2c] sm:$0xf]
    %v2126 = vld [vmem:[%s2113 + $0x30] sm:$0xf]
    %v2127 = vld [vmem:[%s2113 + $0x34] sm:$0xf]
    %v2128 = vld [vmem:[%s2113 + $0x38] sm:$0xf]
    %v2129 = vld [vmem:[%s2113 + $0x3c] sm:$0xf]
    %v2146 = vunpack.c.l.b16 %v2114
    %v2147 = vunpack.c.l.b16 %v2115
    %v2148 = vunpack.c.l.b16 %v2116
    %v2149 = vunpack.c.l.b16 %v2117
    %v2150 = vunpack.c.l.b16 %v2118
    %v2151 = vunpack.c.l.b16 %v2119
    %v2152 = vunpack.c.l.b16 %v2120
    %v2153 = vunpack.c.l.b16 %v2121
    %v2154 = vunpack.c.l.b16 %v2122
    %v2155 = vunpack.c.l.b16 %v2123
    %v2156 = vunpack.c.l.b16 %v2124
    %v2157 = vunpack.c.l.b16 %v2125
    %v2158 = vunpack.c.l.b16 %v2126
    %v2159 = vunpack.c.l.b16 %v2127
    %v2160 = vunpack.c.l.b16 %v2128
    %v2161 = vunpack.c.l.b16 %v2129
    %v2162 = vpack.c.b16 %v2147, %v2146
    %v2163 = vpack.c.b16 %v2149, %v2148
    %v2164 = vpack.c.b16 %v2151, %v2150
    %v2165 = vpack.c.b16 %v2153, %v2152
    %v2166 = vpack.c.b16 %v2155, %v2154
    %v2167 = vpack.c.b16 %v2157, %v2156
    %v2168 = vpack.c.b16 %v2159, %v2158
    %v2169 = vpack.c.b16 %v2161, %v2160
    %2178 = vmatprep.subr.bf16.mxu0 0
    %2179 = vmatpush1.bf16.msra.mxu0 %v2162
    %2180 = vmatprep.subr.bf16.mxu0 0
    %2181 = vmatpush1.bf16.msra.mxu0 %v2163
    %2182 = vmatprep.subr.bf16.mxu0 0
    %2183 = vmatpush1.bf16.msra.mxu0 %v2164
    %2184 = vmatprep.subr.bf16.mxu0 0
    %2185 = vmatpush1.bf16.msra.mxu0 %v2165
    %2186 = vmatprep.subr.bf16.mxu0 0
    %2187 = vmatpush1.bf16.msra.mxu0 %v2166
    %2188 = vmatprep.subr.bf16.mxu0 0
    %2189 = vmatpush1.bf16.msra.mxu0 %v2167
    %2190 = vmatprep.subr.bf16.mxu0 0
    %2191 = vmatpush1.bf16.msra.mxu0 %v2168
    %2192 = vmatprep.subr.bf16.mxu0 0
    %2193 = vmatpush1.bf16.msra.mxu0 %v2169
    %2194 = vmatprep.subr.bf16.mxu0 0
    %2195 = vmatpush1.bf16.msra.mxu0 0
    %2196 = vmatprep.subr.bf16.mxu0 0
    %2197 = vmatpush1.bf16.msra.mxu0 0
    %2198 = vmatprep.subr.bf16.mxu0 0
    %2199 = vmatpush1.bf16.msra.mxu0 0
    %2200 = vmatprep.subr.bf16.mxu0 0
    %2201 = vmatpush1.bf16.msra.mxu0 0
    %2202 = vmatprep.subr.bf16.mxu0 0
    %2203 = vmatpush1.bf16.msra.mxu0 0
    %2204 = vmatprep.subr.bf16.mxu0 0
    %2205 = vmatpush1.bf16.msra.mxu0 0
    %2206 = vmatprep.subr.bf16.mxu0 0
    %2207 = vmatpush1.bf16.msra.mxu0 0
    %2208 = vmatprep.subr.bf16.mxu0 0
    %2209 = vmatpush1.bf16.msra.mxu0 0
    %2210 = vmatprep.mubr.bf16.mxu0 0
    %2211 = vmatmul.mubr.bf16.gmra.mrb[0].mxu0 %v2008
    %v2212 = vpop.f32.mrb[0].mxu0
    %v2213 = vadd.f32 0.0, %v2212
    %v2214 = vpop.f32.mrb[0].mxu0
    %v2215 = vpop.f32.mrb[0].mxu0
    %v2216 = vpop.f32.mrb[0].mxu0
    %2217 = vdwg.mxu0
    %v2218 = vmax.f32 %v2108, %v2213
    %v2220 = vrot.slane %v2218, 7
    %v2222 = vsel %vm440, 0.0, %v2220
    %v2223 = vrot.slane %v2218, 1
    %v2225 = vsel %vm453, %v2223, 0.0
    %vm2226 = vcmp.lt.s32.totalorder %v467, 0
    %v2227 = vsub.s32 0, %v467
    %v2228 = vsel %vm2226, %v2227, %v467
    %v2229 = vshrl.u32 %v2228, 2
    %v2230 = vand.u32 %v2228, 3
    %v2231 = vsub.s32 0, %v2230
    %v2232 = vsel %vm2226, %v2231, %v2230
    %vm2233 = vcmp.ne.s32.totalorder %v2232, 0
    %vm2234 = vcmp.lt.s32.totalorder %v2232, 0
    %vm2235 = vmand %vm2234, %vm2233
    %v2236 = vadd.s32 %v2232, 4
    %v2237 = vsel %vm2235, %v2236, %v2232
    %vm2238 = vcmp.eq.s32.totalorder %v2237, 0
    %v2239 = vsel %vm2238, 1, 0
    %vm2240 = vcmp.eq.s32.totalorder %v2239, 1
    %v2241 = vsel %vm2240, 0.0, %v2222
    %vm2242 = vcmp.eq.s32.totalorder %v2237, 3
    %v2243 = vsel %vm2242, 1, 0
    %vm2244 = vcmp.eq.s32.totalorder %v2243, 1
    %v2245 = vsel %vm2244, 0.0, %v2225
    %2246 = vrot.lane.b32.xlu0 %v2218, 64
    %v2247 = vpop.permute.xlu0 %2246
    %v2249 = vsel %vm563, %v2241, %v2247
    %v2250 = vpack.c.bf16 %v2249, %v2249
    %v2251 = vpack.c.bf16 %v2245, %v2245
    %v2252 = vld [vmem:[#allocation15] sm:$0xf]
    %v2253 = vld [vmem:[#allocation15 + $0x4] sm:$0xf]
    %v2254 = vld [vmem:[#allocation15 + $0x8] sm:$0xf]
    %v2255 = vld [vmem:[#allocation15 + $0xc] sm:$0xf]
    %v2256 = vld [vmem:[#allocation15 + $0x10] sm:$0xf]
    %v2257 = vld [vmem:[#allocation15 + $0x14] sm:$0xf]
    %v2258 = vld [vmem:[#allocation15 + $0x18] sm:$0xf]
    %v2259 = vld [vmem:[#allocation15 + $0x1c] sm:$0xf]
    %v2260 = vld [vmem:[#allocation15 + $0x20] sm:$0xf]
    %v2261 = vld [vmem:[#allocation15 + $0x24] sm:$0xf]
    %v2262 = vld [vmem:[#allocation15 + $0x28] sm:$0xf]
    %v2263 = vld [vmem:[#allocation15 + $0x2c] sm:$0xf]
    %v2264 = vld [vmem:[#allocation15 + $0x30] sm:$0xf]
    %v2265 = vld [vmem:[#allocation15 + $0x34] sm:$0xf]
    %v2266 = vld [vmem:[#allocation15 + $0x38] sm:$0xf]
    %v2267 = vld [vmem:[#allocation15 + $0x3c] sm:$0xf]
    %v2268 = vld [vmem:[#allocation15 + $0x40] sm:$0xf]
    %v2269 = vld [vmem:[#allocation15 + $0x44] sm:$0xf]
    %v2270 = vld [vmem:[#allocation15 + $0x48] sm:$0xf]
    %v2271 = vld [vmem:[#allocation15 + $0x4c] sm:$0xf]
    %v2272 = vld [vmem:[#allocation15 + $0x50] sm:$0xf]
    %v2273 = vld [vmem:[#allocation15 + $0x54] sm:$0xf]
    %v2274 = vld [vmem:[#allocation15 + $0x58] sm:$0xf]
    %v2275 = vld [vmem:[#allocation15 + $0x5c] sm:$0xf]
    %v2276 = vld [vmem:[#allocation16] sm:$0x1]
    %v2278 = vlaneseq
    %v2279 = vshrl.u32 %v2278, 7
    %v2280 = vsub.s32 0, %v2279
    %v2281 = vrot.slane %v2276, %v2280
    %v2307 = vunpack.c.l.b16 %v2252
    %v2308 = vunpack.c.l.b16 %v2253
    %v2309 = vunpack.c.l.b16 %v2254
    %v2310 = vunpack.c.l.b16 %v2255
    %v2311 = vunpack.c.l.b16 %v2256
    %v2312 = vunpack.c.l.b16 %v2257
    %v2313 = vunpack.c.l.b16 %v2258
    %v2314 = vunpack.c.l.b16 %v2259
    %v2315 = vunpack.c.l.b16 %v2260
    %v2316 = vunpack.c.l.b16 %v2261
    %v2317 = vunpack.c.l.b16 %v2262
    %v2318 = vunpack.c.l.b16 %v2263
    %v2319 = vunpack.c.l.b16 %v2264
    %v2320 = vunpack.c.l.b16 %v2265
    %v2321 = vunpack.c.l.b16 %v2266
    %v2322 = vunpack.c.l.b16 %v2267
    %v2323 = vunpack.c.l.b16 %v2268
    %v2324 = vunpack.c.l.b16 %v2269
    %v2325 = vunpack.c.l.b16 %v2270
    %v2326 = vunpack.c.l.b16 %v2271
    %v2327 = vunpack.c.l.b16 %v2272
    %v2328 = vunpack.c.l.b16 %v2273
    %v2329 = vunpack.c.l.b16 %v2274
    %v2330 = vunpack.c.l.b16 %v2275
    %v2331 = vpack.c.b16 %v2308, %v2307
    %v2332 = vpack.c.b16 %v2310, %v2309
    %v2333 = vpack.c.b16 %v2312, %v2311
    %v2334 = vpack.c.b16 %v2314, %v2313
    %v2335 = vpack.c.b16 %v2316, %v2315
    %v2336 = vpack.c.b16 %v2318, %v2317
    %v2337 = vpack.c.b16 %v2320, %v2319
    %v2338 = vpack.c.b16 %v2322, %v2321
    %v2339 = vpack.c.b16 %v2324, %v2323
    %v2340 = vpack.c.b16 %v2326, %v2325
    %v2341 = vpack.c.b16 %v2328, %v2327
    %v2342 = vpack.c.b16 %v2330, %v2329
    %v2356 = vsel %vm563, %v2251, 0
    %2358 = vmatprep.subr.bf16.mxu0 0
    %2359 = vmatpush1.bf16.msra.mxu0 %v2331
    %2360 = vmatprep.subr.bf16.mxu0 0
    %2361 = vmatpush1.bf16.msra.mxu0 %v2332
    %2362 = vmatprep.subr.bf16.mxu0 0
    %2363 = vmatpush1.bf16.msra.mxu0 %v2333
    %2364 = vmatprep.subr.bf16.mxu0 0
    %2365 = vmatpush1.bf16.msra.mxu0 %v2334
    %2366 = vmatprep.subr.bf16.mxu0 0
    %2367 = vmatpush1.bf16.msra.mxu0 %v2335
    %2368 = vmatprep.subr.bf16.mxu0 0
    %2369 = vmatpush1.bf16.msra.mxu0 %v2336
    %2370 = vmatprep.subr.bf16.mxu0 0
    %2371 = vmatpush1.bf16.msra.mxu0 %v2337
    %2372 = vmatprep.subr.bf16.mxu0 0
    %2373 = vmatpush1.bf16.msra.mxu0 %v2338
    %2374 = vmatprep.subr.bf16.mxu0 0
    %2375 = vmatpush1.bf16.msra.mxu0 %v2339
    %2376 = vmatprep.subr.bf16.mxu0 0
    %2377 = vmatpush1.bf16.msra.mxu0 %v2340
    %2378 = vmatprep.subr.bf16.mxu0 0
    %2379 = vmatpush1.bf16.msra.mxu0 %v2341
    %2380 = vmatprep.subr.bf16.mxu0 0
    %2381 = vmatpush1.bf16.msra.mxu0 %v2342
    %2382 = vmatprep.subr.bf16.mxu0 0
    %2383 = vmatpush1.bf16.msra.mxu0 0
    %2384 = vmatprep.subr.bf16.mxu0 0
    %2385 = vmatpush1.bf16.msra.mxu0 0
    %2386 = vmatprep.subr.bf16.mxu0 0
    %2387 = vmatpush1.bf16.msra.mxu0 0
    %2388 = vmatprep.subr.bf16.mxu0 0
    %2389 = vmatpush1.bf16.msra.mxu0 0
    %2390 = vmatprep.mubr.bf16.mxu0 %v2356
    %2391 = vmatmul.mubr.bf16.gmra.mrb[0].mxu0 %v2250
    %v2392 = vpop.f32.mrb[0].mxu0
    %v2393 = vadd.f32 %v2281, %v2392
    %v2394 = vpop.f32.mrb[0].mxu0
    %v2395 = vpop.f32.mrb[0].mxu0
    %v2396 = vpop.f32.mrb[0].mxu0
    %2397 = vdwg.mxu0
    %v2398 = vmax.f32 %v2393, 0.0
    %v2400 = vrot.slane %v2398, 7
    %v2402 = vsel %vm440, 0.0, %v2400
    %v2403 = vrot.slane %v2398, 1
    %v2405 = vsel %vm453, %v2403, 0.0
    %v2406 = vsel %vm2240, 0.0, %v2402
    %v2407 = vsel %vm2244, 0.0, %v2405
    %v2408 = vpack.c.bf16 %v2406, %v2406
    %v2409 = vpack.c.bf16 %v2398, %v2398
    %v2410 = vpack.c.bf16 %v2407, %v2407
    %v2411 = vld [vmem:[%s31] sm:$0xf]
    %v2412 = vld [vmem:[%s31 + $0x4] sm:$0xf]
    %v2413 = vld [vmem:[%s31 + $0x8] sm:$0xf]
    %v2414 = vld [vmem:[%s31 + $0xc] sm:$0xf]
    %v2415 = vld [vmem:[%s31 + $0x10] sm:$0xf]
    %v2416 = vld [vmem:[%s31 + $0x14] sm:$0xf]
    %v2417 = vld [vmem:[%s31 + $0x18] sm:$0xf]
    %v2418 = vld [vmem:[%s31 + $0x1c] sm:$0xf]
    %v2419 = vld [vmem:[%s31 + $0x20] sm:$0xf]
    %v2420 = vld [vmem:[%s31 + $0x24] sm:$0xf]
    %v2421 = vld [vmem:[%s31 + $0x28] sm:$0xf]
    %v2422 = vld [vmem:[%s31 + $0x2c] sm:$0xf]
    %v2423 = vld [vmem:[%s31 + $0x30] sm:$0xf]
    %v2424 = vld [vmem:[%s31 + $0x34] sm:$0xf]
    %v2425 = vld [vmem:[%s31 + $0x38] sm:$0xf]
    %v2426 = vld [vmem:[%s31 + $0x3c] sm:$0xf]
    %v2427 = vld [vmem:[%s31 + $0x40] sm:$0xf]
    %v2428 = vld [vmem:[%s31 + $0x44] sm:$0xf]
    %v2429 = vld [vmem:[%s31 + $0x48] sm:$0xf]
    %v2430 = vld [vmem:[%s31 + $0x4c] sm:$0xf]
    %v2431 = vld [vmem:[%s31 + $0x50] sm:$0xf]
    %v2432 = vld [vmem:[%s31 + $0x54] sm:$0xf]
    %v2433 = vld [vmem:[%s31 + $0x58] sm:$0xf]
    %v2434 = vld [vmem:[%s31 + $0x5c] sm:$0xf]
    %v2435 = vld [vmem:[%s31 + $0x60] sm:$0xf]
    %v2436 = vld [vmem:[%s31 + $0x64] sm:$0xf]
    %v2437 = vld [vmem:[%s31 + $0x68] sm:$0xf]
    %v2438 = vld [vmem:[%s31 + $0x6c] sm:$0xf]
    %v2439 = vld [vmem:[%s31 + $0x70] sm:$0xf]
    %v2440 = vld [vmem:[%s31 + $0x74] sm:$0xf]
    %v2441 = vld [vmem:[%s31 + $0x78] sm:$0xf]
    %v2442 = vld [vmem:[%s31 + $0x7c] sm:$0xf]
    %v2443 = vld [vmem:[%s31 + $0x80] sm:$0xf]
    %v2444 = vld [vmem:[%s31 + $0x84] sm:$0xf]
    %v2445 = vld [vmem:[%s31 + $0x88] sm:$0xf]
    %v2446 = vld [vmem:[%s31 + $0x8c] sm:$0xf]
    %v2447 = vld [vmem:[%s31 + $0x90] sm:$0xf]
    %v2448 = vld [vmem:[%s31 + $0x94] sm:$0xf]
    %v2449 = vld [vmem:[%s31 + $0x98] sm:$0xf]
    %v2450 = vld [vmem:[%s31 + $0x9c] sm:$0xf]
    %v2451 = vld [vmem:[%s31 + $0xa0] sm:$0xf]
    %v2452 = vld [vmem:[%s31 + $0xa4] sm:$0xf]
    %v2453 = vld [vmem:[%s31 + $0xa8] sm:$0xf]
    %v2454 = vld [vmem:[%s31 + $0xac] sm:$0xf]
    %v2455 = vld [vmem:[%s31 + $0xb0] sm:$0xf]
    %v2456 = vld [vmem:[%s31 + $0xb4] sm:$0xf]
    %v2457 = vld [vmem:[%s31 + $0xb8] sm:$0xf]
    %v2458 = vld [vmem:[%s31 + $0xbc] sm:$0xf]
    %v2459 = vld [vmem:[#allocation18] sm:$0x1]
    %v2461 = vlaneseq
    %v2462 = vshrl.u32 %v2461, 7
    %v2463 = vsub.s32 0, %v2462
    %v2464 = vrot.slane %v2459, %v2463
    %v2514 = vunpack.c.l.b16 %v2411
    %v2515 = vunpack.c.l.b16 %v2412
    %v2516 = vunpack.c.l.b16 %v2413
    %v2517 = vunpack.c.l.b16 %v2414
    %v2518 = vunpack.c.l.b16 %v2415
    %v2519 = vunpack.c.l.b16 %v2416
    %v2520 = vunpack.c.l.b16 %v2417
    %v2521 = vunpack.c.l.b16 %v2418
    %v2522 = vunpack.c.l.b16 %v2419
    %v2523 = vunpack.c.l.b16 %v2420
    %v2524 = vunpack.c.l.b16 %v2421
    %v2525 = vunpack.c.l.b16 %v2422
    %v2526 = vunpack.c.l.b16 %v2423
    %v2527 = vunpack.c.l.b16 %v2424
    %v2528 = vunpack.c.l.b16 %v2425
    %v2529 = vunpack.c.l.b16 %v2426
    %v2530 = vunpack.c.l.b16 %v2427
    %v2531 = vunpack.c.l.b16 %v2428
    %v2532 = vunpack.c.l.b16 %v2429
    %v2533 = vunpack.c.l.b16 %v2430
    %v2534 = vunpack.c.l.b16 %v2431
    %v2535 = vunpack.c.l.b16 %v2432
    %v2536 = vunpack.c.l.b16 %v2433
    %v2537 = vunpack.c.l.b16 %v2434
    %v2538 = vunpack.c.l.b16 %v2435
    %v2539 = vunpack.c.l.b16 %v2436
    %v2540 = vunpack.c.l.b16 %v2437
    %v2541 = vunpack.c.l.b16 %v2438
    %v2542 = vunpack.c.l.b16 %v2439
    %v2543 = vunpack.c.l.b16 %v2440
    %v2544 = vunpack.c.l.b16 %v2441
    %v2545 = vunpack.c.l.b16 %v2442
    %v2546 = vunpack.c.l.b16 %v2443
    %v2547 = vunpack.c.l.b16 %v2444
    %v2548 = vunpack.c.l.b16 %v2445
    %v2549 = vunpack.c.l.b16 %v2446
    %v2550 = vunpack.c.l.b16 %v2447
    %v2551 = vunpack.c.l.b16 %v2448
    %v2552 = vunpack.c.l.b16 %v2449
    %v2553 = vunpack.c.l.b16 %v2450
    %v2554 = vunpack.c.l.b16 %v2451
    %v2555 = vunpack.c.l.b16 %v2452
    %v2556 = vunpack.c.l.b16 %v2453
    %v2557 = vunpack.c.l.b16 %v2454
    %v2558 = vunpack.c.l.b16 %v2455
    %v2559 = vunpack.c.l.b16 %v2456
    %v2560 = vunpack.c.l.b16 %v2457
    %v2561 = vunpack.c.l.b16 %v2458
    %v2562 = vpack.c.b16 %v2515, %v2514
    %v2563 = vpack.c.b16 %v2517, %v2516
    %v2564 = vpack.c.b16 %v2519, %v2518
    %v2565 = vpack.c.b16 %v2521, %v2520
    %v2566 = vpack.c.b16 %v2523, %v2522
    %v2567 = vpack.c.b16 %v2525, %v2524
    %v2568 = vpack.c.b16 %v2527, %v2526
    %v2569 = vpack.c.b16 %v2529, %v2528
    %v2570 = vpack.c.b16 %v2531, %v2530
    %v2571 = vpack.c.b16 %v2533, %v2532
    %v2572 = vpack.c.b16 %v2535, %v2534
    %v2573 = vpack.c.b16 %v2537, %v2536
    %v2574 = vpack.c.b16 %v2539, %v2538
    %v2575 = vpack.c.b16 %v2541, %v2540
    %v2576 = vpack.c.b16 %v2543, %v2542
    %v2577 = vpack.c.b16 %v2545, %v2544
    %v2578 = vpack.c.b16 %v2547, %v2546
    %v2579 = vpack.c.b16 %v2549, %v2548
    %v2580 = vpack.c.b16 %v2551, %v2550
    %v2581 = vpack.c.b16 %v2553, %v2552
    %v2582 = vpack.c.b16 %v2555, %v2554
    %v2583 = vpack.c.b16 %v2557, %v2556
    %v2584 = vpack.c.b16 %v2559, %v2558
    %v2585 = vpack.c.b16 %v2561, %v2560
    %2610 = vmatprep.subr.bf16.mxu0 0
    %2611 = vmatpush1.bf16.msra.mxu0 %v2562
    %2612 = vmatprep.subr.bf16.mxu0 0
    %2613 = vmatpush1.bf16.msra.mxu0 %v2563
    %2614 = vmatprep.subr.bf16.mxu0 0
    %2615 = vmatpush1.bf16.msra.mxu0 %v2564
    %2616 = vmatprep.subr.bf16.mxu0 0
    %2617 = vmatpush1.bf16.msra.mxu0 %v2565
    %2618 = vmatprep.subr.bf16.mxu0 0
    %2619 = vmatpush1.bf16.msra.mxu0 %v2566
    %2620 = vmatprep.subr.bf16.mxu0 0
    %2621 = vmatpush1.bf16.msra.mxu0 %v2567
    %2622 = vmatprep.subr.bf16.mxu0 0
    %2623 = vmatpush1.bf16.msra.mxu0 %v2568
    %2624 = vmatprep.subr.bf16.mxu0 0
    %2625 = vmatpush1.bf16.msra.mxu0 %v2569
    %2626 = vmatprep.subr.bf16.mxu0 0
    %2627 = vmatpush1.bf16.msra.mxu0 %v2570
    %2628 = vmatprep.subr.bf16.mxu0 0
    %2629 = vmatpush1.bf16.msra.mxu0 %v2571
    %2630 = vmatprep.subr.bf16.mxu0 0
    %2631 = vmatpush1.bf16.msra.mxu0 %v2572
    %2632 = vmatprep.subr.bf16.mxu0 0
    %2633 = vmatpush1.bf16.msra.mxu0 %v2573
    %2634 = vmatprep.subr.bf16.mxu0 0
    %2635 = vmatpush1.bf16.msra.mxu0 %v2574
    %2636 = vmatprep.subr.bf16.mxu0 0
    %2637 = vmatpush1.bf16.msra.mxu0 %v2575
    %2638 = vmatprep.subr.bf16.mxu0 0
    %2639 = vmatpush1.bf16.msra.mxu0 %v2576
    %2640 = vmatprep.subr.bf16.mxu0 0
    %2641 = vmatpush1.bf16.msra.mxu0 %v2577
    %2642 = vmatprep.mubr.bf16.mxu0 %v2409
    %2643 = vmatmul.mubr.bf16.gmra.mrb[0].mxu0 %v2408
    %v2644 = vpop.f32.mrb[0].mxu0
    %v2645 = vadd.f32 %v2464, %v2644
    %v2646 = vpop.f32.mrb[0].mxu0
    %v2647 = vpop.f32.mrb[0].mxu0
    %v2648 = vpop.f32.mrb[0].mxu0
    %2649 = vdwg.mxu0
    %2650 = vmatprep.subr.bf16.mxu0 0
    %2651 = vmatpush1.bf16.msra.mxu0 %v2578
    %2652 = vmatprep.subr.bf16.mxu0 0
    %2653 = vmatpush1.bf16.msra.mxu0 %v2579
    %2654 = vmatprep.subr.bf16.mxu0 0
    %2655 = vmatpush1.bf16.msra.mxu0 %v2580
    %2656 = vmatprep.subr.bf16.mxu0 0
    %2657 = vmatpush1.bf16.msra.mxu0 %v2581
    %2658 = vmatprep.subr.bf16.mxu0 0
    %2659 = vmatpush1.bf16.msra.mxu0 %v2582
    %2660 = vmatprep.subr.bf16.mxu0 0
    %2661 = vmatpush1.bf16.msra.mxu0 %v2583
    %2662 = vmatprep.subr.bf16.mxu0 0
    %2663 = vmatpush1.bf16.msra.mxu0 %v2584
    %2664 = vmatprep.subr.bf16.mxu0 0
    %2665 = vmatpush1.bf16.msra.mxu0 %v2585
    %2666 = vmatprep.subr.bf16.mxu0 0
    %2667 = vmatpush1.bf16.msra.mxu0 0
    %2668 = vmatprep.subr.bf16.mxu0 0
    %2669 = vmatpush1.bf16.msra.mxu0 0
    %2670 = vmatprep.subr.bf16.mxu0 0
    %2671 = vmatpush1.bf16.msra.mxu0 0
    %2672 = vmatprep.subr.bf16.mxu0 0
    %2673 = vmatpush1.bf16.msra.mxu0 0
    %2674 = vmatprep.subr.bf16.mxu0 0
    %2675 = vmatpush1.bf16.msra.mxu0 0
    %2676 = vmatprep.subr.bf16.mxu0 0
    %2677 = vmatpush1.bf16.msra.mxu0 0
    %2678 = vmatprep.subr.bf16.mxu0 0
    %2679 = vmatpush1.bf16.msra.mxu0 0
    %2680 = vmatprep.subr.bf16.mxu0 0
    %2681 = vmatpush1.bf16.msra.mxu0 0
    %2682 = vmatprep.mubr.bf16.mxu0 0
    %2683 = vmatmul.mubr.bf16.gmra.mrb[0].mxu0 %v2410
    %v2684 = vpop.f32.mrb[0].mxu0
    %v2685 = vadd.f32 %v2645, %v2684
    %v2686 = vpop.f32.mrb[0].mxu0
    %v2687 = vpop.f32.mrb[0].mxu0
    %v2688 = vpop.f32.mrb[0].mxu0
    %2689 = vdwg.mxu0
    %v2690 = vmax.f32 %v2685, 0.0
    %v2691 = vpack.c.bf16 %v2690, %v2690
    %v2692 = vld [vmem:[%s35] sm:$0xf]
    %v2693 = vld [vmem:[%s35 + $0x4] sm:$0xf]
    %v2694 = vld [vmem:[%s35 + $0x8] sm:$0xf]
    %v2695 = vld [vmem:[%s35 + $0xc] sm:$0xf]
    %v2696 = vld [vmem:[%s35 + $0x10] sm:$0xf]
    %v2697 = vld [vmem:[%s35 + $0x14] sm:$0xf]
    %v2698 = vld [vmem:[%s35 + $0x18] sm:$0xf]
    %v2699 = vld [vmem:[%s35 + $0x1c] sm:$0xf]
    %v2700 = vld [vmem:[%s35 + $0x20] sm:$0xf]
    %v2701 = vld [vmem:[%s35 + $0x24] sm:$0xf]
    %v2702 = vld [vmem:[%s35 + $0x28] sm:$0xf]
    %v2703 = vld [vmem:[%s35 + $0x2c] sm:$0xf]
    %v2704 = vld [vmem:[%s35 + $0x30] sm:$0xf]
    %v2705 = vld [vmem:[%s35 + $0x34] sm:$0xf]
    %v2706 = vld [vmem:[%s35 + $0x38] sm:$0xf]
    %v2707 = vld [vmem:[%s35 + $0x3c] sm:$0xf]
    %v2724 = vunpack.c.l.b16 %v2692
    %v2725 = vunpack.c.l.b16 %v2693
    %v2726 = vunpack.c.l.b16 %v2694
    %v2727 = vunpack.c.l.b16 %v2695
    %v2728 = vunpack.c.l.b16 %v2696
    %v2729 = vunpack.c.l.b16 %v2697
    %v2730 = vunpack.c.l.b16 %v2698
    %v2731 = vunpack.c.l.b16 %v2699
    %v2732 = vunpack.c.l.b16 %v2700
    %v2733 = vunpack.c.l.b16 %v2701
    %v2734 = vunpack.c.l.b16 %v2702
    %v2735 = vunpack.c.l.b16 %v2703
    %v2736 = vunpack.c.l.b16 %v2704
    %v2737 = vunpack.c.l.b16 %v2705
    %v2738 = vunpack.c.l.b16 %v2706
    %v2739 = vunpack.c.l.b16 %v2707
    %v2740 = vpack.c.b16 %v2725, %v2724
    %v2741 = vpack.c.b16 %v2727, %v2726
    %v2742 = vpack.c.b16 %v2729, %v2728
    %v2743 = vpack.c.b16 %v2731, %v2730
    %v2744 = vpack.c.b16 %v2733, %v2732
    %v2745 = vpack.c.b16 %v2735, %v2734
    %v2746 = vpack.c.b16 %v2737, %v2736
    %v2747 = vpack.c.b16 %v2739, %v2738
    %2756 = vmatprep.subr.bf16.mxu0 0
    %2757 = vmatpush1.bf16.msra.mxu0 %v2740
    %2758 = vmatprep.subr.bf16.mxu0 0
    %2759 = vmatpush1.bf16.msra.mxu0 %v2741
    %2760 = vmatprep.subr.bf16.mxu0 0
    %2761 = vmatpush1.bf16.msra.mxu0 %v2742
    %2762 = vmatprep.subr.bf16.mxu0 0
    %2763 = vmatpush1.bf16.msra.mxu0 %v2743
    %2764 = vmatprep.subr.bf16.mxu0 0
    %2765 = vmatpush1.bf16.msra.mxu0 %v2744
    %2766 = vmatprep.subr.bf16.mxu0 0
    %2767 = vmatpush1.bf16.msra.mxu0 %v2745
    %2768 = vmatprep.subr.bf16.mxu0 0
    %2769 = vmatpush1.bf16.msra.mxu0 %v2746
    %2770 = vmatprep.subr.bf16.mxu0 0
    %2771 = vmatpush1.bf16.msra.mxu0 %v2747
    %2772 = vmatprep.subr.bf16.mxu0 0
    %2773 = vmatpush1.bf16.msra.mxu0 0
    %2774 = vmatprep.subr.bf16.mxu0 0
    %2775 = vmatpush1.bf16.msra.mxu0 0
    %2776 = vmatprep.subr.bf16.mxu0 0
    %2777 = vmatpush1.bf16.msra.mxu0 0
    %2778 = vmatprep.subr.bf16.mxu0 0
    %2779 = vmatpush1.bf16.msra.mxu0 0
    %2780 = vmatprep.subr.bf16.mxu0 0
    %2781 = vmatpush1.bf16.msra.mxu0 0
    %2782 = vmatprep.subr.bf16.mxu0 0
    %2783 = vmatpush1.bf16.msra.mxu0 0
    %2784 = vmatprep.subr.bf16.mxu0 0
    %2785 = vmatpush1.bf16.msra.mxu0 0
    %2786 = vmatprep.subr.bf16.mxu0 0
    %2787 = vmatpush1.bf16.msra.mxu0 0
    %2788 = vmatprep.mubr.bf16.mxu0 0
    %2789 = vmatmul.mubr.bf16.gmra.mrb[0].mxu0 %v2691
    %v2790 = vpop.f32.mrb[0].mxu0
    %v2791 = vadd.f32 0.0, %v2790
    %v2792 = vpop.f32.mrb[0].mxu0
    %v2793 = vpop.f32.mrb[0].mxu0
    %v2794 = vpop.f32.mrb[0].mxu0
    %2795 = vdwg.mxu0
    %v2796 = vld [vmem:[%s37] sm:$0xf]
    %v2797 = vld [vmem:[%s37 + $0x4] sm:$0xf]
    %v2798 = vpack.c.bf16 %v2791, %v2791
    %s2799 = scalar_lea.vmem %s35, 64
    %v2800 = vld [vmem:[%s2799] sm:$0xf]
    %v2801 = vld [vmem:[%s2799 + $0x4] sm:$0xf]
    %v2802 = vld [vmem:[%s2799 + $0x8] sm:$0xf]
    %v2803 = vld [vmem:[%s2799 + $0xc] sm:$0xf]
    %v2804 = vld [vmem:[%s2799 + $0x10] sm:$0xf]
    %v2805 = vld [vmem:[%s2799 + $0x14] sm:$0xf]
    %v2806 = vld [vmem:[%s2799 + $0x18] sm:$0xf]
    %v2807 = vld [vmem:[%s2799 + $0x1c] sm:$0xf]
    %v2808 = vld [vmem:[%s2799 + $0x20] sm:$0xf]
    %v2809 = vld [vmem:[%s2799 + $0x24] sm:$0xf]
    %v2810 = vld [vmem:[%s2799 + $0x28] sm:$0xf]
    %v2811 = vld [vmem:[%s2799 + $0x2c] sm:$0xf]
    %v2812 = vld [vmem:[%s2799 + $0x30] sm:$0xf]
    %v2813 = vld [vmem:[%s2799 + $0x34] sm:$0xf]
    %v2814 = vld [vmem:[%s2799 + $0x38] sm:$0xf]
    %v2815 = vld [vmem:[%s2799 + $0x3c] sm:$0xf]
    %v2832 = vunpack.c.l.b16 %v2800
    %v2833 = vunpack.c.l.b16 %v2801
    %v2834 = vunpack.c.l.b16 %v2802
    %v2835 = vunpack.c.l.b16 %v2803
    %v2836 = vunpack.c.l.b16 %v2804
    %v2837 = vunpack.c.l.b16 %v2805
    %v2838 = vunpack.c.l.b16 %v2806
    %v2839 = vunpack.c.l.b16 %v2807
    %v2840 = vunpack.c.l.b16 %v2808
    %v2841 = vunpack.c.l.b16 %v2809
    %v2842 = vunpack.c.l.b16 %v2810
    %v2843 = vunpack.c.l.b16 %v2811
    %v2844 = vunpack.c.l.b16 %v2812
    %v2845 = vunpack.c.l.b16 %v2813
    %v2846 = vunpack.c.l.b16 %v2814
    %v2847 = vunpack.c.l.b16 %v2815
    %v2848 = vpack.c.b16 %v2833, %v2832
    %v2849 = vpack.c.b16 %v2835, %v2834
    %v2850 = vpack.c.b16 %v2837, %v2836
    %v2851 = vpack.c.b16 %v2839, %v2838
    %v2852 = vpack.c.b16 %v2841, %v2840
    %v2853 = vpack.c.b16 %v2843, %v2842
    %v2854 = vpack.c.b16 %v2845, %v2844
    %v2855 = vpack.c.b16 %v2847, %v2846
    %2864 = vmatprep.subr.bf16.mxu0 0
    %2865 = vmatpush1.bf16.msra.mxu0 %v2848
    %2866 = vmatprep.subr.bf16.mxu0 0
    %2867 = vmatpush1.bf16.msra.mxu0 %v2849
    %2868 = vmatprep.subr.bf16.mxu0 0
    %2869 = vmatpush1.bf16.msra.mxu0 %v2850
    %2870 = vmatprep.subr.bf16.mxu0 0
    %2871 = vmatpush1.bf16.msra.mxu0 %v2851
    %2872 = vmatprep.subr.bf16.mxu0 0
    %2873 = vmatpush1.bf16.msra.mxu0 %v2852
    %2874 = vmatprep.subr.bf16.mxu0 0
    %2875 = vmatpush1.bf16.msra.mxu0 %v2853
    %2876 = vmatprep.subr.bf16.mxu0 0
    %2877 = vmatpush1.bf16.msra.mxu0 %v2854
    %2878 = vmatprep.subr.bf16.mxu0 0
    %2879 = vmatpush1.bf16.msra.mxu0 %v2855
    %2880 = vmatprep.subr.bf16.mxu0 0
    %2881 = vmatpush1.bf16.msra.mxu0 0
    %2882 = vmatprep.subr.bf16.mxu0 0
    %2883 = vmatpush1.bf16.msra.mxu0 0
    %2884 = vmatprep.subr.bf16.mxu0 0
    %2885 = vmatpush1.bf16.msra.mxu0 0
    %2886 = vmatprep.subr.bf16.mxu0 0
    %2887 = vmatpush1.bf16.msra.mxu0 0
    %2888 = vmatprep.subr.bf16.mxu0 0
    %2889 = vmatpush1.bf16.msra.mxu0 0
    %2890 = vmatprep.subr.bf16.mxu0 0
    %2891 = vmatpush1.bf16.msra.mxu0 0
    %2892 = vmatprep.subr.bf16.mxu0 0
    %2893 = vmatpush1.bf16.msra.mxu0 0
    %2894 = vmatprep.subr.bf16.mxu0 0
    %2895 = vmatpush1.bf16.msra.mxu0 0
    %2896 = vmatprep.mubr.bf16.mxu0 0
    %2897 = vmatmul.mubr.bf16.gmra.mrb[0].mxu0 %v2691
    %v2898 = vpop.f32.mrb[0].mxu0
    %v2899 = vadd.f32 0.0, %v2898
    %v2900 = vpop.f32.mrb[0].mxu0
    %v2901 = vpop.f32.mrb[0].mxu0
    %v2902 = vpop.f32.mrb[0].mxu0
    %2903 = vdwg.mxu0
    %s2904 = scalar_lea.vmem %s37, 8
    %v2905 = vld [vmem:[%s2904] sm:$0xf]
    %v2906 = vld [vmem:[%s2904 + $0x4] sm:$0xf]
    %v2907 = vpack.c.bf16 %v2899, %v2899
    %v2910 = vunpack.c.l.b16 %v2905
    %v2911 = vunpack.c.l.b16 %v2906
    %v2912 = vpack.c.b16 %v2911, %v2910
    %vm2913 = vcmask 64512
    %v2915 = vsel %vm2913, %v2912, 0
    %vm2917 = vcmask 1043456
    %v2919 = vsel %vm2917, %v2907, 0
    %2921 = vmatprep.subr.bf16.mxu0 0
    %2922 = vmatpush1.bf16.msra.mxu0 %v2919
    %2923 = vmatprep.subr.bf16.mxu0 0
    %2924 = vmatpush1.bf16.msra.mxu0 0
    %2925 = vmatprep.subr.bf16.mxu0 0
    %2926 = vmatpush1.bf16.msra.mxu0 0
    %2927 = vmatprep.subr.bf16.mxu0 0
    %2928 = vmatpush1.bf16.msra.mxu0 0
    %2929 = vmatprep.subr.bf16.mxu0 0
    %2930 = vmatpush1.bf16.msra.mxu0 0
    %2931 = vmatprep.subr.bf16.mxu0 0
    %2932 = vmatpush1.bf16.msra.mxu0 0
    %2933 = vmatprep.subr.bf16.mxu0 0
    %2934 = vmatpush1.bf16.msra.mxu0 0
    %2935 = vmatprep.subr.bf16.mxu0 0
    %2936 = vmatpush1.bf16.msra.mxu0 0
    %2937 = vmatprep.subr.bf16.mxu0 0
    %2938 = vmatpush1.bf16.msra.mxu0 0
    %2939 = vmatprep.subr.bf16.mxu0 0
    %2940 = vmatpush1.bf16.msra.mxu0 0
    %2941 = vmatprep.subr.bf16.mxu0 0
    %2942 = vmatpush1.bf16.msra.mxu0 0
    %2943 = vmatprep.subr.bf16.mxu0 0
    %2944 = vmatpush1.bf16.msra.mxu0 0
    %2945 = vmatprep.subr.bf16.mxu0 0
    %2946 = vmatpush1.bf16.msra.mxu0 0
    %2947 = vmatprep.subr.bf16.mxu0 0
    %2948 = vmatpush1.bf16.msra.mxu0 0
    %2949 = vmatprep.subr.bf16.mxu0 0
    %2950 = vmatpush1.bf16.msra.mxu0 0
    %2951 = vmatprep.subr.bf16.mxu0 0
    %2952 = vmatpush1.bf16.msra.mxu0 0
    %2953 = vmatprep.mubr.bf16.mxu0 0
    %2954 = vmatmul.mubr.bf16.gmra.mrb[0].mxu0 %v2915
    %v2955 = vpop.f32.mrb[0].mxu0
    %v2956 = vadd.f32 0.0, %v2955
    %v2957 = vpop.f32.mrb[0].mxu0
    %v2958 = vpop.f32.mrb[0].mxu0
    %v2959 = vadd.f32 0.0, %v2958
    %v2960 = vpop.f32.mrb[0].mxu0
    %2961 = vdwg.mxu0
    %v2964 = vunpack.c.l.b16 %v2796
    %v2965 = vunpack.c.l.b16 %v2797
    %v2966 = vpack.c.b16 %v2965, %v2964
    %v2968 = vsel %vm2913, %v2966, 0
    %v2971 = vsel %vm2917, %v2798, 0
    %2973 = vmatprep.subr.bf16.mxu0 0
    %2974 = vmatpush1.bf16.msra.mxu0 %v2971
    %2975 = vmatprep.subr.bf16.mxu0 0
    %2976 = vmatpush1.bf16.msra.mxu0 0
    %2977 = vmatprep.subr.bf16.mxu0 0
    %2978 = vmatpush1.bf16.msra.mxu0 0
    %2979 = vmatprep.subr.bf16.mxu0 0
    %2980 = vmatpush1.bf16.msra.mxu0 0
    %2981 = vmatprep.subr.bf16.mxu0 0
    %2982 = vmatpush1.bf16.msra.mxu0 0
    %2983 = vmatprep.subr.bf16.mxu0 0
    %2984 = vmatpush1.bf16.msra.mxu0 0
    %2985 = vmatprep.subr.bf16.mxu0 0
    %2986 = vmatpush1.bf16.msra.mxu0 0
    %2987 = vmatprep.subr.bf16.mxu0 0
    %2988 = vmatpush1.bf16.msra.mxu0 0
    %2989 = vmatprep.subr.bf16.mxu0 0
    %2990 = vmatpush1.bf16.msra.mxu0 0
    %2991 = vmatprep.subr.bf16.mxu0 0
    %2992 = vmatpush1.bf16.msra.mxu0 0
    %2993 = vmatprep.subr.bf16.mxu0 0
    %2994 = vmatpush1.bf16.msra.mxu0 0
    %2995 = vmatprep.subr.bf16.mxu0 0
    %2996 = vmatpush1.bf16.msra.mxu0 0
    %2997 = vmatprep.subr.bf16.mxu0 0
    %2998 = vmatpush1.bf16.msra.mxu0 0
    %2999 = vmatprep.subr.bf16.mxu0 0
    %3000 = vmatpush1.bf16.msra.mxu0 0
    %3001 = vmatprep.subr.bf16.mxu0 0
    %3002 = vmatpush1.bf16.msra.mxu0 0
    %3003 = vmatprep.subr.bf16.mxu0 0
    %3004 = vmatpush1.bf16.msra.mxu0 0
    %3005 = vmatprep.mubr.bf16.mxu0 0
    %3006 = vmatmul.mubr.bf16.gmra.mrb[0].mxu0 %v2968
    %v3007 = vpop.f32.mrb[0].mxu0
    %v3008 = vadd.f32 %v2956, %v3007
    %v3009 = vpop.f32.mrb[0].mxu0
    %v3010 = vpop.f32.mrb[0].mxu0
    %v3011 = vadd.f32 %v2959, %v3010
    %v3012 = vpop.f32.mrb[0].mxu0
    %3013 = vdwg.mxu0
    %v3014 = vld [vmem:[#allocation19] sm:$0x1]
    %v3016 = vlaneseq
    %v3017 = vshrl.u32 %v3016, 7
    %v3018 = vsub.s32 0, %v3017
    %v3019 = vrot.slane %v3014, %v3018
    %v3021 = vadd.f32 %v3008, %v3019
    %v3022 = vadd.f32 %v3011, %v3019
    %v3025 = vrot.slane %v1914, 7
    %v3026 = vrot.slane %v1915, 7
    %v3027 = vsel %vm440, %v3025, %v3026
    %v3030 = vsel %vm440, 0.0, %v3025
    %v3031 = vrot.slane %v1914, 1
    %v3032 = vrot.slane %v1915, 1
    %v3033 = vsel %vm453, %v3031, %v3032
    %v3036 = vsel %vm453, %v3032, 0.0
    %v3037 = vsel %vm1441, 0.0, %v3030
    %v3038 = vsel %vm1442, 0.0, %v3027
    %v3039 = vsel %vm1449, 0.0, %v3033
    %v3040 = vsel %vm1450, 0.0, %v3036
    %v3043 = vrot.slane %v3021, 7
    %v3044 = vrot.slane %v3022, 7
    %v3045 = vsel %vm440, %v3043, %v3044
    %v3048 = vsel %vm440, 0.0, %v3043
    %v3049 = vrot.slane %v3021, 1
    %v3050 = vrot.slane %v3022, 1
    %v3051 = vsel %vm453, %v3049, %v3050
    %v3054 = vsel %vm453, %v3050, 0.0
    %v3055 = vsel %vm1441, 0.0, %v3048
    %v3056 = vsel %vm1442, 0.0, %v3045
    %v3057 = vsel %vm1449, 0.0, %v3051
    %v3058 = vsel %vm1450, 0.0, %v3054
    %v3059 = vpack.c.bf16 %v3038, %v3037
    %v3060 = vpack.c.bf16 %v3040, %v3039
    %v3061 = vpack.c.bf16 %v3056, %v3055
    %v3062 = vpack.c.bf16 %v3022, %v3021
    %v3063 = vpack.c.bf16 %v3058, %v3057
    %v3064 = vld [vmem:[%s41] sm:$0xf]
    %v3065 = vld [vmem:[%s41 + $0x4] sm:$0xf]
    %v3066 = vld [vmem:[%s41 + $0x8] sm:$0xf]
    %v3067 = vld [vmem:[%s41 + $0xc] sm:$0xf]
    %v3068 = vld [vmem:[%s41 + $0x10] sm:$0xf]
    %v3069 = vld [vmem:[%s41 + $0x14] sm:$0xf]
    %v3070 = vld [vmem:[%s41 + $0x18] sm:$0xf]
    %v3071 = vld [vmem:[%s41 + $0x1c] sm:$0xf]
    %v3072 = vld [vmem:[%s41 + $0x20] sm:$0xf]
    %v3073 = vld [vmem:[%s41 + $0x24] sm:$0xf]
    %v3074 = vld [vmem:[%s41 + $0x28] sm:$0xf]
    %v3075 = vld [vmem:[%s41 + $0x2c] sm:$0xf]
    %v3076 = vld [vmem:[%s41 + $0x30] sm:$0xf]
    %v3077 = vld [vmem:[%s41 + $0x34] sm:$0xf]
    %v3078 = vld [vmem:[%s41 + $0x38] sm:$0xf]
    %v3079 = vld [vmem:[%s41 + $0x3c] sm:$0xf]
    %v3080 = vld [vmem:[%s41 + $0x40] sm:$0xf]
    %v3081 = vld [vmem:[%s41 + $0x44] sm:$0xf]
    %v3082 = vld [vmem:[%s41 + $0x48] sm:$0xf]
    %v3083 = vld [vmem:[%s41 + $0x4c] sm:$0xf]
    %v3084 = vld [vmem:[%s41 + $0x50] sm:$0xf]
    %v3085 = vld [vmem:[%s41 + $0x54] sm:$0xf]
    %v3086 = vld [vmem:[%s41 + $0x58] sm:$0xf]
    %v3087 = vld [vmem:[%s41 + $0x5c] sm:$0xf]
    %v3088 = vld [vmem:[%s41 + $0x60] sm:$0xf]
    %v3089 = vld [vmem:[%s41 + $0x64] sm:$0xf]
    %v3090 = vld [vmem:[%s41 + $0x68] sm:$0xf]
    %v3091 = vld [vmem:[%s41 + $0x6c] sm:$0xf]
    %v3092 = vld [vmem:[%s41 + $0x70] sm:$0xf]
    %v3093 = vld [vmem:[%s41 + $0x74] sm:$0xf]
    %v3094 = vld [vmem:[%s41 + $0x78] sm:$0xf]
    %v3095 = vld [vmem:[%s41 + $0x7c] sm:$0xf]
    %v3096 = vld [vmem:[%s41 + $0x80] sm:$0xf]
    %v3097 = vld [vmem:[%s41 + $0x84] sm:$0xf]
    %v3098 = vld [vmem:[%s41 + $0x88] sm:$0xf]
    %v3099 = vld [vmem:[%s41 + $0x8c] sm:$0xf]
    %v3100 = vld [vmem:[%s41 + $0x90] sm:$0xf]
    %v3101 = vld [vmem:[%s41 + $0x94] sm:$0xf]
    %v3102 = vld [vmem:[%s41 + $0x98] sm:$0xf]
    %v3103 = vld [vmem:[%s41 + $0x9c] sm:$0xf]
    %v3104 = vld [vmem:[%s41 + $0xa0] sm:$0xf]
    %v3105 = vld [vmem:[%s41 + $0xa4] sm:$0xf]
    %v3106 = vld [vmem:[%s41 + $0xa8] sm:$0xf]
    %v3107 = vld [vmem:[%s41 + $0xac] sm:$0xf]
    %v3108 = vld [vmem:[%s41 + $0xb0] sm:$0xf]
    %v3109 = vld [vmem:[%s41 + $0xb4] sm:$0xf]
    %v3110 = vld [vmem:[%s41 + $0xb8] sm:$0xf]
    %v3111 = vld [vmem:[%s41 + $0xbc] sm:$0xf]
    %v3112 = vld [vmem:[%s43] sm:$0xf]
    %v3113 = vld [vmem:[%s43 + $0x4] sm:$0xf]
    %v3114 = vld [vmem:[%s43 + $0x8] sm:$0xf]
    %v3115 = vld [vmem:[%s43 + $0xc] sm:$0xf]
    %v3116 = vld [vmem:[%s43 + $0x10] sm:$0xf]
    %v3117 = vld [vmem:[%s43 + $0x14] sm:$0xf]
    %v3118 = vld [vmem:[%s43 + $0x18] sm:$0xf]
    %v3119 = vld [vmem:[%s43 + $0x1c] sm:$0xf]
    %v3120 = vld [vmem:[%s43 + $0x20] sm:$0xf]
    %v3121 = vld [vmem:[%s43 + $0x24] sm:$0xf]
    %v3122 = vld [vmem:[%s43 + $0x28] sm:$0xf]
    %v3123 = vld [vmem:[%s43 + $0x2c] sm:$0xf]
    %v3124 = vld [vmem:[%s43 + $0x30] sm:$0xf]
    %v3125 = vld [vmem:[%s43 + $0x34] sm:$0xf]
    %v3126 = vld [vmem:[%s43 + $0x38] sm:$0xf]
    %v3127 = vld [vmem:[%s43 + $0x3c] sm:$0xf]
    %v3128 = vld [vmem:[%s43 + $0x40] sm:$0xf]
    %v3129 = vld [vmem:[%s43 + $0x44] sm:$0xf]
    %v3130 = vld [vmem:[%s43 + $0x48] sm:$0xf]
    %v3131 = vld [vmem:[%s43 + $0x4c] sm:$0xf]
    %v3132 = vld [vmem:[%s43 + $0x50] sm:$0xf]
    %v3133 = vld [vmem:[%s43 + $0x54] sm:$0xf]
    %v3134 = vld [vmem:[%s43 + $0x58] sm:$0xf]
    %v3135 = vld [vmem:[%s43 + $0x5c] sm:$0xf]
    %v3136 = vld [vmem:[%s43 + $0x60] sm:$0xf]
    %v3137 = vld [vmem:[%s43 + $0x64] sm:$0xf]
    %v3138 = vld [vmem:[%s43 + $0x68] sm:$0xf]
    %v3139 = vld [vmem:[%s43 + $0x6c] sm:$0xf]
    %v3140 = vld [vmem:[%s43 + $0x70] sm:$0xf]
    %v3141 = vld [vmem:[%s43 + $0x74] sm:$0xf]
    %v3142 = vld [vmem:[%s43 + $0x78] sm:$0xf]
    %v3143 = vld [vmem:[%s43 + $0x7c] sm:$0xf]
    %v3144 = vld [vmem:[%s43 + $0x80] sm:$0xf]
    %v3145 = vld [vmem:[%s43 + $0x84] sm:$0xf]
    %v3146 = vld [vmem:[%s43 + $0x88] sm:$0xf]
    %v3147 = vld [vmem:[%s43 + $0x8c] sm:$0xf]
    %v3148 = vld [vmem:[%s43 + $0x90] sm:$0xf]
    %v3149 = vld [vmem:[%s43 + $0x94] sm:$0xf]
    %v3150 = vld [vmem:[%s43 + $0x98] sm:$0xf]
    %v3151 = vld [vmem:[%s43 + $0x9c] sm:$0xf]
    %v3152 = vld [vmem:[%s43 + $0xa0] sm:$0xf]
    %v3153 = vld [vmem:[%s43 + $0xa4] sm:$0xf]
    %v3154 = vld [vmem:[%s43 + $0xa8] sm:$0xf]
    %v3155 = vld [vmem:[%s43 + $0xac] sm:$0xf]
    %v3156 = vld [vmem:[%s43 + $0xb0] sm:$0xf]
    %v3157 = vld [vmem:[%s43 + $0xb4] sm:$0xf]
    %v3158 = vld [vmem:[%s43 + $0xb8] sm:$0xf]
    %v3159 = vld [vmem:[%s43 + $0xbc] sm:$0xf]
    %v3208 = vunpack.c.l.b16 %v3112
    %v3209 = vunpack.c.l.b16 %v3113
    %v3210 = vunpack.c.l.b16 %v3114
    %v3211 = vunpack.c.l.b16 %v3115
    %v3212 = vunpack.c.l.b16 %v3116
    %v3213 = vunpack.c.l.b16 %v3117
    %v3214 = vunpack.c.l.b16 %v3118
    %v3215 = vunpack.c.l.b16 %v3119
    %v3216 = vunpack.c.l.b16 %v3120
    %v3217 = vunpack.c.l.b16 %v3121
    %v3218 = vunpack.c.l.b16 %v3122
    %v3219 = vunpack.c.l.b16 %v3123
    %v3220 = vunpack.c.l.b16 %v3124
    %v3221 = vunpack.c.l.b16 %v3125
    %v3222 = vunpack.c.l.b16 %v3126
    %v3223 = vunpack.c.l.b16 %v3127
    %v3224 = vunpack.c.l.b16 %v3128
    %v3225 = vunpack.c.l.b16 %v3129
    %v3226 = vunpack.c.l.b16 %v3130
    %v3227 = vunpack.c.l.b16 %v3131
    %v3228 = vunpack.c.l.b16 %v3132
    %v3229 = vunpack.c.l.b16 %v3133
    %v3230 = vunpack.c.l.b16 %v3134
    %v3231 = vunpack.c.l.b16 %v3135
    %v3232 = vunpack.c.l.b16 %v3136
    %v3233 = vunpack.c.l.b16 %v3137
    %v3234 = vunpack.c.l.b16 %v3138
    %v3235 = vunpack.c.l.b16 %v3139
    %v3236 = vunpack.c.l.b16 %v3140
    %v3237 = vunpack.c.l.b16 %v3141
    %v3238 = vunpack.c.l.b16 %v3142
    %v3239 = vunpack.c.l.b16 %v3143
    %v3240 = vunpack.c.l.b16 %v3144
    %v3241 = vunpack.c.l.b16 %v3145
    %v3242 = vunpack.c.l.b16 %v3146
    %v3243 = vunpack.c.l.b16 %v3147
    %v3244 = vunpack.c.l.b16 %v3148
    %v3245 = vunpack.c.l.b16 %v3149
    %v3246 = vunpack.c.l.b16 %v3150
    %v3247 = vunpack.c.l.b16 %v3151
    %v3248 = vunpack.c.l.b16 %v3152
    %v3249 = vunpack.c.l.b16 %v3153
    %v3250 = vunpack.c.l.b16 %v3154
    %v3251 = vunpack.c.l.b16 %v3155
    %v3252 = vunpack.c.l.b16 %v3156
    %v3253 = vunpack.c.l.b16 %v3157
    %v3254 = vunpack.c.l.b16 %v3158
    %v3255 = vunpack.c.l.b16 %v3159
    %v3256 = vpack.c.b16 %v3209, %v3208
    %v3257 = vpack.c.b16 %v3211, %v3210
    %v3258 = vpack.c.b16 %v3213, %v3212
    %v3259 = vpack.c.b16 %v3215, %v3214
    %v3260 = vpack.c.b16 %v3217, %v3216
    %v3261 = vpack.c.b16 %v3219, %v3218
    %v3262 = vpack.c.b16 %v3221, %v3220
    %v3263 = vpack.c.b16 %v3223, %v3222
    %v3264 = vpack.c.b16 %v3225, %v3224
    %v3265 = vpack.c.b16 %v3227, %v3226
    %v3266 = vpack.c.b16 %v3229, %v3228
    %v3267 = vpack.c.b16 %v3231, %v3230
    %v3268 = vpack.c.b16 %v3233, %v3232
    %v3269 = vpack.c.b16 %v3235, %v3234
    %v3270 = vpack.c.b16 %v3237, %v3236
    %v3271 = vpack.c.b16 %v3239, %v3238
    %v3272 = vpack.c.b16 %v3241, %v3240
    %v3273 = vpack.c.b16 %v3243, %v3242
    %v3274 = vpack.c.b16 %v3245, %v3244
    %v3275 = vpack.c.b16 %v3247, %v3246
    %v3276 = vpack.c.b16 %v3249, %v3248
    %v3277 = vpack.c.b16 %v3251, %v3250
    %v3278 = vpack.c.b16 %v3253, %v3252
    %v3279 = vpack.c.b16 %v3255, %v3254
    %3304 = vmatprep.subr.bf16.mxu0 0
    %3305 = vmatpush1.bf16.msra.mxu0 %v3256
    %3306 = vmatprep.subr.bf16.mxu0 0
    %3307 = vmatpush1.bf16.msra.mxu0 %v3257
    %3308 = vmatprep.subr.bf16.mxu0 0
    %3309 = vmatpush1.bf16.msra.mxu0 %v3258
    %3310 = vmatprep.subr.bf16.mxu0 0
    %3311 = vmatpush1.bf16.msra.mxu0 %v3259
    %3312 = vmatprep.subr.bf16.mxu0 0
    %3313 = vmatpush1.bf16.msra.mxu0 %v3260
    %3314 = vmatprep.subr.bf16.mxu0 0
    %3315 = vmatpush1.bf16.msra.mxu0 %v3261
    %3316 = vmatprep.subr.bf16.mxu0 0
    %3317 = vmatpush1.bf16.msra.mxu0 %v3262
    %3318 = vmatprep.subr.bf16.mxu0 0
    %3319 = vmatpush1.bf16.msra.mxu0 %v3263
    %3320 = vmatprep.subr.bf16.mxu0 0
    %3321 = vmatpush1.bf16.msra.mxu0 %v3264
    %3322 = vmatprep.subr.bf16.mxu0 0
    %3323 = vmatpush1.bf16.msra.mxu0 %v3265
    %3324 = vmatprep.subr.bf16.mxu0 0
    %3325 = vmatpush1.bf16.msra.mxu0 %v3266
    %3326 = vmatprep.subr.bf16.mxu0 0
    %3327 = vmatpush1.bf16.msra.mxu0 %v3267
    %3328 = vmatprep.subr.bf16.mxu0 0
    %3329 = vmatpush1.bf16.msra.mxu0 %v3268
    %3330 = vmatprep.subr.bf16.mxu0 0
    %3331 = vmatpush1.bf16.msra.mxu0 %v3269
    %3332 = vmatprep.subr.bf16.mxu0 0
    %3333 = vmatpush1.bf16.msra.mxu0 %v3270
    %3334 = vmatprep.subr.bf16.mxu0 0
    %3335 = vmatpush1.bf16.msra.mxu0 %v3271
    %3336 = vmatprep.mubr.bf16.mxu0 %v3062
    %3337 = vmatmul.mubr.bf16.gmra.mrb[0].mxu0 %v3061
    %v3338 = vpop.f32.mrb[0].mxu0
    %v3339 = vadd.f32 0.0, %v3338
    %v3340 = vpop.f32.mrb[0].mxu0
    %v3341 = vpop.f32.mrb[0].mxu0
    %v3342 = vadd.f32 0.0, %v3341
    %v3343 = vpop.f32.mrb[0].mxu0
    %3344 = vdwg.mxu0
    %3345 = vmatprep.subr.bf16.mxu0 0
    %3346 = vmatpush1.bf16.msra.mxu0 %v3272
    %3347 = vmatprep.subr.bf16.mxu0 0
    %3348 = vmatpush1.bf16.msra.mxu0 %v3273
    %3349 = vmatprep.subr.bf16.mxu0 0
    %3350 = vmatpush1.bf16.msra.mxu0 %v3274
    %3351 = vmatprep.subr.bf16.mxu0 0
    %3352 = vmatpush1.bf16.msra.mxu0 %v3275
    %3353 = vmatprep.subr.bf16.mxu0 0
    %3354 = vmatpush1.bf16.msra.mxu0 %v3276
    %3355 = vmatprep.subr.bf16.mxu0 0
    %3356 = vmatpush1.bf16.msra.mxu0 %v3277
    %3357 = vmatprep.subr.bf16.mxu0 0
    %3358 = vmatpush1.bf16.msra.mxu0 %v3278
    %3359 = vmatprep.subr.bf16.mxu0 0
    %3360 = vmatpush1.bf16.msra.mxu0 %v3279
    %3361 = vmatprep.subr.bf16.mxu0 0
    %3362 = vmatpush1.bf16.msra.mxu0 0
    %3363 = vmatprep.subr.bf16.mxu0 0
    %3364 = vmatpush1.bf16.msra.mxu0 0
    %3365 = vmatprep.subr.bf16.mxu0 0
    %3366 = vmatpush1.bf16.msra.mxu0 0
    %3367 = vmatprep.subr.bf16.mxu0 0
    %3368 = vmatpush1.bf16.msra.mxu0 0
    %3369 = vmatprep.subr.bf16.mxu0 0
    %3370 = vmatpush1.bf16.msra.mxu0 0
    %3371 = vmatprep.subr.bf16.mxu0 0
    %3372 = vmatpush1.bf16.msra.mxu0 0
    %3373 = vmatprep.subr.bf16.mxu0 0
    %3374 = vmatpush1.bf16.msra.mxu0 0
    %3375 = vmatprep.subr.bf16.mxu0 0
    %3376 = vmatpush1.bf16.msra.mxu0 0
    %3377 = vmatprep.mubr.bf16.mxu0 0
    %3378 = vmatmul.mubr.bf16.gmra.mrb[0].mxu0 %v3063
    %v3379 = vpop.f32.mrb[0].mxu0
    %v3380 = vadd.f32 %v3339, %v3379
    %v3381 = vpop.f32.mrb[0].mxu0
    %v3382 = vpop.f32.mrb[0].mxu0
    %v3383 = vadd.f32 %v3342, %v3382
    %v3384 = vpop.f32.mrb[0].mxu0
    %3385 = vdwg.mxu0
    %v3434 = vunpack.c.l.b16 %v3064
    %v3435 = vunpack.c.l.b16 %v3065
    %v3436 = vunpack.c.l.b16 %v3066
    %v3437 = vunpack.c.l.b16 %v3067
    %v3438 = vunpack.c.l.b16 %v3068
    %v3439 = vunpack.c.l.b16 %v3069
    %v3440 = vunpack.c.l.b16 %v3070
    %v3441 = vunpack.c.l.b16 %v3071
    %v3442 = vunpack.c.l.b16 %v3072
    %v3443 = vunpack.c.l.b16 %v3073
    %v3444 = vunpack.c.l.b16 %v3074
    %v3445 = vunpack.c.l.b16 %v3075
    %v3446 = vunpack.c.l.b16 %v3076
    %v3447 = vunpack.c.l.b16 %v3077
    %v3448 = vunpack.c.l.b16 %v3078
    %v3449 = vunpack.c.l.b16 %v3079
    %v3450 = vunpack.c.l.b16 %v3080
    %v3451 = vunpack.c.l.b16 %v3081
    %v3452 = vunpack.c.l.b16 %v3082
    %v3453 = vunpack.c.l.b16 %v3083
    %v3454 = vunpack.c.l.b16 %v3084
    %v3455 = vunpack.c.l.b16 %v3085
    %v3456 = vunpack.c.l.b16 %v3086
    %v3457 = vunpack.c.l.b16 %v3087
    %v3458 = vunpack.c.l.b16 %v3088
    %v3459 = vunpack.c.l.b16 %v3089
    %v3460 = vunpack.c.l.b16 %v3090
    %v3461 = vunpack.c.l.b16 %v3091
    %v3462 = vunpack.c.l.b16 %v3092
    %v3463 = vunpack.c.l.b16 %v3093
    %v3464 = vunpack.c.l.b16 %v3094
    %v3465 = vunpack.c.l.b16 %v3095
    %v3466 = vunpack.c.l.b16 %v3096
    %v3467 = vunpack.c.l.b16 %v3097
    %v3468 = vunpack.c.l.b16 %v3098
    %v3469 = vunpack.c.l.b16 %v3099
    %v3470 = vunpack.c.l.b16 %v3100
    %v3471 = vunpack.c.l.b16 %v3101
    %v3472 = vunpack.c.l.b16 %v3102
    %v3473 = vunpack.c.l.b16 %v3103
    %v3474 = vunpack.c.l.b16 %v3104
    %v3475 = vunpack.c.l.b16 %v3105
    %v3476 = vunpack.c.l.b16 %v3106
    %v3477 = vunpack.c.l.b16 %v3107
    %v3478 = vunpack.c.l.b16 %v3108
    %v3479 = vunpack.c.l.b16 %v3109
    %v3480 = vunpack.c.l.b16 %v3110
    %v3481 = vunpack.c.l.b16 %v3111
    %v3482 = vpack.c.b16 %v3435, %v3434
    %v3483 = vpack.c.b16 %v3437, %v3436
    %v3484 = vpack.c.b16 %v3439, %v3438
    %v3485 = vpack.c.b16 %v3441, %v3440
    %v3486 = vpack.c.b16 %v3443, %v3442
    %v3487 = vpack.c.b16 %v3445, %v3444
    %v3488 = vpack.c.b16 %v3447, %v3446
    %v3489 = vpack.c.b16 %v3449, %v3448
    %v3490 = vpack.c.b16 %v3451, %v3450
    %v3491 = vpack.c.b16 %v3453, %v3452
    %v3492 = vpack.c.b16 %v3455, %v3454
    %v3493 = vpack.c.b16 %v3457, %v3456
    %v3494 = vpack.c.b16 %v3459, %v3458
    %v3495 = vpack.c.b16 %v3461, %v3460
    %v3496 = vpack.c.b16 %v3463, %v3462
    %v3497 = vpack.c.b16 %v3465, %v3464
    %v3498 = vpack.c.b16 %v3467, %v3466
    %v3499 = vpack.c.b16 %v3469, %v3468
    %v3500 = vpack.c.b16 %v3471, %v3470
    %v3501 = vpack.c.b16 %v3473, %v3472
    %v3502 = vpack.c.b16 %v3475, %v3474
    %v3503 = vpack.c.b16 %v3477, %v3476
    %v3504 = vpack.c.b16 %v3479, %v3478
    %v3505 = vpack.c.b16 %v3481, %v3480
    %3530 = vmatprep.subr.bf16.mxu0 0
    %3531 = vmatpush1.bf16.msra.mxu0 %v3482
    %3532 = vmatprep.subr.bf16.mxu0 0
    %3533 = vmatpush1.bf16.msra.mxu0 %v3483
    %3534 = vmatprep.subr.bf16.mxu0 0
    %3535 = vmatpush1.bf16.msra.mxu0 %v3484
    %3536 = vmatprep.subr.bf16.mxu0 0
    %3537 = vmatpush1.bf16.msra.mxu0 %v3485
    %3538 = vmatprep.subr.bf16.mxu0 0
    %3539 = vmatpush1.bf16.msra.mxu0 %v3486
    %3540 = vmatprep.subr.bf16.mxu0 0
    %3541 = vmatpush1.bf16.msra.mxu0 %v3487
    %3542 = vmatprep.subr.bf16.mxu0 0
    %3543 = vmatpush1.bf16.msra.mxu0 %v3488
    %3544 = vmatprep.subr.bf16.mxu0 0
    %3545 = vmatpush1.bf16.msra.mxu0 %v3489
    %3546 = vmatprep.subr.bf16.mxu0 0
    %3547 = vmatpush1.bf16.msra.mxu0 %v3490
    %3548 = vmatprep.subr.bf16.mxu0 0
    %3549 = vmatpush1.bf16.msra.mxu0 %v3491
    %3550 = vmatprep.subr.bf16.mxu0 0
    %3551 = vmatpush1.bf16.msra.mxu0 %v3492
    %3552 = vmatprep.subr.bf16.mxu0 0
    %3553 = vmatpush1.bf16.msra.mxu0 %v3493
    %3554 = vmatprep.subr.bf16.mxu0 0
    %3555 = vmatpush1.bf16.msra.mxu0 %v3494
    %3556 = vmatprep.subr.bf16.mxu0 0
    %3557 = vmatpush1.bf16.msra.mxu0 %v3495
    %3558 = vmatprep.subr.bf16.mxu0 0
    %3559 = vmatpush1.bf16.msra.mxu0 %v3496
    %3560 = vmatprep.subr.bf16.mxu0 0
    %3561 = vmatpush1.bf16.msra.mxu0 %v3497
    %3562 = vmatprep.mubr.bf16.mxu0 %v1916
    %3563 = vmatmul.mubr.bf16.gmra.mrb[0].mxu0 %v3059
    %v3564 = vpop.f32.mrb[0].mxu0
    %v3565 = vadd.f32 %v3380, %v3564
    %v3566 = vpop.f32.mrb[0].mxu0
    %v3567 = vpop.f32.mrb[0].mxu0
    %v3568 = vadd.f32 %v3383, %v3567
    %v3569 = vpop.f32.mrb[0].mxu0
    %3570 = vdwg.mxu0
    %3571 = vmatprep.subr.bf16.mxu0 0
    %3572 = vmatpush1.bf16.msra.mxu0 %v3498
    %3573 = vmatprep.subr.bf16.mxu0 0
    %3574 = vmatpush1.bf16.msra.mxu0 %v3499
    %3575 = vmatprep.subr.bf16.mxu0 0
    %3576 = vmatpush1.bf16.msra.mxu0 %v3500
    %3577 = vmatprep.subr.bf16.mxu0 0
    %3578 = vmatpush1.bf16.msra.mxu0 %v3501
    %3579 = vmatprep.subr.bf16.mxu0 0
    %3580 = vmatpush1.bf16.msra.mxu0 %v3502
    %3581 = vmatprep.subr.bf16.mxu0 0
    %3582 = vmatpush1.bf16.msra.mxu0 %v3503
    %3583 = vmatprep.subr.bf16.mxu0 0
    %3584 = vmatpush1.bf16.msra.mxu0 %v3504
    %3585 = vmatprep.subr.bf16.mxu0 0
    %3586 = vmatpush1.bf16.msra.mxu0 %v3505
    %3587 = vmatprep.subr.bf16.mxu0 0
    %3588 = vmatpush1.bf16.msra.mxu0 0
    %3589 = vmatprep.subr.bf16.mxu0 0
    %3590 = vmatpush1.bf16.msra.mxu0 0
    %3591 = vmatprep.subr.bf16.mxu0 0
    %3592 = vmatpush1.bf16.msra.mxu0 0
    %3593 = vmatprep.subr.bf16.mxu0 0
    %3594 = vmatpush1.bf16.msra.mxu0 0
    %3595 = vmatprep.subr.bf16.mxu0 0
    %3596 = vmatpush1.bf16.msra.mxu0 0
    %3597 = vmatprep.subr.bf16.mxu0 0
    %3598 = vmatpush1.bf16.msra.mxu0 0
    %3599 = vmatprep.subr.bf16.mxu0 0
    %3600 = vmatpush1.bf16.msra.mxu0 0
    %3601 = vmatprep.subr.bf16.mxu0 0
    %3602 = vmatpush1.bf16.msra.mxu0 0
    %3603 = vmatprep.mubr.bf16.mxu0 0
    %3604 = vmatmul.mubr.bf16.gmra.mrb[0].mxu0 %v3060
    %v3605 = vpop.f32.mrb[0].mxu0
    %v3606 = vadd.f32 %v3565, %v3605
    %v3607 = vpop.f32.mrb[0].mxu0
    %v3608 = vpop.f32.mrb[0].mxu0
    %v3609 = vadd.f32 %v3568, %v3608
    %v3610 = vpop.f32.mrb[0].mxu0
    %3611 = vdwg.mxu0
    %v3612 = vld [vmem:[#allocation21] sm:$0x1]
    %v3614 = vlaneseq
    %v3615 = vshrl.u32 %v3614, 7
    %v3616 = vsub.s32 0, %v3615
    %v3617 = vrot.slane %v3612, %v3616
    %v3619 = vadd.f32 %v3606, %v3617
    %v3620 = vadd.f32 %v3609, %v3617
    %v3621 = vmax.f32 %v3619, 0.0
    %v3622 = vmax.f32 %v3620, 0.0
    %v3625 = vrot.slane %v3621, 7
    %v3626 = vrot.slane %v3622, 7
    %v3627 = vsel %vm440, %v3625, %v3626
    %v3630 = vsel %vm440, 0.0, %v3625
    %v3631 = vrot.slane %v3621, 1
    %v3632 = vrot.slane %v3622, 1
    %v3633 = vsel %vm453, %v3631, %v3632
    %v3636 = vsel %vm453, %v3632, 0.0
    %v3637 = vsel %vm1441, 0.0, %v3630
    %v3638 = vsel %vm1442, 0.0, %v3627
    %v3639 = vsel %vm1449, 0.0, %v3633
    %v3640 = vsel %vm1450, 0.0, %v3636
    %v3641 = vpack.c.bf16 %v3638, %v3637
    %v3642 = vpack.c.bf16 %v3622, %v3621
    %v3643 = vpack.c.bf16 %v3640, %v3639
    %v3644 = vld [vmem:[#allocation22] sm:$0xf]
    %v3645 = vld [vmem:[#allocation22 + $0x4] sm:$0xf]
    %v3646 = vld [vmem:[#allocation22 + $0x8] sm:$0xf]
    %v3647 = vld [vmem:[#allocation22 + $0xc] sm:$0xf]
    %v3648 = vld [vmem:[#allocation22 + $0x10] sm:$0xf]
    %v3649 = vld [vmem:[#allocation22 + $0x14] sm:$0xf]
    %v3650 = vld [vmem:[#allocation22 + $0x18] sm:$0xf]
    %v3651 = vld [vmem:[#allocation22 + $0x1c] sm:$0xf]
    %v3652 = vld [vmem:[#allocation22 + $0x20] sm:$0xf]
    %v3653 = vld [vmem:[#allocation22 + $0x24] sm:$0xf]
    %v3654 = vld [vmem:[#allocation22 + $0x28] sm:$0xf]
    %v3655 = vld [vmem:[#allocation22 + $0x2c] sm:$0xf]
    %v3656 = vld [vmem:[#allocation22 + $0x30] sm:$0xf]
    %v3657 = vld [vmem:[#allocation22 + $0x34] sm:$0xf]
    %v3658 = vld [vmem:[#allocation22 + $0x38] sm:$0xf]
    %v3659 = vld [vmem:[#allocation22 + $0x3c] sm:$0xf]
    %v3660 = vld [vmem:[#allocation22 + $0x40] sm:$0xf]
    %v3661 = vld [vmem:[#allocation22 + $0x44] sm:$0xf]
    %v3662 = vld [vmem:[#allocation22 + $0x48] sm:$0xf]
    %v3663 = vld [vmem:[#allocation22 + $0x4c] sm:$0xf]
    %v3664 = vld [vmem:[#allocation22 + $0x50] sm:$0xf]
    %v3665 = vld [vmem:[#allocation22 + $0x54] sm:$0xf]
    %v3666 = vld [vmem:[#allocation22 + $0x58] sm:$0xf]
    %v3667 = vld [vmem:[#allocation22 + $0x5c] sm:$0xf]
    %v3668 = vld [vmem:[#allocation22 + $0x60] sm:$0xf]
    %v3669 = vld [vmem:[#allocation22 + $0x64] sm:$0xf]
    %v3670 = vld [vmem:[#allocation22 + $0x68] sm:$0xf]
    %v3671 = vld [vmem:[#allocation22 + $0x6c] sm:$0xf]
    %v3672 = vld [vmem:[#allocation22 + $0x70] sm:$0xf]
    %v3673 = vld [vmem:[#allocation22 + $0x74] sm:$0xf]
    %v3674 = vld [vmem:[#allocation22 + $0x78] sm:$0xf]
    %v3675 = vld [vmem:[#allocation22 + $0x7c] sm:$0xf]
    %v3676 = vld [vmem:[#allocation22 + $0x80] sm:$0xf]
    %v3677 = vld [vmem:[#allocation22 + $0x84] sm:$0xf]
    %v3678 = vld [vmem:[#allocation22 + $0x88] sm:$0xf]
    %v3679 = vld [vmem:[#allocation22 + $0x8c] sm:$0xf]
    %v3680 = vld [vmem:[#allocation22 + $0x90] sm:$0xf]
    %v3681 = vld [vmem:[#allocation22 + $0x94] sm:$0xf]
    %v3682 = vld [vmem:[#allocation22 + $0x98] sm:$0xf]
    %v3683 = vld [vmem:[#allocation22 + $0x9c] sm:$0xf]
    %v3684 = vld [vmem:[#allocation22 + $0xa0] sm:$0xf]
    %v3685 = vld [vmem:[#allocation22 + $0xa4] sm:$0xf]
    %v3686 = vld [vmem:[#allocation22 + $0xa8] sm:$0xf]
    %v3687 = vld [vmem:[#allocation22 + $0xac] sm:$0xf]
    %v3688 = vld [vmem:[#allocation22 + $0xb0] sm:$0xf]
    %v3689 = vld [vmem:[#allocation22 + $0xb4] sm:$0xf]
    %v3690 = vld [vmem:[#allocation22 + $0xb8] sm:$0xf]
    %v3691 = vld [vmem:[#allocation22 + $0xbc] sm:$0xf]
    %v3692 = vld [vmem:[#allocation24] sm:$0x1]
    %v3694 = vlaneseq
    %v3695 = vshrl.u32 %v3694, 7
    %v3696 = vsub.s32 0, %v3695
    %v3697 = vrot.slane %v3692, %v3696
    %v3747 = vunpack.c.l.b16 %v3644
    %v3748 = vunpack.c.l.b16 %v3645
    %v3749 = vunpack.c.l.b16 %v3646
    %v3750 = vunpack.c.l.b16 %v3647
    %v3751 = vunpack.c.l.b16 %v3648
    %v3752 = vunpack.c.l.b16 %v3649
    %v3753 = vunpack.c.l.b16 %v3650
    %v3754 = vunpack.c.l.b16 %v3651
    %v3755 = vunpack.c.l.b16 %v3652
    %v3756 = vunpack.c.l.b16 %v3653
    %v3757 = vunpack.c.l.b16 %v3654
    %v3758 = vunpack.c.l.b16 %v3655
    %v3759 = vunpack.c.l.b16 %v3656
    %v3760 = vunpack.c.l.b16 %v3657
    %v3761 = vunpack.c.l.b16 %v3658
    %v3762 = vunpack.c.l.b16 %v3659
    %v3763 = vunpack.c.l.b16 %v3660
    %v3764 = vunpack.c.l.b16 %v3661
    %v3765 = vunpack.c.l.b16 %v3662
    %v3766 = vunpack.c.l.b16 %v3663
    %v3767 = vunpack.c.l.b16 %v3664
    %v3768 = vunpack.c.l.b16 %v3665
    %v3769 = vunpack.c.l.b16 %v3666
    %v3770 = vunpack.c.l.b16 %v3667
    %v3771 = vunpack.c.l.b16 %v3668
    %v3772 = vunpack.c.l.b16 %v3669
    %v3773 = vunpack.c.l.b16 %v3670
    %v3774 = vunpack.c.l.b16 %v3671
    %v3775 = vunpack.c.l.b16 %v3672
    %v3776 = vunpack.c.l.b16 %v3673
    %v3777 = vunpack.c.l.b16 %v3674
    %v3778 = vunpack.c.l.b16 %v3675
    %v3779 = vunpack.c.l.b16 %v3676
    %v3780 = vunpack.c.l.b16 %v3677
    %v3781 = vunpack.c.l.b16 %v3678
    %v3782 = vunpack.c.l.b16 %v3679
    %v3783 = vunpack.c.l.b16 %v3680
    %v3784 = vunpack.c.l.b16 %v3681
    %v3785 = vunpack.c.l.b16 %v3682
    %v3786 = vunpack.c.l.b16 %v3683
    %v3787 = vunpack.c.l.b16 %v3684
    %v3788 = vunpack.c.l.b16 %v3685
    %v3789 = vunpack.c.l.b16 %v3686
    %v3790 = vunpack.c.l.b16 %v3687
    %v3791 = vunpack.c.l.b16 %v3688
    %v3792 = vunpack.c.l.b16 %v3689
    %v3793 = vunpack.c.l.b16 %v3690
    %v3794 = vunpack.c.l.b16 %v3691
    %v3795 = vpack.c.b16 %v3748, %v3747
    %v3796 = vpack.c.b16 %v3750, %v3749
    %v3797 = vpack.c.b16 %v3752, %v3751
    %v3798 = vpack.c.b16 %v3754, %v3753
    %v3799 = vpack.c.b16 %v3756, %v3755
    %v3800 = vpack.c.b16 %v3758, %v3757
    %v3801 = vpack.c.b16 %v3760, %v3759
    %v3802 = vpack.c.b16 %v3762, %v3761
    %v3803 = vpack.c.b16 %v3764, %v3763
    %v3804 = vpack.c.b16 %v3766, %v3765
    %v3805 = vpack.c.b16 %v3768, %v3767
    %v3806 = vpack.c.b16 %v3770, %v3769
    %v3807 = vpack.c.b16 %v3772, %v3771
    %v3808 = vpack.c.b16 %v3774, %v3773
    %v3809 = vpack.c.b16 %v3776, %v3775
    %v3810 = vpack.c.b16 %v3778, %v3777
    %v3811 = vpack.c.b16 %v3780, %v3779
    %v3812 = vpack.c.b16 %v3782, %v3781
    %v3813 = vpack.c.b16 %v3784, %v3783
    %v3814 = vpack.c.b16 %v3786, %v3785
    %v3815 = vpack.c.b16 %v3788, %v3787
    %v3816 = vpack.c.b16 %v3790, %v3789
    %v3817 = vpack.c.b16 %v3792, %v3791
    %v3818 = vpack.c.b16 %v3794, %v3793
    %3843 = vmatprep.subr.bf16.mxu0 0
    %3844 = vmatpush1.bf16.msra.mxu0 %v3795
    %3845 = vmatprep.subr.bf16.mxu0 0
    %3846 = vmatpush1.bf16.msra.mxu0 %v3796
    %3847 = vmatprep.subr.bf16.mxu0 0
    %3848 = vmatpush1.bf16.msra.mxu0 %v3797
    %3849 = vmatprep.subr.bf16.mxu0 0
    %3850 = vmatpush1.bf16.msra.mxu0 %v3798
    %3851 = vmatprep.subr.bf16.mxu0 0
    %3852 = vmatpush1.bf16.msra.mxu0 %v3799
    %3853 = vmatprep.subr.bf16.mxu0 0
    %3854 = vmatpush1.bf16.msra.mxu0 %v3800
    %3855 = vmatprep.subr.bf16.mxu0 0
    %3856 = vmatpush1.bf16.msra.mxu0 %v3801
    %3857 = vmatprep.subr.bf16.mxu0 0
    %3858 = vmatpush1.bf16.msra.mxu0 %v3802
    %3859 = vmatprep.subr.bf16.mxu0 0
    %3860 = vmatpush1.bf16.msra.mxu0 %v3803
    %3861 = vmatprep.subr.bf16.mxu0 0
    %3862 = vmatpush1.bf16.msra.mxu0 %v3804
    %3863 = vmatprep.subr.bf16.mxu0 0
    %3864 = vmatpush1.bf16.msra.mxu0 %v3805
    %3865 = vmatprep.subr.bf16.mxu0 0
    %3866 = vmatpush1.bf16.msra.mxu0 %v3806
    %3867 = vmatprep.subr.bf16.mxu0 0
    %3868 = vmatpush1.bf16.msra.mxu0 %v3807
    %3869 = vmatprep.subr.bf16.mxu0 0
    %3870 = vmatpush1.bf16.msra.mxu0 %v3808
    %3871 = vmatprep.subr.bf16.mxu0 0
    %3872 = vmatpush1.bf16.msra.mxu0 %v3809
    %3873 = vmatprep.subr.bf16.mxu0 0
    %3874 = vmatpush1.bf16.msra.mxu0 %v3810
    %3875 = vmatprep.mubr.bf16.mxu0 %v3642
    %3876 = vmatmul.mubr.bf16.gmra.mrb[0].mxu0 %v3641
    %v3877 = vpop.f32.mrb[0].mxu0
    %v3878 = vadd.f32 %v3697, %v3877
    %v3879 = vpop.f32.mrb[0].mxu0
    %v3880 = vpop.f32.mrb[0].mxu0
    %v3881 = vadd.f32 %v3697, %v3880
    %v3882 = vpop.f32.mrb[0].mxu0
    %3883 = vdwg.mxu0
    %3884 = vmatprep.subr.bf16.mxu0 0
    %3885 = vmatpush1.bf16.msra.mxu0 %v3811
    %3886 = vmatprep.subr.bf16.mxu0 0
    %3887 = vmatpush1.bf16.msra.mxu0 %v3812
    %3888 = vmatprep.subr.bf16.mxu0 0
    %3889 = vmatpush1.bf16.msra.mxu0 %v3813
    %3890 = vmatprep.subr.bf16.mxu0 0
    %3891 = vmatpush1.bf16.msra.mxu0 %v3814
    %3892 = vmatprep.subr.bf16.mxu0 0
    %3893 = vmatpush1.bf16.msra.mxu0 %v3815
    %3894 = vmatprep.subr.bf16.mxu0 0
    %3895 = vmatpush1.bf16.msra.mxu0 %v3816
    %3896 = vmatprep.subr.bf16.mxu0 0
    %3897 = vmatpush1.bf16.msra.mxu0 %v3817
    %3898 = vmatprep.subr.bf16.mxu0 0
    %3899 = vmatpush1.bf16.msra.mxu0 %v3818
    %3900 = vmatprep.subr.bf16.mxu0 0
    %3901 = vmatpush1.bf16.msra.mxu0 0
    %3902 = vmatprep.subr.bf16.mxu0 0
    %3903 = vmatpush1.bf16.msra.mxu0 0
    %3904 = vmatprep.subr.bf16.mxu0 0
    %3905 = vmatpush1.bf16.msra.mxu0 0
    %3906 = vmatprep.subr.bf16.mxu0 0
    %3907 = vmatpush1.bf16.msra.mxu0 0
    %3908 = vmatprep.subr.bf16.mxu0 0
    %3909 = vmatpush1.bf16.msra.mxu0 0
    %3910 = vmatprep.subr.bf16.mxu0 0
    %3911 = vmatpush1.bf16.msra.mxu0 0
    %3912 = vmatprep.subr.bf16.mxu0 0
    %3913 = vmatpush1.bf16.msra.mxu0 0
    %3914 = vmatprep.subr.bf16.mxu0 0
    %3915 = vmatpush1.bf16.msra.mxu0 0
    %3916 = vmatprep.mubr.bf16.mxu0 0
    %3917 = vmatmul.mubr.bf16.gmra.mrb[0].mxu0 %v3643
    %v3918 = vpop.f32.mrb[0].mxu0
    %v3919 = vadd.f32 %v3878, %v3918
    %v3920 = vpop.f32.mrb[0].mxu0
    %v3921 = vpop.f32.mrb[0].mxu0
    %v3922 = vadd.f32 %v3881, %v3921
    %v3923 = vpop.f32.mrb[0].mxu0
    %3924 = vdwg.mxu0
    %v3925 = vmax.f32 %v3919, 0.0
    %v3926 = vmax.f32 %v3922, 0.0
    %v3927 = vpack.c.bf16 %v3926, %v3925
    %v3928 = vld [vmem:[#allocation25] sm:$0xf]
    %v3929 = vld [vmem:[#allocation25 + $0x4] sm:$0xf]
    %v3930 = vld [vmem:[#allocation25 + $0x8] sm:$0xf]
    %v3931 = vld [vmem:[#allocation25 + $0xc] sm:$0xf]
    %v3932 = vld [vmem:[#allocation25 + $0x10] sm:$0xf]
    %v3933 = vld [vmem:[#allocation25 + $0x14] sm:$0xf]
    %v3934 = vld [vmem:[#allocation25 + $0x18] sm:$0xf]
    %v3935 = vld [vmem:[#allocation25 + $0x1c] sm:$0xf]
    %v3936 = vld [vmem:[#allocation25 + $0x20] sm:$0xf]
    %v3937 = vld [vmem:[#allocation25 + $0x24] sm:$0xf]
    %v3938 = vld [vmem:[#allocation25 + $0x28] sm:$0xf]
    %v3939 = vld [vmem:[#allocation25 + $0x2c] sm:$0xf]
    %v3940 = vld [vmem:[#allocation25 + $0x30] sm:$0xf]
    %v3941 = vld [vmem:[#allocation25 + $0x34] sm:$0xf]
    %v3942 = vld [vmem:[#allocation25 + $0x38] sm:$0xf]
    %v3943 = vld [vmem:[#allocation25 + $0x3c] sm:$0xf]
    %v3960 = vunpack.c.l.b16 %v3928
    %v3961 = vunpack.c.l.b16 %v3929
    %v3962 = vunpack.c.l.b16 %v3930
    %v3963 = vunpack.c.l.b16 %v3931
    %v3964 = vunpack.c.l.b16 %v3932
    %v3965 = vunpack.c.l.b16 %v3933
    %v3966 = vunpack.c.l.b16 %v3934
    %v3967 = vunpack.c.l.b16 %v3935
    %v3968 = vunpack.c.l.b16 %v3936
    %v3969 = vunpack.c.l.b16 %v3937
    %v3970 = vunpack.c.l.b16 %v3938
    %v3971 = vunpack.c.l.b16 %v3939
    %v3972 = vunpack.c.l.b16 %v3940
    %v3973 = vunpack.c.l.b16 %v3941
    %v3974 = vunpack.c.l.b16 %v3942
    %v3975 = vunpack.c.l.b16 %v3943
    %v3976 = vpack.c.b16 %v3961, %v3960
    %v3977 = vpack.c.b16 %v3963, %v3962
    %v3978 = vpack.c.b16 %v3965, %v3964
    %v3979 = vpack.c.b16 %v3967, %v3966
    %v3980 = vpack.c.b16 %v3969, %v3968
    %v3981 = vpack.c.b16 %v3971, %v3970
    %v3982 = vpack.c.b16 %v3973, %v3972
    %v3983 = vpack.c.b16 %v3975, %v3974
    %3992 = vmatprep.subr.bf16.mxu0 0
    %3993 = vmatpush1.bf16.msra.mxu0 %v3976
    %3994 = vmatprep.subr.bf16.mxu0 0
    %3995 = vmatpush1.bf16.msra.mxu0 %v3977
    %3996 = vmatprep.subr.bf16.mxu0 0
    %3997 = vmatpush1.bf16.msra.mxu0 %v3978
    %3998 = vmatprep.subr.bf16.mxu0 0
    %3999 = vmatpush1.bf16.msra.mxu0 %v3979
    %4000 = vmatprep.subr.bf16.mxu0 0
    %4001 = vmatpush1.bf16.msra.mxu0 %v3980
    %4002 = vmatprep.subr.bf16.mxu0 0
    %4003 = vmatpush1.bf16.msra.mxu0 %v3981
    %4004 = vmatprep.subr.bf16.mxu0 0
    %4005 = vmatpush1.bf16.msra.mxu0 %v3982
    %4006 = vmatprep.subr.bf16.mxu0 0
    %4007 = vmatpush1.bf16.msra.mxu0 %v3983
    %4008 = vmatprep.subr.bf16.mxu0 0
    %4009 = vmatpush1.bf16.msra.mxu0 0
    %4010 = vmatprep.subr.bf16.mxu0 0
    %4011 = vmatpush1.bf16.msra.mxu0 0
    %4012 = vmatprep.subr.bf16.mxu0 0
    %4013 = vmatpush1.bf16.msra.mxu0 0
    %4014 = vmatprep.subr.bf16.mxu0 0
    %4015 = vmatpush1.bf16.msra.mxu0 0
    %4016 = vmatprep.subr.bf16.mxu0 0
    %4017 = vmatpush1.bf16.msra.mxu0 0
    %4018 = vmatprep.subr.bf16.mxu0 0
    %4019 = vmatpush1.bf16.msra.mxu0 0
    %4020 = vmatprep.subr.bf16.mxu0 0
    %4021 = vmatpush1.bf16.msra.mxu0 0
    %4022 = vmatprep.subr.bf16.mxu0 0
    %4023 = vmatpush1.bf16.msra.mxu0 0
    %4024 = vmatprep.mubr.bf16.mxu0 0
    %4025 = vmatmul.mubr.bf16.gmra.mrb[0].mxu0 %v3927
    %v4026 = vpop.f32.mrb[0].mxu0
    %v4027 = vadd.f32 0.0, %v4026
    %v4028 = vpop.f32.mrb[0].mxu0
    %v4029 = vpop.f32.mrb[0].mxu0
    %v4030 = vadd.f32 0.0, %v4029
    %v4031 = vpop.f32.mrb[0].mxu0
    %4032 = vdwg.mxu0
    %v4033 = vld [vmem:[%s53] sm:$0xf]
    %v4034 = vld [vmem:[%s53 + $0x4] sm:$0xf]
    %v4035 = vld [vmem:[%s53 + $0x8] sm:$0xf]
    %v4036 = vld [vmem:[%s53 + $0xc] sm:$0xf]
    %v4037 = vpack.c.bf16 %v4030, %v4027
    %s4038 = scalar_lea.vmem [#allocation25], 64
    %v4039 = vld [vmem:[%s4038] sm:$0xf]
    %v4040 = vld [vmem:[%s4038 + $0x4] sm:$0xf]
    %v4041 = vld [vmem:[%s4038 + $0x8] sm:$0xf]
    %v4042 = vld [vmem:[%s4038 + $0xc] sm:$0xf]
    %v4043 = vld [vmem:[%s4038 + $0x10] sm:$0xf]
    %v4044 = vld [vmem:[%s4038 + $0x14] sm:$0xf]
    %v4045 = vld [vmem:[%s4038 + $0x18] sm:$0xf]
    %v4046 = vld [vmem:[%s4038 + $0x1c] sm:$0xf]
    %v4047 = vld [vmem:[%s4038 + $0x20] sm:$0xf]
    %v4048 = vld [vmem:[%s4038 + $0x24] sm:$0xf]
    %v4049 = vld [vmem:[%s4038 + $0x28] sm:$0xf]
    %v4050 = vld [vmem:[%s4038 + $0x2c] sm:$0xf]
    %v4051 = vld [vmem:[%s4038 + $0x30] sm:$0xf]
    %v4052 = vld [vmem:[%s4038 + $0x34] sm:$0xf]
    %v4053 = vld [vmem:[%s4038 + $0x38] sm:$0xf]
    %v4054 = vld [vmem:[%s4038 + $0x3c] sm:$0xf]
    %v4071 = vunpack.c.l.b16 %v4039
    %v4072 = vunpack.c.l.b16 %v4040
    %v4073 = vunpack.c.l.b16 %v4041
    %v4074 = vunpack.c.l.b16 %v4042
    %v4075 = vunpack.c.l.b16 %v4043
    %v4076 = vunpack.c.l.b16 %v4044
    %v4077 = vunpack.c.l.b16 %v4045
    %v4078 = vunpack.c.l.b16 %v4046
    %v4079 = vunpack.c.l.b16 %v4047
    %v4080 = vunpack.c.l.b16 %v4048
    %v4081 = vunpack.c.l.b16 %v4049
    %v4082 = vunpack.c.l.b16 %v4050
    %v4083 = vunpack.c.l.b16 %v4051
    %v4084 = vunpack.c.l.b16 %v4052
    %v4085 = vunpack.c.l.b16 %v4053
    %v4086 = vunpack.c.l.b16 %v4054
    %v4087 = vpack.c.b16 %v4072, %v4071
    %v4088 = vpack.c.b16 %v4074, %v4073
    %v4089 = vpack.c.b16 %v4076, %v4075
    %v4090 = vpack.c.b16 %v4078, %v4077
    %v4091 = vpack.c.b16 %v4080, %v4079
    %v4092 = vpack.c.b16 %v4082, %v4081
    %v4093 = vpack.c.b16 %v4084, %v4083
    %v4094 = vpack.c.b16 %v4086, %v4085
    %4103 = vmatprep.subr.bf16.mxu0 0
    %4104 = vmatpush1.bf16.msra.mxu0 %v4087
    %4105 = vmatprep.subr.bf16.mxu0 0
    %4106 = vmatpush1.bf16.msra.mxu0 %v4088
    %4107 = vmatprep.subr.bf16.mxu0 0
    %4108 = vmatpush1.bf16.msra.mxu0 %v4089
    %4109 = vmatprep.subr.bf16.mxu0 0
    %4110 = vmatpush1.bf16.msra.mxu0 %v4090
    %4111 = vmatprep.subr.bf16.mxu0 0
    %4112 = vmatpush1.bf16.msra.mxu0 %v4091
    %4113 = vmatprep.subr.bf16.mxu0 0
    %4114 = vmatpush1.bf16.msra.mxu0 %v4092
    %4115 = vmatprep.subr.bf16.mxu0 0
    %4116 = vmatpush1.bf16.msra.mxu0 %v4093
    %4117 = vmatprep.subr.bf16.mxu0 0
    %4118 = vmatpush1.bf16.msra.mxu0 %v4094
    %4119 = vmatprep.subr.bf16.mxu0 0
    %4120 = vmatpush1.bf16.msra.mxu0 0
    %4121 = vmatprep.subr.bf16.mxu0 0
    %4122 = vmatpush1.bf16.msra.mxu0 0
    %4123 = vmatprep.subr.bf16.mxu0 0
    %4124 = vmatpush1.bf16.msra.mxu0 0
    %4125 = vmatprep.subr.bf16.mxu0 0
    %4126 = vmatpush1.bf16.msra.mxu0 0
    %4127 = vmatprep.subr.bf16.mxu0 0
    %4128 = vmatpush1.bf16.msra.mxu0 0
    %4129 = vmatprep.subr.bf16.mxu0 0
    %4130 = vmatpush1.bf16.msra.mxu0 0
    %4131 = vmatprep.subr.bf16.mxu0 0
    %4132 = vmatpush1.bf16.msra.mxu0 0
    %4133 = vmatprep.subr.bf16.mxu0 0
    %4134 = vmatpush1.bf16.msra.mxu0 0
    %4135 = vmatprep.mubr.bf16.mxu0 0
    %4136 = vmatmul.mubr.bf16.gmra.mrb[0].mxu0 %v3927
    %v4137 = vpop.f32.mrb[0].mxu0
    %v4138 = vadd.f32 0.0, %v4137
    %v4139 = vpop.f32.mrb[0].mxu0
    %v4140 = vpop.f32.mrb[0].mxu0
    %v4141 = vadd.f32 0.0, %v4140
    %v4142 = vpop.f32.mrb[0].mxu0
    %4143 = vdwg.mxu0
    %s4144 = scalar_lea.vmem %s53, 16
    %v4145 = vld [vmem:[%s4144] sm:$0xf]
    %v4146 = vld [vmem:[%s4144 + $0x4] sm:$0xf]
    %v4147 = vld [vmem:[%s4144 + $0x8] sm:$0xf]
    %v4148 = vld [vmem:[%s4144 + $0xc] sm:$0xf]
    %v4149 = vpack.c.bf16 %v4141, %v4138
    %v4154 = vunpack.c.l.b16 %v4145
    %v4155 = vunpack.c.l.b16 %v4146
    %v4156 = vunpack.c.l.b16 %v4147
    %v4157 = vunpack.c.l.b16 %v4148
    %v4158 = vpack.c.b16 %v4155, %v4154
    %v4159 = vpack.c.b16 %v4157, %v4156
    %v4161 = vsel %vm1918, %v4158, 0
    %v4164 = vsel %vm1918, %v4159, 0
    %4166 = vmatprep.subr.bf16.mxu0 0
    %4167 = vmatpush1.bf16.msra.mxu0 %v4149
    %4168 = vmatprep.subr.bf16.mxu0 0
    %4169 = vmatpush1.bf16.msra.mxu0 0
    %4170 = vmatprep.subr.bf16.mxu0 0
    %4171 = vmatpush1.bf16.msra.mxu0 0
    %4172 = vmatprep.subr.bf16.mxu0 0
    %4173 = vmatpush1.bf16.msra.mxu0 0
    %4174 = vmatprep.subr.bf16.mxu0 0
    %4175 = vmatpush1.bf16.msra.mxu0 0
    %4176 = vmatprep.subr.bf16.mxu0 0
    %4177 = vmatpush1.bf16.msra.mxu0 0
    %4178 = vmatprep.subr.bf16.mxu0 0
    %4179 = vmatpush1.bf16.msra.mxu0 0
    %4180 = vmatprep.subr.bf16.mxu0 0
    %4181 = vmatpush1.bf16.msra.mxu0 0
    %4182 = vmatprep.subr.bf16.mxu0 0
    %4183 = vmatpush1.bf16.msra.mxu0 0
    %4184 = vmatprep.subr.bf16.mxu0 0
    %4185 = vmatpush1.bf16.msra.mxu0 0
    %4186 = vmatprep.subr.bf16.mxu0 0
    %4187 = vmatpush1.bf16.msra.mxu0 0
    %4188 = vmatprep.subr.bf16.mxu0 0
    %4189 = vmatpush1.bf16.msra.mxu0 0
    %4190 = vmatprep.subr.bf16.mxu0 0
    %4191 = vmatpush1.bf16.msra.mxu0 0
    %4192 = vmatprep.subr.bf16.mxu0 0
    %4193 = vmatpush1.bf16.msra.mxu0 0
    %4194 = vmatprep.subr.bf16.mxu0 0
    %4195 = vmatpush1.bf16.msra.mxu0 0
    %4196 = vmatprep.subr.bf16.mxu0 0
    %4197 = vmatpush1.bf16.msra.mxu0 0
    %4198 = vmatprep.mubr.bf16.mxu0 0
    %4199 = vmatmul.mubr.bf16.gmra.mrb[0].mxu0 %v4161
    %v4200 = vpop.f32.mrb[0].mxu0
    %v4201 = vadd.f32 0.0, %v4200
    %v4202 = vpop.f32.mrb[0].mxu0
    %v4203 = vpop.f32.mrb[0].mxu0
    %v4204 = vadd.f32 0.0, %v4203
    %v4205 = vpop.f32.mrb[0].mxu0
    %4206 = vmatprep.mubr.bf16.mxu0 0
    %4207 = vmatmul.mubr.bf16.gmra.mrb[0].mxu0 %v4164
    %v4208 = vpop.f32.mrb[0].mxu0
    %v4209 = vadd.f32 0.0, %v4208
    %v4210 = vpop.f32.mrb[0].mxu0
    %v4211 = vpop.f32.mrb[0].mxu0
    %v4212 = vadd.f32 0.0, %v4211
    %v4213 = vpop.f32.mrb[0].mxu0
    %4214 = vdwg.mxu0
    %v4219 = vunpack.c.l.b16 %v4033
    %v4220 = vunpack.c.l.b16 %v4034
    %v4221 = vunpack.c.l.b16 %v4035
    %v4222 = vunpack.c.l.b16 %v4036
    %v4223 = vpack.c.b16 %v4220, %v4219
    %v4224 = vpack.c.b16 %v4222, %v4221
    %v4226 = vsel %vm1918, %v4223, 0
    %v4229 = vsel %vm1918, %v4224, 0
    %4231 = vmatprep.subr.bf16.mxu0 0
    %4232 = vmatpush1.bf16.msra.mxu0 %v4037
    %4233 = vmatprep.subr.bf16.mxu0 0
    %4234 = vmatpush1.bf16.msra.mxu0 0
    %4235 = vmatprep.subr.bf16.mxu0 0
    %4236 = vmatpush1.bf16.msra.mxu0 0
    %4237 = vmatprep.subr.bf16.mxu0 0
    %4238 = vmatpush1.bf16.msra.mxu0 0
    %4239 = vmatprep.subr.bf16.mxu0 0
    %4240 = vmatpush1.bf16.msra.mxu0 0
    %4241 = vmatprep.subr.bf16.mxu0 0
    %4242 = vmatpush1.bf16.msra.mxu0 0
    %4243 = vmatprep.subr.bf16.mxu0 0
    %4244 = vmatpush1.bf16.msra.mxu0 0
    %4245 = vmatprep.subr.bf16.mxu0 0
    %4246 = vmatpush1.bf16.msra.mxu0 0
    %4247 = vmatprep.subr.bf16.mxu0 0
    %4248 = vmatpush1.bf16.msra.mxu0 0
    %4249 = vmatprep.subr.bf16.mxu0 0
    %4250 = vmatpush1.bf16.msra.mxu0 0
    %4251 = vmatprep.subr.bf16.mxu0 0
    %4252 = vmatpush1.bf16.msra.mxu0 0
    %4253 = vmatprep.subr.bf16.mxu0 0
    %4254 = vmatpush1.bf16.msra.mxu0 0
    %4255 = vmatprep.subr.bf16.mxu0 0
    %4256 = vmatpush1.bf16.msra.mxu0 0
    %4257 = vmatprep.subr.bf16.mxu0 0
    %4258 = vmatpush1.bf16.msra.mxu0 0
    %4259 = vmatprep.subr.bf16.mxu0 0
    %4260 = vmatpush1.bf16.msra.mxu0 0
    %4261 = vmatprep.subr.bf16.mxu0 0
    %4262 = vmatpush1.bf16.msra.mxu0 0
    %4263 = vmatprep.mubr.bf16.mxu0 0
    %4264 = vmatmul.mubr.bf16.gmra.mrb[0].mxu0 %v4226
    %v4265 = vpop.f32.mrb[0].mxu0
    %v4266 = vadd.f32 %v4201, %v4265
    %v4267 = vpop.f32.mrb[0].mxu0
    %v4268 = vpop.f32.mrb[0].mxu0
    %v4269 = vadd.f32 %v4204, %v4268
    %v4270 = vpop.f32.mrb[0].mxu0
    %4271 = vmatprep.mubr.bf16.mxu0 0
    %4272 = vmatmul.mubr.bf16.gmra.mrb[0].mxu0 %v4229
    %v4273 = vpop.f32.mrb[0].mxu0
    %v4274 = vadd.f32 %v4209, %v4273
    %v4275 = vpop.f32.mrb[0].mxu0
    %v4276 = vpop.f32.mrb[0].mxu0
    %v4277 = vadd.f32 %v4212, %v4276
    %v4278 = vpop.f32.mrb[0].mxu0
    %4279 = vdwg.mxu0
    %v4280 = vld [vmem:[#allocation27] sm:$0x1]
    %v4282 = vlaneseq
    %v4283 = vshrl.u32 %v4282, 7
    %v4284 = vsub.s32 0, %v4283
    %v4285 = vrot.slane %v4280, %v4284
    %v4287 = vadd.f32 %v4266, %v4285
    %v4288 = vadd.f32 %v4269, %v4285
    %v4289 = vadd.f32 %v4274, %v4285
    %v4290 = vadd.f32 %v4277, %v4285
    %v4295 = vrot.slane %v1073, 7
    %v4296 = vrot.slane %v1074, 7
    %v4297 = vsel %vm440, %v4295, %v4296
    %v4298 = vrot.slane %v1075, 7
    %v4299 = vsel %vm440, %v4296, %v4298
    %v4300 = vrot.slane %v1076, 7
    %v4301 = vsel %vm440, %v4298, %v4300
    %v4306 = vsel %vm440, 0.0, %v4295
    %v4307 = vrot.slane %v1073, 1
    %v4308 = vrot.slane %v1074, 1
    %v4309 = vsel %vm453, %v4307, %v4308
    %v4310 = vrot.slane %v1075, 1
    %v4311 = vsel %vm453, %v4308, %v4310
    %v4312 = vrot.slane %v1076, 1
    %v4313 = vsel %vm453, %v4310, %v4312
    %v4318 = vsel %vm453, %v4312, 0.0
    %v4319 = vsel %vm527, 0.0, %v4306
    %v4320 = vsel %vm528, 0.0, %v4297
    %v4321 = vsel %vm529, 0.0, %v4299
    %v4322 = vsel %vm530, 0.0, %v4301
    %v4323 = vsel %vm543, 0.0, %v4309
    %v4324 = vsel %vm544, 0.0, %v4311
    %v4325 = vsel %vm545, 0.0, %v4313
    %v4326 = vsel %vm546, 0.0, %v4318
    %v4331 = vrot.slane %v4287, 7
    %v4332 = vrot.slane %v4288, 7
    %v4333 = vsel %vm440, %v4331, %v4332
    %v4334 = vrot.slane %v4289, 7
    %v4335 = vsel %vm440, %v4332, %v4334
    %v4336 = vrot.slane %v4290, 7
    %v4337 = vsel %vm440, %v4334, %v4336
    %v4342 = vsel %vm440, 0.0, %v4331
    %v4343 = vrot.slane %v4287, 1
    %v4344 = vrot.slane %v4288, 1
    %v4345 = vsel %vm453, %v4343, %v4344
    %v4346 = vrot.slane %v4289, 1
    %v4347 = vsel %vm453, %v4344, %v4346
    %v4348 = vrot.slane %v4290, 1
    %v4349 = vsel %vm453, %v4346, %v4348
    %v4354 = vsel %vm453, %v4348, 0.0
    %v4355 = vsel %vm527, 0.0, %v4342
    %v4356 = vsel %vm528, 0.0, %v4333
    %v4357 = vsel %vm529, 0.0, %v4335
    %v4358 = vsel %vm530, 0.0, %v4337
    %v4359 = vsel %vm543, 0.0, %v4345
    %v4360 = vsel %vm544, 0.0, %v4347
    %v4361 = vsel %vm545, 0.0, %v4349
    %v4362 = vsel %vm546, 0.0, %v4354
    %v4363 = vpack.c.bf16 %v4320, %v4319
    %v4364 = vpack.c.bf16 %v4324, %v4323
    %v4365 = vpack.c.bf16 %v4322, %v4321
    %v4366 = vpack.c.bf16 %v4326, %v4325
    %v4367 = vpack.c.bf16 %v4356, %v4355
    %v4368 = vpack.c.bf16 %v4288, %v4287
    %v4369 = vpack.c.bf16 %v4360, %v4359
    %v4370 = vpack.c.bf16 %v4358, %v4357
    %v4371 = vpack.c.bf16 %v4290, %v4289
    %v4372 = vpack.c.bf16 %v4362, %v4361
    %v4373 = vld [vmem:[#allocation28] sm:$0xf]
    %v4374 = vld [vmem:[#allocation28 + $0x4] sm:$0xf]
    %v4375 = vld [vmem:[#allocation28 + $0x8] sm:$0xf]
    %v4376 = vld [vmem:[#allocation28 + $0xc] sm:$0xf]
    %v4377 = vld [vmem:[#allocation28 + $0x10] sm:$0xf]
    %v4378 = vld [vmem:[#allocation28 + $0x14] sm:$0xf]
    %v4379 = vld [vmem:[#allocation28 + $0x18] sm:$0xf]
    %v4380 = vld [vmem:[#allocation28 + $0x1c] sm:$0xf]
    %v4381 = vld [vmem:[#allocation28 + $0x20] sm:$0xf]
    %v4382 = vld [vmem:[#allocation28 + $0x24] sm:$0xf]
    %v4383 = vld [vmem:[#allocation28 + $0x28] sm:$0xf]
    %v4384 = vld [vmem:[#allocation28 + $0x2c] sm:$0xf]
    %v4385 = vld [vmem:[#allocation28 + $0x30] sm:$0xf]
    %v4386 = vld [vmem:[#allocation28 + $0x34] sm:$0xf]
    %v4387 = vld [vmem:[#allocation28 + $0x38] sm:$0xf]
    %v4388 = vld [vmem:[#allocation28 + $0x3c] sm:$0xf]
    %v4389 = vld [vmem:[#allocation28 + $0x40] sm:$0xf]
    %v4390 = vld [vmem:[#allocation28 + $0x44] sm:$0xf]
    %v4391 = vld [vmem:[#allocation28 + $0x48] sm:$0xf]
    %v4392 = vld [vmem:[#allocation28 + $0x4c] sm:$0xf]
    %v4393 = vld [vmem:[#allocation28 + $0x50] sm:$0xf]
    %v4394 = vld [vmem:[#allocation28 + $0x54] sm:$0xf]
    %v4395 = vld [vmem:[#allocation28 + $0x58] sm:$0xf]
    %v4396 = vld [vmem:[#allocation28 + $0x5c] sm:$0xf]
    %v4397 = vld [vmem:[#allocation28 + $0x60] sm:$0xf]
    %v4398 = vld [vmem:[#allocation28 + $0x64] sm:$0xf]
    %v4399 = vld [vmem:[#allocation28 + $0x68] sm:$0xf]
    %v4400 = vld [vmem:[#allocation28 + $0x6c] sm:$0xf]
    %v4401 = vld [vmem:[#allocation28 + $0x70] sm:$0xf]
    %v4402 = vld [vmem:[#allocation28 + $0x74] sm:$0xf]
    %v4403 = vld [vmem:[#allocation28 + $0x78] sm:$0xf]
    %v4404 = vld [vmem:[#allocation28 + $0x7c] sm:$0xf]
    %v4405 = vld [vmem:[#allocation28 + $0x80] sm:$0xf]
    %v4406 = vld [vmem:[#allocation28 + $0x84] sm:$0xf]
    %v4407 = vld [vmem:[#allocation28 + $0x88] sm:$0xf]
    %v4408 = vld [vmem:[#allocation28 + $0x8c] sm:$0xf]
    %v4409 = vld [vmem:[#allocation28 + $0x90] sm:$0xf]
    %v4410 = vld [vmem:[#allocation28 + $0x94] sm:$0xf]
    %v4411 = vld [vmem:[#allocation28 + $0x98] sm:$0xf]
    %v4412 = vld [vmem:[#allocation28 + $0x9c] sm:$0xf]
    %v4413 = vld [vmem:[#allocation28 + $0xa0] sm:$0xf]
    %v4414 = vld [vmem:[#allocation28 + $0xa4] sm:$0xf]
    %v4415 = vld [vmem:[#allocation28 + $0xa8] sm:$0xf]
    %v4416 = vld [vmem:[#allocation28 + $0xac] sm:$0xf]
    %v4417 = vld [vmem:[#allocation28 + $0xb0] sm:$0xf]
    %v4418 = vld [vmem:[#allocation28 + $0xb4] sm:$0xf]
    %v4419 = vld [vmem:[#allocation28 + $0xb8] sm:$0xf]
    %v4420 = vld [vmem:[#allocation28 + $0xbc] sm:$0xf]
    %v4421 = vld [vmem:[#allocation30] sm:$0xf]
    %v4422 = vld [vmem:[#allocation30 + $0x4] sm:$0xf]
    %v4423 = vld [vmem:[#allocation30 + $0x8] sm:$0xf]
    %v4424 = vld [vmem:[#allocation30 + $0xc] sm:$0xf]
    %v4425 = vld [vmem:[#allocation30 + $0x10] sm:$0xf]
    %v4426 = vld [vmem:[#allocation30 + $0x14] sm:$0xf]
    %v4427 = vld [vmem:[#allocation30 + $0x18] sm:$0xf]
    %v4428 = vld [vmem:[#allocation30 + $0x1c] sm:$0xf]
    %v4429 = vld [vmem:[#allocation30 + $0x20] sm:$0xf]
    %v4430 = vld [vmem:[#allocation30 + $0x24] sm:$0xf]
    %v4431 = vld [vmem:[#allocation30 + $0x28] sm:$0xf]
    %v4432 = vld [vmem:[#allocation30 + $0x2c] sm:$0xf]
    %v4433 = vld [vmem:[#allocation30 + $0x30] sm:$0xf]
    %v4434 = vld [vmem:[#allocation30 + $0x34] sm:$0xf]
    %v4435 = vld [vmem:[#allocation30 + $0x38] sm:$0xf]
    %v4436 = vld [vmem:[#allocation30 + $0x3c] sm:$0xf]
    %v4437 = vld [vmem:[#allocation30 + $0x40] sm:$0xf]
    %v4438 = vld [vmem:[#allocation30 + $0x44] sm:$0xf]
    %v4439 = vld [vmem:[#allocation30 + $0x48] sm:$0xf]
    %v4440 = vld [vmem:[#allocation30 + $0x4c] sm:$0xf]
    %v4441 = vld [vmem:[#allocation30 + $0x50] sm:$0xf]
    %v4442 = vld [vmem:[#allocation30 + $0x54] sm:$0xf]
    %v4443 = vld [vmem:[#allocation30 + $0x58] sm:$0xf]
    %v4444 = vld [vmem:[#allocation30 + $0x5c] sm:$0xf]
    %v4445 = vld [vmem:[#allocation30 + $0x60] sm:$0xf]
    %v4446 = vld [vmem:[#allocation30 + $0x64] sm:$0xf]
    %v4447 = vld [vmem:[#allocation30 + $0x68] sm:$0xf]
    %v4448 = vld [vmem:[#allocation30 + $0x6c] sm:$0xf]
    %v4449 = vld [vmem:[#allocation30 + $0x70] sm:$0xf]
    %v4450 = vld [vmem:[#allocation30 + $0x74] sm:$0xf]
    %v4451 = vld [vmem:[#allocation30 + $0x78] sm:$0xf]
    %v4452 = vld [vmem:[#allocation30 + $0x7c] sm:$0xf]
    %v4453 = vld [vmem:[#allocation30 + $0x80] sm:$0xf]
    %v4454 = vld [vmem:[#allocation30 + $0x84] sm:$0xf]
    %v4455 = vld [vmem:[#allocation30 + $0x88] sm:$0xf]
    %v4456 = vld [vmem:[#allocation30 + $0x8c] sm:$0xf]
    %v4457 = vld [vmem:[#allocation30 + $0x90] sm:$0xf]
    %v4458 = vld [vmem:[#allocation30 + $0x94] sm:$0xf]
    %v4459 = vld [vmem:[#allocation30 + $0x98] sm:$0xf]
    %v4460 = vld [vmem:[#allocation30 + $0x9c] sm:$0xf]
    %v4461 = vld [vmem:[#allocation30 + $0xa0] sm:$0xf]
    %v4462 = vld [vmem:[#allocation30 + $0xa4] sm:$0xf]
    %v4463 = vld [vmem:[#allocation30 + $0xa8] sm:$0xf]
    %v4464 = vld [vmem:[#allocation30 + $0xac] sm:$0xf]
    %v4465 = vld [vmem:[#allocation30 + $0xb0] sm:$0xf]
    %v4466 = vld [vmem:[#allocation30 + $0xb4] sm:$0xf]
    %v4467 = vld [vmem:[#allocation30 + $0xb8] sm:$0xf]
    %v4468 = vld [vmem:[#allocation30 + $0xbc] sm:$0xf]
    %v4517 = vunpack.c.l.b16 %v4421
    %v4518 = vunpack.c.l.b16 %v4422
    %v4519 = vunpack.c.l.b16 %v4423
    %v4520 = vunpack.c.l.b16 %v4424
    %v4521 = vunpack.c.l.b16 %v4425
    %v4522 = vunpack.c.l.b16 %v4426
    %v4523 = vunpack.c.l.b16 %v4427
    %v4524 = vunpack.c.l.b16 %v4428
    %v4525 = vunpack.c.l.b16 %v4429
    %v4526 = vunpack.c.l.b16 %v4430
    %v4527 = vunpack.c.l.b16 %v4431
    %v4528 = vunpack.c.l.b16 %v4432
    %v4529 = vunpack.c.l.b16 %v4433
    %v4530 = vunpack.c.l.b16 %v4434
    %v4531 = vunpack.c.l.b16 %v4435
    %v4532 = vunpack.c.l.b16 %v4436
    %v4533 = vunpack.c.l.b16 %v4437
    %v4534 = vunpack.c.l.b16 %v4438
    %v4535 = vunpack.c.l.b16 %v4439
    %v4536 = vunpack.c.l.b16 %v4440
    %v4537 = vunpack.c.l.b16 %v4441
    %v4538 = vunpack.c.l.b16 %v4442
    %v4539 = vunpack.c.l.b16 %v4443
    %v4540 = vunpack.c.l.b16 %v4444
    %v4541 = vunpack.c.l.b16 %v4445
    %v4542 = vunpack.c.l.b16 %v4446
    %v4543 = vunpack.c.l.b16 %v4447
    %v4544 = vunpack.c.l.b16 %v4448
    %v4545 = vunpack.c.l.b16 %v4449
    %v4546 = vunpack.c.l.b16 %v4450
    %v4547 = vunpack.c.l.b16 %v4451
    %v4548 = vunpack.c.l.b16 %v4452
    %v4549 = vunpack.c.l.b16 %v4453
    %v4550 = vunpack.c.l.b16 %v4454
    %v4551 = vunpack.c.l.b16 %v4455
    %v4552 = vunpack.c.l.b16 %v4456
    %v4553 = vunpack.c.l.b16 %v4457
    %v4554 = vunpack.c.l.b16 %v4458
    %v4555 = vunpack.c.l.b16 %v4459
    %v4556 = vunpack.c.l.b16 %v4460
    %v4557 = vunpack.c.l.b16 %v4461
    %v4558 = vunpack.c.l.b16 %v4462
    %v4559 = vunpack.c.l.b16 %v4463
    %v4560 = vunpack.c.l.b16 %v4464
    %v4561 = vunpack.c.l.b16 %v4465
    %v4562 = vunpack.c.l.b16 %v4466
    %v4563 = vunpack.c.l.b16 %v4467
    %v4564 = vunpack.c.l.b16 %v4468
    %v4565 = vpack.c.b16 %v4518, %v4517
    %v4566 = vpack.c.b16 %v4520, %v4519
    %v4567 = vpack.c.b16 %v4522, %v4521
    %v4568 = vpack.c.b16 %v4524, %v4523
    %v4569 = vpack.c.b16 %v4526, %v4525
    %v4570 = vpack.c.b16 %v4528, %v4527
    %v4571 = vpack.c.b16 %v4530, %v4529
    %v4572 = vpack.c.b16 %v4532, %v4531
    %v4573 = vpack.c.b16 %v4534, %v4533
    %v4574 = vpack.c.b16 %v4536, %v4535
    %v4575 = vpack.c.b16 %v4538, %v4537
    %v4576 = vpack.c.b16 %v4540, %v4539
    %v4577 = vpack.c.b16 %v4542, %v4541
    %v4578 = vpack.c.b16 %v4544, %v4543
    %v4579 = vpack.c.b16 %v4546, %v4545
    %v4580 = vpack.c.b16 %v4548, %v4547
    %v4581 = vpack.c.b16 %v4550, %v4549
    %v4582 = vpack.c.b16 %v4552, %v4551
    %v4583 = vpack.c.b16 %v4554, %v4553
    %v4584 = vpack.c.b16 %v4556, %v4555
    %v4585 = vpack.c.b16 %v4558, %v4557
    %v4586 = vpack.c.b16 %v4560, %v4559
    %v4587 = vpack.c.b16 %v4562, %v4561
    %v4588 = vpack.c.b16 %v4564, %v4563
    %4613 = vmatprep.subr.bf16.mxu0 0
    %4614 = vmatpush1.bf16.msra.mxu0 %v4565
    %4615 = vmatprep.subr.bf16.mxu0 0
    %4616 = vmatpush1.bf16.msra.mxu0 %v4566
    %4617 = vmatprep.subr.bf16.mxu0 0
    %4618 = vmatpush1.bf16.msra.mxu0 %v4567
    %4619 = vmatprep.subr.bf16.mxu0 0
    %4620 = vmatpush1.bf16.msra.mxu0 %v4568
    %4621 = vmatprep.subr.bf16.mxu0 0
    %4622 = vmatpush1.bf16.msra.mxu0 %v4569
    %4623 = vmatprep.subr.bf16.mxu0 0
    %4624 = vmatpush1.bf16.msra.mxu0 %v4570
    %4625 = vmatprep.subr.bf16.mxu0 0
    %4626 = vmatpush1.bf16.msra.mxu0 %v4571
    %4627 = vmatprep.subr.bf16.mxu0 0
    %4628 = vmatpush1.bf16.msra.mxu0 %v4572
    %4629 = vmatprep.subr.bf16.mxu0 0
    %4630 = vmatpush1.bf16.msra.mxu0 %v4573
    %4631 = vmatprep.subr.bf16.mxu0 0
    %4632 = vmatpush1.bf16.msra.mxu0 %v4574
    %4633 = vmatprep.subr.bf16.mxu0 0
    %4634 = vmatpush1.bf16.msra.mxu0 %v4575
    %4635 = vmatprep.subr.bf16.mxu0 0
    %4636 = vmatpush1.bf16.msra.mxu0 %v4576
    %4637 = vmatprep.subr.bf16.mxu0 0
    %4638 = vmatpush1.bf16.msra.mxu0 %v4577
    %4639 = vmatprep.subr.bf16.mxu0 0
    %4640 = vmatpush1.bf16.msra.mxu0 %v4578
    %4641 = vmatprep.subr.bf16.mxu0 0
    %4642 = vmatpush1.bf16.msra.mxu0 %v4579
    %4643 = vmatprep.subr.bf16.mxu0 0
    %4644 = vmatpush1.bf16.msra.mxu0 %v4580
    %4645 = vmatprep.mubr.bf16.mxu0 %v4368
    %4646 = vmatmul.mubr.bf16.gmra.mrb[0].mxu0 %v4367
    %v4647 = vpop.f32.mrb[0].mxu0
    %v4648 = vadd.f32 0.0, %v4647
    %v4649 = vpop.f32.mrb[0].mxu0
    %v4650 = vpop.f32.mrb[0].mxu0
    %v4651 = vadd.f32 0.0, %v4650
    %v4652 = vpop.f32.mrb[0].mxu0
    %4653 = vmatprep.mubr.bf16.mxu0 %v4371
    %4654 = vmatmul.mubr.bf16.gmra.mrb[0].mxu0 %v4370
    %v4655 = vpop.f32.mrb[0].mxu0
    %v4656 = vadd.f32 0.0, %v4655
    %v4657 = vpop.f32.mrb[0].mxu0
    %v4658 = vpop.f32.mrb[0].mxu0
    %v4659 = vadd.f32 0.0, %v4658
    %v4660 = vpop.f32.mrb[0].mxu0
    %4661 = vdwg.mxu0
    %4662 = vmatprep.subr.bf16.mxu0 0
    %4663 = vmatpush1.bf16.msra.mxu0 %v4581
    %4664 = vmatprep.subr.bf16.mxu0 0
    %4665 = vmatpush1.bf16.msra.mxu0 %v4582
    %4666 = vmatprep.subr.bf16.mxu0 0
    %4667 = vmatpush1.bf16.msra.mxu0 %v4583
    %4668 = vmatprep.subr.bf16.mxu0 0
    %4669 = vmatpush1.bf16.msra.mxu0 %v4584
    %4670 = vmatprep.subr.bf16.mxu0 0
    %4671 = vmatpush1.bf16.msra.mxu0 %v4585
    %4672 = vmatprep.subr.bf16.mxu0 0
    %4673 = vmatpush1.bf16.msra.mxu0 %v4586
    %4674 = vmatprep.subr.bf16.mxu0 0
    %4675 = vmatpush1.bf16.msra.mxu0 %v4587
    %4676 = vmatprep.subr.bf16.mxu0 0
    %4677 = vmatpush1.bf16.msra.mxu0 %v4588
    %4678 = vmatprep.subr.bf16.mxu0 0
    %4679 = vmatpush1.bf16.msra.mxu0 0
    %4680 = vmatprep.subr.bf16.mxu0 0
    %4681 = vmatpush1.bf16.msra.mxu0 0
    %4682 = vmatprep.subr.bf16.mxu0 0
    %4683 = vmatpush1.bf16.msra.mxu0 0
    %4684 = vmatprep.subr.bf16.mxu0 0
    %4685 = vmatpush1.bf16.msra.mxu0 0
    %4686 = vmatprep.subr.bf16.mxu0 0
    %4687 = vmatpush1.bf16.msra.mxu0 0
    %4688 = vmatprep.subr.bf16.mxu0 0
    %4689 = vmatpush1.bf16.msra.mxu0 0
    %4690 = vmatprep.subr.bf16.mxu0 0
    %4691 = vmatpush1.bf16.msra.mxu0 0
    %4692 = vmatprep.subr.bf16.mxu0 0
    %4693 = vmatpush1.bf16.msra.mxu0 0
    %4694 = vmatprep.mubr.bf16.mxu0 0
    %4695 = vmatmul.mubr.bf16.gmra.mrb[0].mxu0 %v4369
    %v4696 = vpop.f32.mrb[0].mxu0
    %v4697 = vadd.f32 %v4648, %v4696
    %v4698 = vpop.f32.mrb[0].mxu0
    %v4699 = vpop.f32.mrb[0].mxu0
    %v4700 = vadd.f32 %v4651, %v4699
    %v4701 = vpop.f32.mrb[0].mxu0
    %4702 = vmatprep.mubr.bf16.mxu0 0
    %4703 = vmatmul.mubr.bf16.gmra.mrb[0].mxu0 %v4372
    %v4704 = vpop.f32.mrb[0].mxu0
    %v4705 = vadd.f32 %v4656, %v4704
    %v4706 = vpop.f32.mrb[0].mxu0
    %v4707 = vpop.f32.mrb[0].mxu0
    %v4708 = vadd.f32 %v4659, %v4707
    %v4709 = vpop.f32.mrb[0].mxu0
    %4710 = vdwg.mxu0
    %v4759 = vunpack.c.l.b16 %v4373
    %v4760 = vunpack.c.l.b16 %v4374
    %v4761 = vunpack.c.l.b16 %v4375
    %v4762 = vunpack.c.l.b16 %v4376
    %v4763 = vunpack.c.l.b16 %v4377
    %v4764 = vunpack.c.l.b16 %v4378
    %v4765 = vunpack.c.l.b16 %v4379
    %v4766 = vunpack.c.l.b16 %v4380
    %v4767 = vunpack.c.l.b16 %v4381
    %v4768 = vunpack.c.l.b16 %v4382
    %v4769 = vunpack.c.l.b16 %v4383
    %v4770 = vunpack.c.l.b16 %v4384
    %v4771 = vunpack.c.l.b16 %v4385
    %v4772 = vunpack.c.l.b16 %v4386
    %v4773 = vunpack.c.l.b16 %v4387
    %v4774 = vunpack.c.l.b16 %v4388
    %v4775 = vunpack.c.l.b16 %v4389
    %v4776 = vunpack.c.l.b16 %v4390
    %v4777 = vunpack.c.l.b16 %v4391
    %v4778 = vunpack.c.l.b16 %v4392
    %v4779 = vunpack.c.l.b16 %v4393
    %v4780 = vunpack.c.l.b16 %v4394
    %v4781 = vunpack.c.l.b16 %v4395
    %v4782 = vunpack.c.l.b16 %v4396
    %v4783 = vunpack.c.l.b16 %v4397
    %v4784 = vunpack.c.l.b16 %v4398
    %v4785 = vunpack.c.l.b16 %v4399
    %v4786 = vunpack.c.l.b16 %v4400
    %v4787 = vunpack.c.l.b16 %v4401
    %v4788 = vunpack.c.l.b16 %v4402
    %v4789 = vunpack.c.l.b16 %v4403
    %v4790 = vunpack.c.l.b16 %v4404
    %v4791 = vunpack.c.l.b16 %v4405
    %v4792 = vunpack.c.l.b16 %v4406
    %v4793 = vunpack.c.l.b16 %v4407
    %v4794 = vunpack.c.l.b16 %v4408
    %v4795 = vunpack.c.l.b16 %v4409
    %v4796 = vunpack.c.l.b16 %v4410
    %v4797 = vunpack.c.l.b16 %v4411
    %v4798 = vunpack.c.l.b16 %v4412
    %v4799 = vunpack.c.l.b16 %v4413
    %v4800 = vunpack.c.l.b16 %v4414
    %v4801 = vunpack.c.l.b16 %v4415
    %v4802 = vunpack.c.l.b16 %v4416
    %v4803 = vunpack.c.l.b16 %v4417
    %v4804 = vunpack.c.l.b16 %v4418
    %v4805 = vunpack.c.l.b16 %v4419
    %v4806 = vunpack.c.l.b16 %v4420
    %v4807 = vpack.c.b16 %v4760, %v4759
    %v4808 = vpack.c.b16 %v4762, %v4761
    %v4809 = vpack.c.b16 %v4764, %v4763
    %v4810 = vpack.c.b16 %v4766, %v4765
    %v4811 = vpack.c.b16 %v4768, %v4767
    %v4812 = vpack.c.b16 %v4770, %v4769
    %v4813 = vpack.c.b16 %v4772, %v4771
    %v4814 = vpack.c.b16 %v4774, %v4773
    %v4815 = vpack.c.b16 %v4776, %v4775
    %v4816 = vpack.c.b16 %v4778, %v4777
    %v4817 = vpack.c.b16 %v4780, %v4779
    %v4818 = vpack.c.b16 %v4782, %v4781
    %v4819 = vpack.c.b16 %v4784, %v4783
    %v4820 = vpack.c.b16 %v4786, %v4785
    %v4821 = vpack.c.b16 %v4788, %v4787
    %v4822 = vpack.c.b16 %v4790, %v4789
    %v4823 = vpack.c.b16 %v4792, %v4791
    %v4824 = vpack.c.b16 %v4794, %v4793
    %v4825 = vpack.c.b16 %v4796, %v4795
    %v4826 = vpack.c.b16 %v4798, %v4797
    %v4827 = vpack.c.b16 %v4800, %v4799
    %v4828 = vpack.c.b16 %v4802, %v4801
    %v4829 = vpack.c.b16 %v4804, %v4803
    %v4830 = vpack.c.b16 %v4806, %v4805
    %4855 = vmatprep.subr.bf16.mxu0 0
    %4856 = vmatpush1.bf16.msra.mxu0 %v4807
    %4857 = vmatprep.subr.bf16.mxu0 0
    %4858 = vmatpush1.bf16.msra.mxu0 %v4808
    %4859 = vmatprep.subr.bf16.mxu0 0
    %4860 = vmatpush1.bf16.msra.mxu0 %v4809
    %4861 = vmatprep.subr.bf16.mxu0 0
    %4862 = vmatpush1.bf16.msra.mxu0 %v4810
    %4863 = vmatprep.subr.bf16.mxu0 0
    %4864 = vmatpush1.bf16.msra.mxu0 %v4811
    %4865 = vmatprep.subr.bf16.mxu0 0
    %4866 = vmatpush1.bf16.msra.mxu0 %v4812
    %4867 = vmatprep.subr.bf16.mxu0 0
    %4868 = vmatpush1.bf16.msra.mxu0 %v4813
    %4869 = vmatprep.subr.bf16.mxu0 0
    %4870 = vmatpush1.bf16.msra.mxu0 %v4814
    %4871 = vmatprep.subr.bf16.mxu0 0
    %4872 = vmatpush1.bf16.msra.mxu0 %v4815
    %4873 = vmatprep.subr.bf16.mxu0 0
    %4874 = vmatpush1.bf16.msra.mxu0 %v4816
    %4875 = vmatprep.subr.bf16.mxu0 0
    %4876 = vmatpush1.bf16.msra.mxu0 %v4817
    %4877 = vmatprep.subr.bf16.mxu0 0
    %4878 = vmatpush1.bf16.msra.mxu0 %v4818
    %4879 = vmatprep.subr.bf16.mxu0 0
    %4880 = vmatpush1.bf16.msra.mxu0 %v4819
    %4881 = vmatprep.subr.bf16.mxu0 0
    %4882 = vmatpush1.bf16.msra.mxu0 %v4820
    %4883 = vmatprep.subr.bf16.mxu0 0
    %4884 = vmatpush1.bf16.msra.mxu0 %v4821
    %4885 = vmatprep.subr.bf16.mxu0 0
    %4886 = vmatpush1.bf16.msra.mxu0 %v4822
    %4887 = vmatprep.mubr.bf16.mxu0 %v1077
    %4888 = vmatmul.mubr.bf16.gmra.mrb[0].mxu0 %v4363
    %v4889 = vpop.f32.mrb[0].mxu0
    %v4890 = vadd.f32 %v4697, %v4889
    %v4891 = vpop.f32.mrb[0].mxu0
    %v4892 = vpop.f32.mrb[0].mxu0
    %v4893 = vadd.f32 %v4700, %v4892
    %v4894 = vpop.f32.mrb[0].mxu0
    %4895 = vmatprep.mubr.bf16.mxu0 %v1078
    %4896 = vmatmul.mubr.bf16.gmra.mrb[0].mxu0 %v4365
    %v4897 = vpop.f32.mrb[0].mxu0
    %v4898 = vadd.f32 %v4705, %v4897
    %v4899 = vpop.f32.mrb[0].mxu0
    %v4900 = vpop.f32.mrb[0].mxu0
    %v4901 = vadd.f32 %v4708, %v4900
    %v4902 = vpop.f32.mrb[0].mxu0
    %4903 = vdwg.mxu0
    %4904 = vmatprep.subr.bf16.mxu0 0
    %4905 = vmatpush1.bf16.msra.mxu0 %v4823
    %4906 = vmatprep.subr.bf16.mxu0 0
    %4907 = vmatpush1.bf16.msra.mxu0 %v4824
    %4908 = vmatprep.subr.bf16.mxu0 0
    %4909 = vmatpush1.bf16.msra.mxu0 %v4825
    %4910 = vmatprep.subr.bf16.mxu0 0
    %4911 = vmatpush1.bf16.msra.mxu0 %v4826
    %4912 = vmatprep.subr.bf16.mxu0 0
    %4913 = vmatpush1.bf16.msra.mxu0 %v4827
    %4914 = vmatprep.subr.bf16.mxu0 0
    %4915 = vmatpush1.bf16.msra.mxu0 %v4828
    %4916 = vmatprep.subr.bf16.mxu0 0
    %4917 = vmatpush1.bf16.msra.mxu0 %v4829
    %4918 = vmatprep.subr.bf16.mxu0 0
    %4919 = vmatpush1.bf16.msra.mxu0 %v4830
    %4920 = vmatprep.subr.bf16.mxu0 0
    %4921 = vmatpush1.bf16.msra.mxu0 0
    %4922 = vmatprep.subr.bf16.mxu0 0
    %4923 = vmatpush1.bf16.msra.mxu0 0
    %4924 = vmatprep.subr.bf16.mxu0 0
    %4925 = vmatpush1.bf16.msra.mxu0 0
    %4926 = vmatprep.subr.bf16.mxu0 0
    %4927 = vmatpush1.bf16.msra.mxu0 0
    %4928 = vmatprep.subr.bf16.mxu0 0
    %4929 = vmatpush1.bf16.msra.mxu0 0
    %4930 = vmatprep.subr.bf16.mxu0 0
    %4931 = vmatpush1.bf16.msra.mxu0 0
    %4932 = vmatprep.subr.bf16.mxu0 0
    %4933 = vmatpush1.bf16.msra.mxu0 0
    %4934 = vmatprep.subr.bf16.mxu0 0
    %4935 = vmatpush1.bf16.msra.mxu0 0
    %4936 = vmatprep.mubr.bf16.mxu0 0
    %4937 = vmatmul.mubr.bf16.gmra.mrb[0].mxu0 %v4364
    %v4938 = vpop.f32.mrb[0].mxu0
    %v4939 = vadd.f32 %v4890, %v4938
    %v4940 = vpop.f32.mrb[0].mxu0
    %v4941 = vpop.f32.mrb[0].mxu0
    %v4942 = vadd.f32 %v4893, %v4941
    %v4943 = vpop.f32.mrb[0].mxu0
    %4944 = vmatprep.mubr.bf16.mxu0 0
    %4945 = vmatmul.mubr.bf16.gmra.mrb[0].mxu0 %v4366
    %v4946 = vpop.f32.mrb[0].mxu0
    %v4947 = vadd.f32 %v4898, %v4946
    %v4948 = vpop.f32.mrb[0].mxu0
    %v4949 = vpop.f32.mrb[0].mxu0
    %v4950 = vadd.f32 %v4901, %v4949
    %v4951 = vpop.f32.mrb[0].mxu0
    %4952 = vdwg.mxu0
    %v4953 = vld [vmem:[#allocation31] sm:$0x1]
    %v4955 = vlaneseq
    %v4956 = vshrl.u32 %v4955, 7
    %v4957 = vsub.s32 0, %v4956
    %v4958 = vrot.slane %v4953, %v4957
    %v4960 = vadd.f32 %v4939, %v4958
    %v4961 = vadd.f32 %v4942, %v4958
    %v4962 = vadd.f32 %v4947, %v4958
    %v4963 = vadd.f32 %v4950, %v4958
    %v4964 = vmax.f32 %v4960, 0.0
    %v4965 = vmax.f32 %v4961, 0.0
    %v4966 = vmax.f32 %v4962, 0.0
    %v4967 = vmax.f32 %v4963, 0.0
    %v4972 = vrot.slane %v4964, 7
    %v4973 = vrot.slane %v4965, 7
    %v4974 = vsel %vm440, %v4972, %v4973
    %v4975 = vrot.slane %v4966, 7
    %v4976 = vsel %vm440, %v4973, %v4975
    %v4977 = vrot.slane %v4967, 7
    %v4978 = vsel %vm440, %v4975, %v4977
    %v4983 = vsel %vm440, 0.0, %v4972
    %v4984 = vrot.slane %v4964, 1
    %v4985 = vrot.slane %v4965, 1
    %v4986 = vsel %vm453, %v4984, %v4985
    %v4987 = vrot.slane %v4966, 1
    %v4988 = vsel %vm453, %v4985, %v4987
    %v4989 = vrot.slane %v4967, 1
    %v4990 = vsel %vm453, %v4987, %v4989
    %v4995 = vsel %vm453, %v4989, 0.0
    %v4996 = vsel %vm527, 0.0, %v4983
    %v4997 = vsel %vm528, 0.0, %v4974
    %v4998 = vsel %vm529, 0.0, %v4976
    %v4999 = vsel %vm530, 0.0, %v4978
    %v5000 = vsel %vm543, 0.0, %v4986
    %v5001 = vsel %vm544, 0.0, %v4988
    %v5002 = vsel %vm545, 0.0, %v4990
    %v5003 = vsel %vm546, 0.0, %v4995
    %v5004 = vpack.c.bf16 %v4997, %v4996
    %v5005 = vpack.c.bf16 %v4965, %v4964
    %v5006 = vpack.c.bf16 %v5001, %v5000
    %v5007 = vpack.c.bf16 %v4999, %v4998
    %v5008 = vpack.c.bf16 %v4967, %v4966
    %v5009 = vpack.c.bf16 %v5003, %v5002
    %v5010 = vld [vmem:[#allocation33] sm:$0xf]
    %v5011 = vld [vmem:[#allocation33 + $0x4] sm:$0xf]
    %v5012 = vld [vmem:[#allocation33 + $0x8] sm:$0xf]
    %v5013 = vld [vmem:[#allocation33 + $0xc] sm:$0xf]
    %v5014 = vld [vmem:[#allocation33 + $0x10] sm:$0xf]
    %v5015 = vld [vmem:[#allocation33 + $0x14] sm:$0xf]
    %v5016 = vld [vmem:[#allocation33 + $0x18] sm:$0xf]
    %v5017 = vld [vmem:[#allocation33 + $0x1c] sm:$0xf]
    %v5018 = vld [vmem:[#allocation33 + $0x20] sm:$0xf]
    %v5019 = vld [vmem:[#allocation33 + $0x24] sm:$0xf]
    %v5020 = vld [vmem:[#allocation33 + $0x28] sm:$0xf]
    %v5021 = vld [vmem:[#allocation33 + $0x2c] sm:$0xf]
    %v5022 = vld [vmem:[#allocation33 + $0x30] sm:$0xf]
    %v5023 = vld [vmem:[#allocation33 + $0x34] sm:$0xf]
    %v5024 = vld [vmem:[#allocation33 + $0x38] sm:$0xf]
    %v5025 = vld [vmem:[#allocation33 + $0x3c] sm:$0xf]
    %v5026 = vld [vmem:[#allocation33 + $0x40] sm:$0xf]
    %v5027 = vld [vmem:[#allocation33 + $0x44] sm:$0xf]
    %v5028 = vld [vmem:[#allocation33 + $0x48] sm:$0xf]
    %v5029 = vld [vmem:[#allocation33 + $0x4c] sm:$0xf]
    %v5030 = vld [vmem:[#allocation33 + $0x50] sm:$0xf]
    %v5031 = vld [vmem:[#allocation33 + $0x54] sm:$0xf]
    %v5032 = vld [vmem:[#allocation33 + $0x58] sm:$0xf]
    %v5033 = vld [vmem:[#allocation33 + $0x5c] sm:$0xf]
    %v5034 = vld [vmem:[#allocation33 + $0x60] sm:$0xf]
    %v5035 = vld [vmem:[#allocation33 + $0x64] sm:$0xf]
    %v5036 = vld [vmem:[#allocation33 + $0x68] sm:$0xf]
    %v5037 = vld [vmem:[#allocation33 + $0x6c] sm:$0xf]
    %v5038 = vld [vmem:[#allocation33 + $0x70] sm:$0xf]
    %v5039 = vld [vmem:[#allocation33 + $0x74] sm:$0xf]
    %v5040 = vld [vmem:[#allocation33 + $0x78] sm:$0xf]
    %v5041 = vld [vmem:[#allocation33 + $0x7c] sm:$0xf]
    %v5042 = vld [vmem:[#allocation33 + $0x80] sm:$0xf]
    %v5043 = vld [vmem:[#allocation33 + $0x84] sm:$0xf]
    %v5044 = vld [vmem:[#allocation33 + $0x88] sm:$0xf]
    %v5045 = vld [vmem:[#allocation33 + $0x8c] sm:$0xf]
    %v5046 = vld [vmem:[#allocation33 + $0x90] sm:$0xf]
    %v5047 = vld [vmem:[#allocation33 + $0x94] sm:$0xf]
    %v5048 = vld [vmem:[#allocation33 + $0x98] sm:$0xf]
    %v5049 = vld [vmem:[#allocation33 + $0x9c] sm:$0xf]
    %v5050 = vld [vmem:[#allocation33 + $0xa0] sm:$0xf]
    %v5051 = vld [vmem:[#allocation33 + $0xa4] sm:$0xf]
    %v5052 = vld [vmem:[#allocation33 + $0xa8] sm:$0xf]
    %v5053 = vld [vmem:[#allocation33 + $0xac] sm:$0xf]
    %v5054 = vld [vmem:[#allocation33 + $0xb0] sm:$0xf]
    %v5055 = vld [vmem:[#allocation33 + $0xb4] sm:$0xf]
    %v5056 = vld [vmem:[#allocation33 + $0xb8] sm:$0xf]
    %v5057 = vld [vmem:[#allocation33 + $0xbc] sm:$0xf]
    %v5058 = vld [vmem:[#allocation34] sm:$0x1]
    %v5060 = vlaneseq
    %v5061 = vshrl.u32 %v5060, 7
    %v5062 = vsub.s32 0, %v5061
    %v5063 = vrot.slane %v5058, %v5062
    %v5113 = vunpack.c.l.b16 %v5010
    %v5114 = vunpack.c.l.b16 %v5011
    %v5115 = vunpack.c.l.b16 %v5012
    %v5116 = vunpack.c.l.b16 %v5013
    %v5117 = vunpack.c.l.b16 %v5014
    %v5118 = vunpack.c.l.b16 %v5015
    %v5119 = vunpack.c.l.b16 %v5016
    %v5120 = vunpack.c.l.b16 %v5017
    %v5121 = vunpack.c.l.b16 %v5018
    %v5122 = vunpack.c.l.b16 %v5019
    %v5123 = vunpack.c.l.b16 %v5020
    %v5124 = vunpack.c.l.b16 %v5021
    %v5125 = vunpack.c.l.b16 %v5022
    %v5126 = vunpack.c.l.b16 %v5023
    %v5127 = vunpack.c.l.b16 %v5024
    %v5128 = vunpack.c.l.b16 %v5025
    %v5129 = vunpack.c.l.b16 %v5026
    %v5130 = vunpack.c.l.b16 %v5027
    %v5131 = vunpack.c.l.b16 %v5028
    %v5132 = vunpack.c.l.b16 %v5029
    %v5133 = vunpack.c.l.b16 %v5030
    %v5134 = vunpack.c.l.b16 %v5031
    %v5135 = vunpack.c.l.b16 %v5032
    %v5136 = vunpack.c.l.b16 %v5033
    %v5137 = vunpack.c.l.b16 %v5034
    %v5138 = vunpack.c.l.b16 %v5035
    %v5139 = vunpack.c.l.b16 %v5036
    %v5140 = vunpack.c.l.b16 %v5037
    %v5141 = vunpack.c.l.b16 %v5038
    %v5142 = vunpack.c.l.b16 %v5039
    %v5143 = vunpack.c.l.b16 %v5040
    %v5144 = vunpack.c.l.b16 %v5041
    %v5145 = vunpack.c.l.b16 %v5042
    %v5146 = vunpack.c.l.b16 %v5043
    %v5147 = vunpack.c.l.b16 %v5044
    %v5148 = vunpack.c.l.b16 %v5045
    %v5149 = vunpack.c.l.b16 %v5046
    %v5150 = vunpack.c.l.b16 %v5047
    %v5151 = vunpack.c.l.b16 %v5048
    %v5152 = vunpack.c.l.b16 %v5049
    %v5153 = vunpack.c.l.b16 %v5050
    %v5154 = vunpack.c.l.b16 %v5051
    %v5155 = vunpack.c.l.b16 %v5052
    %v5156 = vunpack.c.l.b16 %v5053
    %v5157 = vunpack.c.l.b16 %v5054
    %v5158 = vunpack.c.l.b16 %v5055
    %v5159 = vunpack.c.l.b16 %v5056
    %v5160 = vunpack.c.l.b16 %v5057
    %v5161 = vpack.c.b16 %v5114, %v5113
    %v5162 = vpack.c.b16 %v5116, %v5115
    %v5163 = vpack.c.b16 %v5118, %v5117
    %v5164 = vpack.c.b16 %v5120, %v5119
    %v5165 = vpack.c.b16 %v5122, %v5121
    %v5166 = vpack.c.b16 %v5124, %v5123
    %v5167 = vpack.c.b16 %v5126, %v5125
    %v5168 = vpack.c.b16 %v5128, %v5127
    %v5169 = vpack.c.b16 %v5130, %v5129
    %v5170 = vpack.c.b16 %v5132, %v5131
    %v5171 = vpack.c.b16 %v5134, %v5133
    %v5172 = vpack.c.b16 %v5136, %v5135
    %v5173 = vpack.c.b16 %v5138, %v5137
    %v5174 = vpack.c.b16 %v5140, %v5139
    %v5175 = vpack.c.b16 %v5142, %v5141
    %v5176 = vpack.c.b16 %v5144, %v5143
    %v5177 = vpack.c.b16 %v5146, %v5145
    %v5178 = vpack.c.b16 %v5148, %v5147
    %v5179 = vpack.c.b16 %v5150, %v5149
    %v5180 = vpack.c.b16 %v5152, %v5151
    %v5181 = vpack.c.b16 %v5154, %v5153
    %v5182 = vpack.c.b16 %v5156, %v5155
    %v5183 = vpack.c.b16 %v5158, %v5157
    %v5184 = vpack.c.b16 %v5160, %v5159
    %5209 = vmatprep.subr.bf16.mxu0 0
    %5210 = vmatpush1.bf16.msra.mxu0 %v5161
    %5211 = vmatprep.subr.bf16.mxu0 0
    %5212 = vmatpush1.bf16.msra.mxu0 %v5162
    %5213 = vmatprep.subr.bf16.mxu0 0
    %5214 = vmatpush1.bf16.msra.mxu0 %v5163
    %5215 = vmatprep.subr.bf16.mxu0 0
    %5216 = vmatpush1.bf16.msra.mxu0 %v5164
    %5217 = vmatprep.subr.bf16.mxu0 0
    %5218 = vmatpush1.bf16.msra.mxu0 %v5165
    %5219 = vmatprep.subr.bf16.mxu0 0
    %5220 = vmatpush1.bf16.msra.mxu0 %v5166
    %5221 = vmatprep.subr.bf16.mxu0 0
    %5222 = vmatpush1.bf16.msra.mxu0 %v5167
    %5223 = vmatprep.subr.bf16.mxu0 0
    %5224 = vmatpush1.bf16.msra.mxu0 %v5168
    %5225 = vmatprep.subr.bf16.mxu0 0
    %5226 = vmatpush1.bf16.msra.mxu0 %v5169
    %5227 = vmatprep.subr.bf16.mxu0 0
    %5228 = vmatpush1.bf16.msra.mxu0 %v5170
    %5229 = vmatprep.subr.bf16.mxu0 0
    %5230 = vmatpush1.bf16.msra.mxu0 %v5171
    %5231 = vmatprep.subr.bf16.mxu0 0
    %5232 = vmatpush1.bf16.msra.mxu0 %v5172
    %5233 = vmatprep.subr.bf16.mxu0 0
    %5234 = vmatpush1.bf16.msra.mxu0 %v5173
    %5235 = vmatprep.subr.bf16.mxu0 0
    %5236 = vmatpush1.bf16.msra.mxu0 %v5174
    %5237 = vmatprep.subr.bf16.mxu0 0
    %5238 = vmatpush1.bf16.msra.mxu0 %v5175
    %5239 = vmatprep.subr.bf16.mxu0 0
    %5240 = vmatpush1.bf16.msra.mxu0 %v5176
    %5241 = vmatprep.mubr.bf16.mxu0 %v5005
    %5242 = vmatmul.mubr.bf16.gmra.mrb[0].mxu0 %v5004
    %v5243 = vpop.f32.mrb[0].mxu0
    %v5244 = vadd.f32 %v5063, %v5243
    %v5245 = vpop.f32.mrb[0].mxu0
    %v5246 = vpop.f32.mrb[0].mxu0
    %v5247 = vadd.f32 %v5063, %v5246
    %v5248 = vpop.f32.mrb[0].mxu0
    %5249 = vmatprep.mubr.bf16.mxu0 %v5008
    %5250 = vmatmul.mubr.bf16.gmra.mrb[0].mxu0 %v5007
    %v5251 = vpop.f32.mrb[0].mxu0
    %v5252 = vadd.f32 %v5063, %v5251
    %v5253 = vpop.f32.mrb[0].mxu0
    %v5254 = vpop.f32.mrb[0].mxu0
    %v5255 = vadd.f32 %v5063, %v5254
    %v5256 = vpop.f32.mrb[0].mxu0
    %5257 = vdwg.mxu0
    %5258 = vmatprep.subr.bf16.mxu0 0
    %5259 = vmatpush1.bf16.msra.mxu0 %v5177
    %5260 = vmatprep.subr.bf16.mxu0 0
    %5261 = vmatpush1.bf16.msra.mxu0 %v5178
    %5262 = vmatprep.subr.bf16.mxu0 0
    %5263 = vmatpush1.bf16.msra.mxu0 %v5179
    %5264 = vmatprep.subr.bf16.mxu0 0
    %5265 = vmatpush1.bf16.msra.mxu0 %v5180
    %5266 = vmatprep.subr.bf16.mxu0 0
    %5267 = vmatpush1.bf16.msra.mxu0 %v5181
    %5268 = vmatprep.subr.bf16.mxu0 0
    %5269 = vmatpush1.bf16.msra.mxu0 %v5182
    %5270 = vmatprep.subr.bf16.mxu0 0
    %5271 = vmatpush1.bf16.msra.mxu0 %v5183
    %5272 = vmatprep.subr.bf16.mxu0 0
    %5273 = vmatpush1.bf16.msra.mxu0 %v5184
    %5274 = vmatprep.subr.bf16.mxu0 0
    %5275 = vmatpush1.bf16.msra.mxu0 0
    %5276 = vmatprep.subr.bf16.mxu0 0
    %5277 = vmatpush1.bf16.msra.mxu0 0
    %5278 = vmatprep.subr.bf16.mxu0 0
    %5279 = vmatpush1.bf16.msra.mxu0 0
    %5280 = vmatprep.subr.bf16.mxu0 0
    %5281 = vmatpush1.bf16.msra.mxu0 0
    %5282 = vmatprep.subr.bf16.mxu0 0
    %5283 = vmatpush1.bf16.msra.mxu0 0
    %5284 = vmatprep.subr.bf16.mxu0 0
    %5285 = vmatpush1.bf16.msra.mxu0 0
    %5286 = vmatprep.subr.bf16.mxu0 0
    %5287 = vmatpush1.bf16.msra.mxu0 0
    %5288 = vmatprep.subr.bf16.mxu0 0
    %5289 = vmatpush1.bf16.msra.mxu0 0
    %5290 = vmatprep.mubr.bf16.mxu0 0
    %5291 = vmatmul.mubr.bf16.gmra.mrb[0].mxu0 %v5006
    %v5292 = vpop.f32.mrb[0].mxu0
    %v5293 = vadd.f32 %v5244, %v5292
    %v5294 = vpop.f32.mrb[0].mxu0
    %v5295 = vpop.f32.mrb[0].mxu0
    %v5296 = vadd.f32 %v5247, %v5295
    %v5297 = vpop.f32.mrb[0].mxu0
    %5298 = vmatprep.mubr.bf16.mxu0 0
    %5299 = vmatmul.mubr.bf16.gmra.mrb[0].mxu0 %v5009
    %v5300 = vpop.f32.mrb[0].mxu0
    %v5301 = vadd.f32 %v5252, %v5300
    %v5302 = vpop.f32.mrb[0].mxu0
    %v5303 = vpop.f32.mrb[0].mxu0
    %v5304 = vadd.f32 %v5255, %v5303
    %v5305 = vpop.f32.mrb[0].mxu0
    %5306 = vdwg.mxu0
    %v5307 = vmax.f32 %v5293, 0.0
    %v5308 = vmax.f32 %v5296, 0.0
    %v5309 = vmax.f32 %v5301, 0.0
    %v5310 = vmax.f32 %v5304, 0.0
    %v5311 = vpack.c.bf16 %v5308, %v5307
    %v5312 = vpack.c.bf16 %v5310, %v5309
    %v5313 = vld [vmem:[%s67] sm:$0xf]
    %v5314 = vld [vmem:[%s67 + $0x4] sm:$0xf]
    %v5315 = vld [vmem:[%s67 + $0x8] sm:$0xf]
    %v5316 = vld [vmem:[%s67 + $0xc] sm:$0xf]
    %v5317 = vld [vmem:[%s67 + $0x10] sm:$0xf]
    %v5318 = vld [vmem:[%s67 + $0x14] sm:$0xf]
    %v5319 = vld [vmem:[%s67 + $0x18] sm:$0xf]
    %v5320 = vld [vmem:[%s67 + $0x1c] sm:$0xf]
    %v5321 = vld [vmem:[%s67 + $0x20] sm:$0xf]
    %v5322 = vld [vmem:[%s67 + $0x24] sm:$0xf]
    %v5323 = vld [vmem:[%s67 + $0x28] sm:$0xf]
    %v5324 = vld [vmem:[%s67 + $0x2c] sm:$0xf]
    %v5325 = vld [vmem:[%s67 + $0x30] sm:$0xf]
    %v5326 = vld [vmem:[%s67 + $0x34] sm:$0xf]
    %v5327 = vld [vmem:[%s67 + $0x38] sm:$0xf]
    %v5328 = vld [vmem:[%s67 + $0x3c] sm:$0xf]
    %v5329 = vld [vmem:[#allocation36] sm:$0x1]
    %v5331 = vlaneseq
    %v5332 = vshrl.u32 %v5331, 7
    %v5333 = vsub.s32 0, %v5332
    %v5334 = vrot.slane %v5329, %v5333
    %v5352 = vunpack.c.l.b16 %v5313
    %v5353 = vunpack.c.l.b16 %v5314
    %v5354 = vunpack.c.l.b16 %v5315
    %v5355 = vunpack.c.l.b16 %v5316
    %v5356 = vunpack.c.l.b16 %v5317
    %v5357 = vunpack.c.l.b16 %v5318
    %v5358 = vunpack.c.l.b16 %v5319
    %v5359 = vunpack.c.l.b16 %v5320
    %v5360 = vunpack.c.l.b16 %v5321
    %v5361 = vunpack.c.l.b16 %v5322
    %v5362 = vunpack.c.l.b16 %v5323
    %v5363 = vunpack.c.l.b16 %v5324
    %v5364 = vunpack.c.l.b16 %v5325
    %v5365 = vunpack.c.l.b16 %v5326
    %v5366 = vunpack.c.l.b16 %v5327
    %v5367 = vunpack.c.l.b16 %v5328
    %v5368 = vpack.c.b16 %v5353, %v5352
    %v5369 = vpack.c.b16 %v5355, %v5354
    %v5370 = vpack.c.b16 %v5357, %v5356
    %v5371 = vpack.c.b16 %v5359, %v5358
    %v5372 = vpack.c.b16 %v5361, %v5360
    %v5373 = vpack.c.b16 %v5363, %v5362
    %v5374 = vpack.c.b16 %v5365, %v5364
    %v5375 = vpack.c.b16 %v5367, %v5366
    %5384 = vmatprep.subr.bf16.mxu0 0
    %5385 = vmatpush1.bf16.msra.mxu0 %v5368
    %5386 = vmatprep.subr.bf16.mxu0 0
    %5387 = vmatpush1.bf16.msra.mxu0 %v5369
    %5388 = vmatprep.subr.bf16.mxu0 0
    %5389 = vmatpush1.bf16.msra.mxu0 %v5370
    %5390 = vmatprep.subr.bf16.mxu0 0
    %5391 = vmatpush1.bf16.msra.mxu0 %v5371
    %5392 = vmatprep.subr.bf16.mxu0 0
    %5393 = vmatpush1.bf16.msra.mxu0 %v5372
    %5394 = vmatprep.subr.bf16.mxu0 0
    %5395 = vmatpush1.bf16.msra.mxu0 %v5373
    %5396 = vmatprep.subr.bf16.mxu0 0
    %5397 = vmatpush1.bf16.msra.mxu0 %v5374
    %5398 = vmatprep.subr.bf16.mxu0 0
    %5399 = vmatpush1.bf16.msra.mxu0 %v5375
    %5400 = vmatprep.subr.bf16.mxu0 0
    %5401 = vmatpush1.bf16.msra.mxu0 0
    %5402 = vmatprep.subr.bf16.mxu0 0
    %5403 = vmatpush1.bf16.msra.mxu0 0
    %5404 = vmatprep.subr.bf16.mxu0 0
    %5405 = vmatpush1.bf16.msra.mxu0 0
    %5406 = vmatprep.subr.bf16.mxu0 0
    %5407 = vmatpush1.bf16.msra.mxu0 0
    %5408 = vmatprep.subr.bf16.mxu0 0
    %5409 = vmatpush1.bf16.msra.mxu0 0
    %5410 = vmatprep.subr.bf16.mxu0 0
    %5411 = vmatpush1.bf16.msra.mxu0 0
    %5412 = vmatprep.subr.bf16.mxu0 0
    %5413 = vmatpush1.bf16.msra.mxu0 0
    %5414 = vmatprep.subr.bf16.mxu0 0
    %5415 = vmatpush1.bf16.msra.mxu0 0
    %5416 = vmatprep.mubr.bf16.mxu0 0
    %5417 = vmatmul.mubr.bf16.gmra.mrb[0].mxu0 %v5311
    %v5418 = vpop.f32.mrb[0].mxu0
    %v5419 = vadd.f32 %v5334, %v5418
    %v5420 = vpop.f32.mrb[0].mxu0
    %v5421 = vpop.f32.mrb[0].mxu0
    %v5422 = vadd.f32 %v5334, %v5421
    %v5423 = vpop.f32.mrb[0].mxu0
    %5424 = vmatprep.mubr.bf16.mxu0 0
    %5425 = vmatmul.mubr.bf16.gmra.mrb[0].mxu0 %v5312
    %v5426 = vpop.f32.mrb[0].mxu0
    %v5427 = vadd.f32 %v5334, %v5426
    %v5428 = vpop.f32.mrb[0].mxu0
    %v5429 = vpop.f32.mrb[0].mxu0
    %v5430 = vadd.f32 %v5334, %v5429
    %v5431 = vpop.f32.mrb[0].mxu0
    %5432 = vdwg.mxu0
    %vm5433 = vcmask 392192
    %5434 = vst.msk [vmem:[%s71] sm:$0xff] %vm5433, %v5419
    %5435 = vst.msk [vmem:[%s71 + $0x8] sm:$0xff] %vm5433, %v5422
    %5436 = vst.msk [vmem:[%s71 + $0x10] sm:$0xff] %vm5433, %v5427
    %5437 = vst.msk [vmem:[%s71 + $0x18] sm:$0xff] %vm5433, %v5430
    // Predicated region
    $region234: #{apply_fn.1} parent=1 // pred_check
      _
    $region235: #{apply_fn.1} parent=1 // pred_check_branch
      %5439 = sbr.rel (0) target = $region237
    $region236: #{apply_fn.1} parent=1 // pred_region
      _
    $region237: #{apply_fn.1} parent=1 // pred_fallthru
      _
    // Predicated region
    $region238: #{apply_fn.1} parent=1 // pred_check
      _
    $region239: #{apply_fn.1} parent=1 // pred_check_branch
      %5441 = sbr.rel (0) target = $region241
    $region240: #{apply_fn.1} parent=1 // pred_region
      _
    $region241: #{apply_fn.1} parent=1 // pred_fallthru
      _
    %5442 = vsyncpa [#allocation3], 1
    %5443 = vsyncpa [#allocation5], 1
    %5444 = vsyncpa [#allocation8], 1
    %5445 = vsyncpa [#allocation11], 1
    %5446 = vsyncpa [#allocation14], 1
    %5447 = vsyncpa [#allocation17], 1
    %5448 = vsyncpa [#allocation20], 1
    %5449 = vsyncpa [#allocation23], 1
    %5450 = vsyncpa [#allocation26], 1
    %5451 = vsyncpa [#allocation29], 1
    %5452 = vsyncpa [#allocation32], 1
    %5453 = vsyncpa [#allocation35], 1

</llo_original>
